<compile_context>
chip_gen: v7x
topology: tpu7x:2x2x1
jax: 0.10.0
libtpu: 0.0.40
codegen_flags: <defaults>
</compile_context>

<pallas_src>
import functools

import jax
import jax.numpy as jnp
from jax.experimental import pallas as pl
from jax.experimental.pallas import tpu as pltpu

BN_EPS = 1e-5


# ----------------------------------------------------------------------------
# Glue: temporal shift, done directly in NHWC so it fuses with the single
# NCHW->NHWC relayout (exact port of `shift` from the PyTorch module).
# TODO(synk): fold the shift into kernel 1 (scalar-prefetch index_map or
# in-kernel gather of the three channel groups) to save one HBM sweep.
# ----------------------------------------------------------------------------
def shift_nhwc(x, n_segment, fold_div=16):
    nt, h, w, c = x.shape
    if nt % n_segment != 0:
        n_segment = 4
        if nt % n_segment != 0:
            n_segment = 3
    n_t = nt // n_segment
    x5 = x.reshape(n_segment, n_t, h, w, c)
    fold = c // fold_div
    zeros_t = jnp.zeros((n_segment, 1, h, w, fold), x.dtype)
    g0 = jnp.concatenate([x5[:, 1:, :, :, :fold], zeros_t], axis=1)
    g1 = jnp.concatenate([zeros_t, x5[:, :-1, :, :, fold:2 * fold]], axis=1)
    g2 = x5[:, :, :, :, 2 * fold:]
    out = jnp.concatenate([g0, g1, g2], axis=-1)
    return out.reshape(nt, h, w, c)


# ----------------------------------------------------------------------------
# In-kernel helpers
# ----------------------------------------------------------------------------
def _zero_halo_border(xp_ref, h, w, padw):
    """Zero only the halo strips the 3x3 taps read (rows 0/h+1, cols padw-1 /
    padw+w).  Interior is fully overwritten every step, so this is enough and
    is correct under any grid->core assignment."""
    t = xp_ref.shape[0]
    cin = xp_ref.shape[-1]
    z_row = jnp.zeros((t, 1, w + 2, cin), xp_ref.dtype)
    xp_ref[:, 0:1, padw - 1:padw + w + 1, :] = z_row
    xp_ref[:, h + 1:h + 2, padw - 1:padw + w + 1, :] = z_row
    z_col = jnp.zeros((t, h + 2, 1, cin), xp_ref.dtype)
    xp_ref[:, :, padw - 1:padw, :] = z_col
    xp_ref[:, :, padw + w:padw + w + 1, :] = z_col


def _conv3x3(xp_ref, w_ref, t, h, w, cin, cp, padw):
    """3x3 SAME conv of one NT-tile.

    xp_ref: (t, h+2, Ws, cin) zero-bordered scratch; the conv input lives at
            [:, 1:h+1, padw:padw+w, :].
    w_ref:  (9, cin, cp) per-tap packed weights (Cout zero-padded to cp).
    returns (t*h*w, cp) f32 accumulator.

    Default: 9 accumulated MXU matmuls (no im2col materialization).  The
    fat-K concat im2col is used only when cin is a 128-multiple (lane aligned).
    """
    rows = t * h * w
    offs = [(dy, padw - 1 + dx) for dy in range(3) for dx in range(3)]
    if cin % 128 == 0:
        taps = [xp_ref[:, dy:dy + h, x0:x0 + w, :].reshape(rows, cin)
                for dy, x0 in offs]
        patches = jnp.concatenate(taps, axis=1)                 # (rows, 9*cin)
        return jnp.dot(patches, w_ref[...].reshape(9 * cin, cp),
                       preferred_element_type=jnp.float32)
    acc = jnp.zeros((rows, cp), jnp.float32)
    for k, (dy, x0) in enumerate(offs):
        tap = xp_ref[:, dy:dy + h, x0:x0 + w, :].reshape(rows, cin)
        acc = acc + jnp.dot(tap, w_ref[k], preferred_element_type=jnp.float32)
    return acc


def _tile_stats(acc, cp):
    """Per-tile BN partials: row0 = sum, row1 = sum of squares (lane-dense)."""
    ssum = jnp.sum(acc, axis=0, keepdims=True)
    ssq = jnp.sum(acc * acc, axis=0, keepdims=True)
    rows = jax.lax.broadcasted_iota(jnp.int32, (8, cp), 0)
    return jnp.where(rows == 0, ssum, jnp.where(rows == 1, ssq, 0.0))


# ----------------------------------------------------------------------------
# Pallas kernels
# ----------------------------------------------------------------------------
def conv_stats_kernel(x_ref, w_ref, y_ref, st_ref, xp_ref, *, padw):
    """conv1 (pre-BN) + per-tile BN1 sum/sumsq partials."""
    t, h, w, cin = x_ref.shape
    cp = y_ref.shape[-1]
    _zero_halo_border(xp_ref, h, w, padw)
    xp_ref[:, 1:h + 1, padw:padw + w, :] = x_ref[...]
    acc = _conv3x3(xp_ref, w_ref, t, h, w, cin, cp, padw)
    y_ref[...] = acc.reshape(t, h, w, cp).astype(y_ref.dtype)
    st_ref[...] = _tile_stats(acc, cp)


def bn_relu_conv_stats_kernel(y1_ref, scale_ref, bias_ref, w_ref,
                              y2_ref, st_ref, ap_ref, *, padw):
    """bn1-affine + relu1 (valid channels only) + conv2 + BN2 partials."""
    t, h, w, cp = y1_ref.shape
    ck = ap_ref.shape[-1]                 # true `planes`
    y1 = y1_ref[...]
    sc = scale_ref[...]
    bi = bias_ref[...]
    act = jnp.maximum(
        y1[..., :ck].astype(jnp.float32) * sc[:, :ck] + bi[:, :ck], 0.0)
    _zero_halo_border(ap_ref, h, w, padw)
    ap_ref[:, 1:h + 1, padw:padw + w, :] = act.astype(ap_ref.dtype)
    acc = _conv3x3(ap_ref, w_ref, t, h, w, ck, cp, padw)
    y2_ref[...] = acc.reshape(t, h, w, cp).astype(y2_ref.dtype)
    st_ref[...] = _tile_stats(acc, cp)


def bn_add_relu_kernel(y2_ref, scale_ref, bias_ref, res_ref, out_ref):
    """bn2-affine + residual add + relu2, emitted at TRUE channel width."""
    cout = out_ref.shape[-1]
    y2 = y2_ref[...]
    sc = scale_ref[...]
    bi = bias_ref[...]
    y = y2[..., :cout].astype(jnp.float32) * sc[:, :cout] + bi[:, :cout]
    out_ref[...] = jnp.maximum(
        y + res_ref[...].astype(jnp.float32), 0.0).astype(out_ref.dtype)


# ----------------------------------------------------------------------------
# Wrapper helpers
# ----------------------------------------------------------------------------
def _round_up(n, m):
    return ((n + m - 1) // m) * m


def _sublane_multiple(dtype):
    """Sublane tile height for this dtype: 8 (f32), 16 (bf16), 32 (int8/fp8)."""
    return max(8, 32 // jnp.dtype(dtype).itemsize)


def _pack_weight(w_hwio, cp, dtype):
    """(3,3,Cin,Cout) HWIO -> (9, Cin, cp): per-tap slabs, Cout zero-padded."""
    kh, kw, cin, cout = w_hwio.shape
    wp = w_hwio.reshape(kh * kw, cin, cout)
    if cout < cp:
        wp = jnp.pad(wp, ((0, 0), (0, 0), (0, cp - cout)))
    return wp.astype(dtype)


def _bn_affine(stats, gamma, beta, count, cp):
    """Reduce per-tile partials -> per-channel (scale, bias) for y*scale+bias."""
    ssum = jnp.sum(stats[:, 0, :], axis=0)
    ssq = jnp.sum(stats[:, 1, :], axis=0)
    mean = ssum / count
    var = jnp.maximum(ssq / count - mean * mean, 0.0)   # biased variance
    inv_std = jax.lax.rsqrt(var + BN_EPS)
    g = jnp.pad(gamma.astype(jnp.float32), (0, cp - gamma.shape[0]))
    b = jnp.pad(beta.astype(jnp.float32), (0, cp - beta.shape[0]))
    scale = g * inv_std
    bias = b - mean * scale
    return scale[None, :], bias[None, :]                # (1, cp) each


def _vmem_config():
    """Generation-specific VMEM tile budget / scoped limit / core count."""
    try:
        kind = jax.devices()[0].device_kind.lower()
    except Exception:  # pragma: no cover - no accelerator visible at trace
        kind = ""
    is_v7 = "7" in kind
    big_vmem = any(s in kind for s in ("v4", "v5", "v6")) and not is_v7
    if big_vmem:
        # v5e / v5p / v6e: 128 MiB physical VMEM.
        return dict(budget=48 << 20, vmem_limit=96 << 20, two_cores=False)
    # v7x (64 MiB physical, 2 TCs) or unknown: be conservative.
    return dict(budget=24 << 20, vmem_limit=48 << 20, two_cores=is_v7)


def _pick_tile(nt, est_fn, budget, two_cores):
    """Largest divisor of nt whose per-step working set fits `budget`; on a
    2-TC chip prefer an even number of >= 2 grid steps so both cores work."""
    cands = [t for t in range(1, nt + 1) if nt % t == 0 and est_fn(t) <= budget]
    if two_cores and cands:
        even = [t for t in cands if (nt // t) >= 2 and (nt // t) % 2 == 0]
        multi = [t for t in cands if (nt // t) >= 2]
        cands = even or multi or cands
    return max(cands) if cands else 1


def _conv_tile_est(h, w, c, planes, cp, itemsize, ws):
    k = max(c, planes)
    hw = h * w

    def est(t):
        b = (2 * t * hw * cp * itemsize            # widest input block (dbl buf)
             + 2 * t * hw * cp * itemsize          # conv output block (dbl buf)
             + t * (h + 2) * ws * k * itemsize     # halo scratch
             + t * hw * cp * 4                     # f32 accumulator
             + 2 * t * hw * k * 4                  # f32 activation / tap headroom
             + 2 * 9 * k * cp * itemsize)          # packed weights (dbl buf)
        if k % 128 == 0:                           # fat-K im2col patches buffer
            b += t * hw * 9 * k * itemsize
        return b

    return est


def _epi_tile_est(h, w, c, cp, cout, itemsize):
    hw = h * w

    def est(t):
        return 2 * t * hw * (cp + c + cout) * itemsize + 2 * t * hw * cp * 4

    return est


# ----------------------------------------------------------------------------
# Wrapper: BasicBlock.forward
# ----------------------------------------------------------------------------
def basic_block_forward(x_nchw, params, n_segment, tile_nt=None):
    nt, c, h, w = x_nchw.shape
    planes = params["w1"].shape[-1]
    assert c == planes, "downsample=None path requires inplanes == planes"
    cp = _round_up(planes, 128)          # lane-dense channel width for conv outs
    dt = x_nchw.dtype
    itemsize = jnp.dtype(dt).itemsize

    padw = _sublane_multiple(dt)                    # aligned halo interior offset
    ws = _round_up(padw + w + 1, padw)              # scratch W extent

    cfg = _vmem_config()

    # Single NCHW->NHWC relayout, fused with the temporal shift.
    x_nhwc = jnp.transpose(x_nchw, (0, 2, 3, 1))
    shifted = shift_nhwc(x_nhwc, n_segment, fold_div=16)

    w1p = _pack_weight(params["w1"], cp, dt)        # (9, c, cp)
    w2p = _pack_weight(params["w2"], cp, dt)        # (9, planes, cp)

    if tile_nt is None:
        tile_nt = _pick_tile(nt, _conv_tile_est(h, w, c, planes, cp, itemsize, ws),
                             cfg["budget"], cfg["two_cores"])
    assert nt % tile_nt == 0, (nt, tile_nt)
    n_tiles = nt // tile_nt

    # The epilogue has no halo scratch / accumulator -> give it a bigger tile.
    tile3 = _pick_tile(nt, _epi_tile_est(h, w, c, cp, planes, itemsize),
                       cfg["budget"], cfg["two_cores"])
    n_tiles3 = nt // tile3

    count = nt * h * w

    cparams = pltpu.CompilerParams(
        dimension_semantics=("parallel",),
        vmem_limit_bytes=cfg["vmem_limit"])

    tile4 = lambda i: (i, 0, 0, 0)
    bcast2 = lambda i: (0, 0)
    bcast3 = lambda i: (0, 0, 0)

    # ---- conv1 + partial BN1 stats -----------------------------------------
    y1_raw, st1 = pl.pallas_call(
        functools.partial(conv_stats_kernel, padw=padw),
        grid=(n_tiles,),
        in_specs=(
            pl.BlockSpec((tile_nt, h, w, c), tile4),
            pl.BlockSpec((9, c, cp), bcast3),
        ),
        out_specs=(
            pl.BlockSpec((tile_nt, h, w, cp), tile4),
            pl.BlockSpec((None, 8, cp), lambda i: (i, 0, 0)),
        ),
        out_shape=(
            jax.ShapeDtypeStruct((nt, h, w, cp), dt),
            jax.ShapeDtypeStruct((n_tiles, 8, cp), jnp.float32),
        ),
        scratch_shapes=[pltpu.VMEM((tile_nt, h + 2, ws, c), dt)],
        compiler_params=cparams,
    )(shifted, w1p)

    scale1, bias1 = _bn_affine(st1, params["gamma1"], params["beta1"], count, cp)

    # ---- bn1 + relu1 + conv2 + partial BN2 stats ---------------------------
    y2_raw, st2 = pl.pallas_call(
        functools.partial(bn_relu_conv_stats_kernel, padw=padw),
        grid=(n_tiles,),
        in_specs=(
            pl.BlockSpec((tile_nt, h, w, cp), tile4),
            pl.BlockSpec((1, cp), bcast2),
            pl.BlockSpec((1, cp), bcast2),
            pl.BlockSpec((9, planes, cp), bcast3),
        ),
        out_specs=(
            pl.BlockSpec((tile_nt, h, w, cp), tile4),
            pl.BlockSpec((None, 8, cp), lambda i: (i, 0, 0)),
        ),
        out_shape=(
            jax.ShapeDtypeStruct((nt, h, w, cp), dt),
            jax.ShapeDtypeStruct((n_tiles, 8, cp), jnp.float32),
        ),
        scratch_shapes=[pltpu.VMEM((tile_nt, h + 2, ws, planes), dt)],
        compiler_params=cparams,
    )(y1_raw, scale1, bias1, w2p)

    scale2, bias2 = _bn_affine(st2, params["gamma2"], params["beta2"], count, cp)

    # ---- bn2 + residual add + relu2 (true channel width) -------------------
    out_nhwc = pl.pallas_call(
        bn_add_relu_kernel,
        grid=(n_tiles3,),
        in_specs=(
            pl.BlockSpec((tile3, h, w, cp), tile4),
            pl.BlockSpec((1, cp), bcast2),
            pl.BlockSpec((1, cp), bcast2),
            pl.BlockSpec((tile3, h, w, c), tile4),
        ),
        out_specs=pl.BlockSpec((tile3, h, w, planes), tile4),
        out_shape=jax.ShapeDtypeStruct((nt, h, w, planes), dt),
        compiler_params=cparams,
    )(y2_raw, scale2, bias2, x_nhwc)     # residual = pre-shift x

    return jnp.transpose(out_nhwc, (0, 3, 1, 2))          # back to NCHW


# ----------------------------------------------------------------------------
# Pure-JAX reference (for correctness check)
# ----------------------------------------------------------------------------
def reference_forward(x_nchw, params, n_segment):
    def conv(x, w_hwio):
        return jax.lax.conv_general_dilated(
            x, w_hwio, window_strides=(1, 1), padding="SAME",
            dimension_numbers=("NCHW", "HWIO", "NCHW"))

    def bn(x, g, b):
        mean = x.mean(axis=(0, 2, 3), keepdims=True)
        var = ((x - mean) ** 2).mean(axis=(0, 2, 3), keepdims=True)
        return ((x - mean) * jax.lax.rsqrt(var + BN_EPS)
                * g.reshape(1, -1, 1, 1) + b.reshape(1, -1, 1, 1))

    x_nhwc = jnp.transpose(x_nchw, (0, 2, 3, 1))
    shifted = jnp.transpose(shift_nhwc(x_nhwc, n_segment, 16), (0, 3, 1, 2))
    out = jnp.maximum(
        bn(conv(shifted, params["w1"]), params["gamma1"], params["beta1"]), 0.0)
    out = bn(conv(out, params["w2"]), params["gamma2"], params["beta2"])
    return jnp.maximum(out + x_nchw, 0.0)


if __name__ == "__main__":
    # Small shapes: nt = 8 frames, 16 channels, 8x8 spatial.
    # `batch` (the undefined global used as n_segment in the torch code) := 2.
    NT, C, H, W = 8, 16, 8, 8
    PLANES = 16
    N_SEGMENT = 2
    TILE_NT = 2          # 4 grid steps -> exercises cross-tile BN stats & halo reuse

    key = jax.random.PRNGKey(0)
    k_x, k_w1, k_w2, k_g1, k_b1, k_g2, k_b2 = jax.random.split(key, 7)

    x = jax.random.normal(k_x, (NT, C, H, W), jnp.float32)

    params = {
        # conv weights stored HWIO (3, 3, Cin, Cout)
        "w1": jax.random.normal(k_w1, (3, 3, C, PLANES), jnp.float32) * 0.1,
        "w2": jax.random.normal(k_w2, (3, 3, PLANES, PLANES), jnp.float32) * 0.1,
        "gamma1": 1.0 + 0.1 * jax.random.normal(k_g1, (PLANES,), jnp.float32),
        "beta1": 0.1 * jax.random.normal(k_b1, (PLANES,), jnp.float32),
        "gamma2": 1.0 + 0.1 * jax.random.normal(k_g2, (PLANES,), jnp.float32),
        "beta2": 0.1 * jax.random.normal(k_b2, (PLANES,), jnp.float32),
    }

    fwd = jax.jit(basic_block_forward, static_argnums=(2, 3))
    out = jax.block_until_ready(fwd(x, params, N_SEGMENT, TILE_NT))
    ref = jax.block_until_ready(reference_forward(x, params, N_SEGMENT))

    assert out.shape == (NT, PLANES, H, W), out.shape
    max_err = float(jnp.max(jnp.abs(out - ref)))
    assert max_err < 1e-3, max_err

    print("KERNEL_OK")
</pallas_src>

<mosaic_0001>
module attributes {stable_mosaic.version = 11 : i64} {
  func.func @conv_stats_kernel(%arg0: i32, %arg1: memref<2x8x8x16xf32, #tpu.memory_space<vmem>>, %arg2: memref<9x16x128xf32, #tpu.memory_space<vmem>>, %arg3: memref<2x8x8x128xf32, #tpu.memory_space<vmem>>, %arg4: memref<1x8x128xf32, #tpu.memory_space<vmem>>, %arg5: memref<2x10x24x16xf32, #tpu.memory_space<vmem>>) attributes {dimension_semantics = [#tpu.dimension_semantics<parallel>], iteration_bounds = array<i64: 4>, scalar_prefetch = 0 : i64, scratch_operands = 1 : i64, tpu.core_type = #tpu.core_type<tc>, window_params = [{transform_indices = @transform_0, window_bounds = array<i64: 2, 8, 8, 16>}, {pipeline_mode = #tpu.pipeline_mode<synchronous>, transform_indices = @transform_1, window_bounds = array<i64: 9, 16, 128>}, {transform_indices = @transform_2, window_bounds = array<i64: 2, 8, 8, 128>}, {transform_indices = @transform_3, window_bounds = array<i64: 1, 8, 128>}]} {
    %cst = arith.constant 0.000000e+00 : f32
    %0 = vector.broadcast %cst : f32 to vector<2x1x10x16xf32>
    %c0 = arith.constant 0 : index
    %c0_0 = arith.constant 0 : index
    %c7 = arith.constant 7 : index
    %c0_1 = arith.constant 0 : index
    %1 = vector.load %arg5[%c0, %c0_0, %c7, %c0_1] : memref<2x10x24x16xf32, #tpu.memory_space<vmem>>, vector<2x1x10x16xf32>
    tpu.vector_store %arg5[%c0, %c0_0, %c7, %c0_1], %0 {strides = array<i32>} : memref<2x10x24x16xf32, #tpu.memory_space<vmem>>, vector<2x1x10x16xf32>,
    %c0_2 = arith.constant 0 : index
    %c9 = arith.constant 9 : index
    %c7_3 = arith.constant 7 : index
    %c0_4 = arith.constant 0 : index
    %2 = vector.load %arg5[%c0_2, %c9, %c7_3, %c0_4] : memref<2x10x24x16xf32, #tpu.memory_space<vmem>>, vector<2x1x10x16xf32>
    tpu.vector_store %arg5[%c0_2, %c9, %c7_3, %c0_4], %0 {strides = array<i32>} : memref<2x10x24x16xf32, #tpu.memory_space<vmem>>, vector<2x1x10x16xf32>,
    %cst_5 = arith.constant 0.000000e+00 : f32
    %3 = vector.broadcast %cst_5 : f32 to vector<2x10x1x16xf32>
    %c0_6 = arith.constant 0 : index
    %c0_7 = arith.constant 0 : index
    %c7_8 = arith.constant 7 : index
    %c0_9 = arith.constant 0 : index
    %4 = vector.load %arg5[%c0_6, %c0_7, %c7_8, %c0_9] : memref<2x10x24x16xf32, #tpu.memory_space<vmem>>, vector<2x10x1x16xf32>
    tpu.vector_store %arg5[%c0_6, %c0_7, %c7_8, %c0_9], %3 {strides = array<i32>} : memref<2x10x24x16xf32, #tpu.memory_space<vmem>>, vector<2x10x1x16xf32>,
    %c0_10 = arith.constant 0 : index
    %c0_11 = arith.constant 0 : index
    %c16 = arith.constant 16 : index
    %c0_12 = arith.constant 0 : index
    %5 = vector.load %arg5[%c0_10, %c0_11, %c16, %c0_12] : memref<2x10x24x16xf32, #tpu.memory_space<vmem>>, vector<2x10x1x16xf32>
    tpu.vector_store %arg5[%c0_10, %c0_11, %c16, %c0_12], %3 {strides = array<i32>} : memref<2x10x24x16xf32, #tpu.memory_space<vmem>>, vector<2x10x1x16xf32>,
    %c0_13 = arith.constant 0 : index
    %c0_14 = arith.constant 0 : index
    %c0_15 = arith.constant 0 : index
    %c0_16 = arith.constant 0 : index
    %6 = vector.load %arg1[%c0_13, %c0_14, %c0_15, %c0_16] : memref<2x8x8x16xf32, #tpu.memory_space<vmem>>, vector<2x8x8x16xf32>
    %c0_17 = arith.constant 0 : index
    %c1 = arith.constant 1 : index
    %c8 = arith.constant 8 : index
    %c0_18 = arith.constant 0 : index
    %7 = vector.load %arg5[%c0_17, %c1, %c8, %c0_18] : memref<2x10x24x16xf32, #tpu.memory_space<vmem>>, vector<2x8x8x16xf32>
    tpu.vector_store %arg5[%c0_17, %c1, %c8, %c0_18], %6 {strides = array<i32>} : memref<2x10x24x16xf32, #tpu.memory_space<vmem>>, vector<2x8x8x16xf32>,
    %cst_19 = arith.constant 0.000000e+00 : f32
    %8 = vector.broadcast %cst_19 : f32 to vector<128x128xf32>
    %c0_20 = arith.constant 0 : index
    %c0_21 = arith.constant 0 : index
    %c7_22 = arith.constant 7 : index
    %c0_23 = arith.constant 0 : index
    %9 = vector.load %arg5[%c0_20, %c0_21, %c7_22, %c0_23] : memref<2x10x24x16xf32, #tpu.memory_space<vmem>>, vector<2x8x8x16xf32>
    %10 = vector.shape_cast %9 : vector<2x8x8x16xf32> to vector<128x16xf32>
    %c0_24 = arith.constant 0 : index
    %c0_25 = arith.constant 0 : index
    %c0_26 = arith.constant 0 : index
    %11 = vector.load %arg2[%c0_24, %c0_25, %c0_26] : memref<9x16x128xf32, #tpu.memory_space<vmem>>, vector<1x16x128xf32>
    %12 = vector.shape_cast %11 : vector<1x16x128xf32> to vector<16x128xf32>
    %cst_27 = arith.constant dense<0.000000e+00> : vector<128x128xf32>
    %13 = tpu.matmul %10, %12, %cst_27 {dimension_numbers = #tpu.dot_dimension_numbers<[1], [0], [0], [1], [0, 0, 1, 1], [], []>} : vector<128x16xf32>, vector<16x128xf32>, vector<128x128xf32> -> vector<128x128xf32>
    %14 = arith.addf %8, %13 : vector<128x128xf32>
    %c0_28 = arith.constant 0 : index
    %c0_29 = arith.constant 0 : index
    %c8_30 = arith.constant 8 : index
    %c0_31 = arith.constant 0 : index
    %15 = vector.load %arg5[%c0_28, %c0_29, %c8_30, %c0_31] : memref<2x10x24x16xf32, #tpu.memory_space<vmem>>, vector<2x8x8x16xf32>
    %16 = vector.shape_cast %15 : vector<2x8x8x16xf32> to vector<128x16xf32>
    %c1_32 = arith.constant 1 : index
    %c0_33 = arith.constant 0 : index
    %c0_34 = arith.constant 0 : index
    %17 = vector.load %arg2[%c1_32, %c0_33, %c0_34] : memref<9x16x128xf32, #tpu.memory_space<vmem>>, vector<1x16x128xf32>
    %18 = vector.shape_cast %17 : vector<1x16x128xf32> to vector<16x128xf32>
    %cst_35 = arith.constant dense<0.000000e+00> : vector<128x128xf32>
    %19 = tpu.matmul %16, %18, %cst_35 {dimension_numbers = #tpu.dot_dimension_numbers<[1], [0], [0], [1], [0, 0, 1, 1], [], []>} : vector<128x16xf32>, vector<16x128xf32>, vector<128x128xf32> -> vector<128x128xf32>
    %20 = arith.addf %14, %19 : vector<128x128xf32>
    %c0_36 = arith.constant 0 : index
    %c0_37 = arith.constant 0 : index
    %c9_38 = arith.constant 9 : index
    %c0_39 = arith.constant 0 : index
    %21 = vector.load %arg5[%c0_36, %c0_37, %c9_38, %c0_39] : memref<2x10x24x16xf32, #tpu.memory_space<vmem>>, vector<2x8x8x16xf32>
    %22 = vector.shape_cast %21 : vector<2x8x8x16xf32> to vector<128x16xf32>
    %c2 = arith.constant 2 : index
    %c0_40 = arith.constant 0 : index
    %c0_41 = arith.constant 0 : index
    %23 = vector.load %arg2[%c2, %c0_40, %c0_41] : memref<9x16x128xf32, #tpu.memory_space<vmem>>, vector<1x16x128xf32>
    %24 = vector.shape_cast %23 : vector<1x16x128xf32> to vector<16x128xf32>
    %cst_42 = arith.constant dense<0.000000e+00> : vector<128x128xf32>
    %25 = tpu.matmul %22, %24, %cst_42 {dimension_numbers = #tpu.dot_dimension_numbers<[1], [0], [0], [1], [0, 0, 1, 1], [], []>} : vector<128x16xf32>, vector<16x128xf32>, vector<128x128xf32> -> vector<128x128xf32>
    %26 = arith.addf %20, %25 : vector<128x128xf32>
    %c0_43 = arith.constant 0 : index
    %c1_44 = arith.constant 1 : index
    %c7_45 = arith.constant 7 : index
    %c0_46 = arith.constant 0 : index
    %27 = vector.load %arg5[%c0_43, %c1_44, %c7_45, %c0_46] : memref<2x10x24x16xf32, #tpu.memory_space<vmem>>, vector<2x8x8x16xf32>
    %28 = vector.shape_cast %27 : vector<2x8x8x16xf32> to vector<128x16xf32>
    %c3 = arith.constant 3 : index
    %c0_47 = arith.constant 0 : index
    %c0_48 = arith.constant 0 : index
    %29 = vector.load %arg2[%c3, %c0_47, %c0_48] : memref<9x16x128xf32, #tpu.memory_space<vmem>>, vector<1x16x128xf32>
    %30 = vector.shape_cast %29 : vector<1x16x128xf32> to vector<16x128xf32>
    %cst_49 = arith.constant dense<0.000000e+00> : vector<128x128xf32>
    %31 = tpu.matmul %28, %30, %cst_49 {dimension_numbers = #tpu.dot_dimension_numbers<[1], [0], [0], [1], [0, 0, 1, 1], [], []>} : vector<128x16xf32>, vector<16x128xf32>, vector<128x128xf32> -> vector<128x128xf32>
    %32 = arith.addf %26, %31 : vector<128x128xf32>
    %c0_50 = arith.constant 0 : index
    %c1_51 = arith.constant 1 : index
    %c8_52 = arith.constant 8 : index
    %c0_53 = arith.constant 0 : index
    %33 = vector.load %arg5[%c0_50, %c1_51, %c8_52, %c0_53] : memref<2x10x24x16xf32, #tpu.memory_space<vmem>>, vector<2x8x8x16xf32>
    %34 = vector.shape_cast %33 : vector<2x8x8x16xf32> to vector<128x16xf32>
    %c4 = arith.constant 4 : index
    %c0_54 = arith.constant 0 : index
    %c0_55 = arith.constant 0 : index
    %35 = vector.load %arg2[%c4, %c0_54, %c0_55] : memref<9x16x128xf32, #tpu.memory_space<vmem>>, vector<1x16x128xf32>
    %36 = vector.shape_cast %35 : vector<1x16x128xf32> to vector<16x128xf32>
    %cst_56 = arith.constant dense<0.000000e+00> : vector<128x128xf32>
    %37 = tpu.matmul %34, %36, %cst_56 {dimension_numbers = #tpu.dot_dimension_numbers<[1], [0], [0], [1], [0, 0, 1, 1], [], []>} : vector<128x16xf32>, vector<16x128xf32>, vector<128x128xf32> -> vector<128x128xf32>
    %38 = arith.addf %32, %37 : vector<128x128xf32>
    %c0_57 = arith.constant 0 : index
    %c1_58 = arith.constant 1 : index
    %c9_59 = arith.constant 9 : index
    %c0_60 = arith.constant 0 : index
    %39 = vector.load %arg5[%c0_57, %c1_58, %c9_59, %c0_60] : memref<2x10x24x16xf32, #tpu.memory_space<vmem>>, vector<2x8x8x16xf32>
    %40 = vector.shape_cast %39 : vector<2x8x8x16xf32> to vector<128x16xf32>
    %c5 = arith.constant 5 : index
    %c0_61 = arith.constant 0 : index
    %c0_62 = arith.constant 0 : index
    %41 = vector.load %arg2[%c5, %c0_61, %c0_62] : memref<9x16x128xf32, #tpu.memory_space<vmem>>, vector<1x16x128xf32>
    %42 = vector.shape_cast %41 : vector<1x16x128xf32> to vector<16x128xf32>
    %cst_63 = arith.constant dense<0.000000e+00> : vector<128x128xf32>
    %43 = tpu.matmul %40, %42, %cst_63 {dimension_numbers = #tpu.dot_dimension_numbers<[1], [0], [0], [1], [0, 0, 1, 1], [], []>} : vector<128x16xf32>, vector<16x128xf32>, vector<128x128xf32> -> vector<128x128xf32>
    %44 = arith.addf %38, %43 : vector<128x128xf32>
    %c0_64 = arith.constant 0 : index
    %c2_65 = arith.constant 2 : index
    %c7_66 = arith.constant 7 : index
    %c0_67 = arith.constant 0 : index
    %45 = vector.load %arg5[%c0_64, %c2_65, %c7_66, %c0_67] : memref<2x10x24x16xf32, #tpu.memory_space<vmem>>, vector<2x8x8x16xf32>
    %46 = vector.shape_cast %45 : vector<2x8x8x16xf32> to vector<128x16xf32>
    %c6 = arith.constant 6 : index
    %c0_68 = arith.constant 0 : index
    %c0_69 = arith.constant 0 : index
    %47 = vector.load %arg2[%c6, %c0_68, %c0_69] : memref<9x16x128xf32, #tpu.memory_space<vmem>>, vector<1x16x128xf32>
    %48 = vector.shape_cast %47 : vector<1x16x128xf32> to vector<16x128xf32>
    %cst_70 = arith.constant dense<0.000000e+00> : vector<128x128xf32>
    %49 = tpu.matmul %46, %48, %cst_70 {dimension_numbers = #tpu.dot_dimension_numbers<[1], [0], [0], [1], [0, 0, 1, 1], [], []>} : vector<128x16xf32>, vector<16x128xf32>, vector<128x128xf32> -> vector<128x128xf32>
    %50 = arith.addf %44, %49 : vector<128x128xf32>
    %c0_71 = arith.constant 0 : index
    %c2_72 = arith.constant 2 : index
    %c8_73 = arith.constant 8 : index
    %c0_74 = arith.constant 0 : index
    %51 = vector.load %arg5[%c0_71, %c2_72, %c8_73, %c0_74] : memref<2x10x24x16xf32, #tpu.memory_space<vmem>>, vector<2x8x8x16xf32>
    %52 = vector.shape_cast %51 : vector<2x8x8x16xf32> to vector<128x16xf32>
    %c7_75 = arith.constant 7 : index
    %c0_76 = arith.constant 0 : index
    %c0_77 = arith.constant 0 : index
    %53 = vector.load %arg2[%c7_75, %c0_76, %c0_77] : memref<9x16x128xf32, #tpu.memory_space<vmem>>, vector<1x16x128xf32>
    %54 = vector.shape_cast %53 : vector<1x16x128xf32> to vector<16x128xf32>
    %cst_78 = arith.constant dense<0.000000e+00> : vector<128x128xf32>
    %55 = tpu.matmul %52, %54, %cst_78 {dimension_numbers = #tpu.dot_dimension_numbers<[1], [0], [0], [1], [0, 0, 1, 1], [], []>} : vector<128x16xf32>, vector<16x128xf32>, vector<128x128xf32> -> vector<128x128xf32>
    %56 = arith.addf %50, %55 : vector<128x128xf32>
    %c0_79 = arith.constant 0 : index
    %c2_80 = arith.constant 2 : index
    %c9_81 = arith.constant 9 : index
    %c0_82 = arith.constant 0 : index
    %57 = vector.load %arg5[%c0_79, %c2_80, %c9_81, %c0_82] : memref<2x10x24x16xf32, #tpu.memory_space<vmem>>, vector<2x8x8x16xf32>
    %58 = vector.shape_cast %57 : vector<2x8x8x16xf32> to vector<128x16xf32>
    %c8_83 = arith.constant 8 : index
    %c0_84 = arith.constant 0 : index
    %c0_85 = arith.constant 0 : index
    %59 = vector.load %arg2[%c8_83, %c0_84, %c0_85] : memref<9x16x128xf32, #tpu.memory_space<vmem>>, vector<1x16x128xf32>
    %60 = vector.shape_cast %59 : vector<1x16x128xf32> to vector<16x128xf32>
    %cst_86 = arith.constant dense<0.000000e+00> : vector<128x128xf32>
    %61 = tpu.matmul %58, %60, %cst_86 {dimension_numbers = #tpu.dot_dimension_numbers<[1], [0], [0], [1], [0, 0, 1, 1], [], []>} : vector<128x16xf32>, vector<16x128xf32>, vector<128x128xf32> -> vector<128x128xf32>
    %62 = arith.addf %56, %61 : vector<128x128xf32>
    %63 = vector.shape_cast %62 : vector<128x128xf32> to vector<2x8x8x128xf32>
    %c0_87 = arith.constant 0 : index
    %c0_88 = arith.constant 0 : index
    %c0_89 = arith.constant 0 : index
    %c0_90 = arith.constant 0 : index
    %64 = vector.load %arg3[%c0_87, %c0_88, %c0_89, %c0_90] : memref<2x8x8x128xf32, #tpu.memory_space<vmem>>, vector<2x8x8x128xf32>
    tpu.vector_store %arg3[%c0_87, %c0_88, %c0_89, %c0_90], %63 {strides = array<i32>} : memref<2x8x8x128xf32, #tpu.memory_space<vmem>>, vector<2x8x8x128xf32>,
    %cst_91 = arith.constant dense<0.000000e+00> : vector<128xf32>
    %65 = vector.multi_reduction <add>, %62, %cst_91 [0] : vector<128x128xf32> to vector<128xf32>
    %66 = vector.shape_cast %65 : vector<128xf32> to vector<1x128xf32>
    %67 = arith.mulf %62, %62 : vector<128x128xf32>
    %cst_92 = arith.constant dense<0.000000e+00> : vector<128xf32>
    %68 = vector.multi_reduction <add>, %67, %cst_92 [0] : vector<128x128xf32> to vector<128xf32>
    %69 = vector.shape_cast %68 : vector<128xf32> to vector<1x128xf32>
    %70 = tpu.iota {dimensions = array<i32: 0>} : vector<8x128xi32>
    %c0_i32 = arith.constant 0 : i32
    %71 = vector.broadcast %c0_i32 : i32 to vector<8x128xi32>
    %72 = arith.cmpi eq, %70, %71 : vector<8x128xi32>
    %c1_i32 = arith.constant 1 : i32
    %73 = vector.broadcast %c1_i32 : i32 to vector<8x128xi32>
    %74 = arith.cmpi eq, %70, %73 : vector<8x128xi32>
    %cst_93 = arith.constant 0.000000e+00 : f32
    %75 = vector.shape_cast %69 : vector<1x128xf32> to vector<1x128xf32>
    %76 = vector.broadcast %75 : vector<1x128xf32> to vector<8x128xf32>
    %77 = vector.broadcast %cst_93 : f32 to vector<8x128xf32>
    %78 = arith.select %74, %76, %77 : vector<8x128xi1>, vector<8x128xf32>
    %79 = vector.shape_cast %66 : vector<1x128xf32> to vector<1x128xf32>
    %80 = vector.broadcast %79 : vector<1x128xf32> to vector<8x128xf32>
    %81 = arith.select %72, %80, %78 : vector<8x128xi1>, vector<8x128xf32>
    %c0_94 = arith.constant 0 : index
    %c0_95 = arith.constant 0 : index
    %c0_96 = arith.constant 0 : index
    %82 = vector.load %arg4[%c0_94, %c0_95, %c0_96] : memref<1x8x128xf32, #tpu.memory_space<vmem>>, vector<1x8x128xf32>
    %83 = vector.shape_cast %82 : vector<1x8x128xf32> to vector<8x128xf32>
    %84 = vector.shape_cast %81 : vector<8x128xf32> to vector<1x8x128xf32>
    tpu.vector_store %arg4[%c0_94, %c0_95, %c0_96], %84 {strides = array<i32>} : memref<1x8x128xf32, #tpu.memory_space<vmem>>, vector<1x8x128xf32>,
    return
  }
  func.func @transform_0(%arg0: i32) -> (i32, i32, i32, i32) {
    %c0_i32 = arith.constant 0 : i32
    %c0_i32_0 = arith.constant 0 : i32
    %c0_i32_1 = arith.constant 0 : i32
    %c0_i32_2 = arith.constant 0 : i32
    return %arg0, %c0_i32, %c0_i32_0, %c0_i32_1 : i32, i32, i32, i32
  }
  func.func @transform_1(%arg0: i32) -> (i32, i32, i32) {
    %c0_i32 = arith.constant 0 : i32
    %c0_i32_0 = arith.constant 0 : i32
    %c0_i32_1 = arith.constant 0 : i32
    %c0_i32_2 = arith.constant 0 : i32
    return %c0_i32, %c0_i32_0, %c0_i32_1 : i32, i32, i32
  }
  func.func @transform_2(%arg0: i32) -> (i32, i32, i32, i32) {
    %c0_i32 = arith.constant 0 : i32
    %c0_i32_0 = arith.constant 0 : i32
    %c0_i32_1 = arith.constant 0 : i32
    %c0_i32_2 = arith.constant 0 : i32
    return %arg0, %c0_i32, %c0_i32_0, %c0_i32_1 : i32, i32, i32, i32
  }
  func.func @transform_3(%arg0: i32) -> (i32, i32, i32) {
    %c0_i32 = arith.constant 0 : i32
    %c0_i32_0 = arith.constant 0 : i32
    %c0_i32_1 = arith.constant 0 : i32
    return %arg0, %c0_i32, %c0_i32_0 : i32, i32, i32
  }
}

module attributes {stable_mosaic.version = 11 : i64} {
  func.func @bn_add_relu_kernel(%arg0: i32, %arg1: memref<8x8x8x128xf32, #tpu.memory_space<vmem>>, %arg2: memref<1x128xf32, #tpu.memory_space<vmem>>, %arg3: memref<1x128xf32, #tpu.memory_space<vmem>>, %arg4: memref<8x8x8x16xf32, #tpu.memory_space<vmem>>, %arg5: memref<8x8x8x16xf32, #tpu.memory_space<vmem>>) attributes {dimension_semantics = [#tpu.dimension_semantics<parallel>], iteration_bounds = array<i64: 1>, scalar_prefetch = 0 : i64, scratch_operands = 0 : i64, tpu.core_type = #tpu.core_type<tc>, window_params = [{transform_indices = @transform_0, window_bounds = array<i64: 8, 8, 8, 128>}, {pipeline_mode = #tpu.pipeline_mode<synchronous>, transform_indices = @transform_1, window_bounds = array<i64: 1, 128>}, {pipeline_mode = #tpu.pipeline_mode<synchronous>, transform_indices = @transform_2, window_bounds = array<i64: 1, 128>}, {transform_indices = @transform_3, window_bounds = array<i64: 8, 8, 8, 16>}, {transform_indices = @transform_4, window_bounds = array<i64: 8, 8, 8, 16>}]} {
    %c0 = arith.constant 0 : index
    %c0_0 = arith.constant 0 : index
    %c0_1 = arith.constant 0 : index
    %c0_2 = arith.constant 0 : index
    %0 = vector.load %arg1[%c0, %c0_0, %c0_1, %c0_2] : memref<8x8x8x128xf32, #tpu.memory_space<vmem>>, vector<8x8x8x128xf32>
    %c0_3 = arith.constant 0 : index
    %c0_4 = arith.constant 0 : index
    %1 = vector.load %arg2[%c0_3, %c0_4] : memref<1x128xf32, #tpu.memory_space<vmem>>, vector<1x128xf32>
    %c0_5 = arith.constant 0 : index
    %c0_6 = arith.constant 0 : index
    %2 = vector.load %arg3[%c0_5, %c0_6] : memref<1x128xf32, #tpu.memory_space<vmem>>, vector<1x128xf32>
    %3 = vector.extract_strided_slice %0 {offsets = [0, 0, 0, 0], sizes = [8, 8, 8, 16], strides = [1, 1, 1, 1]} : vector<8x8x8x128xf32> to vector<8x8x8x16xf32>
    %4 = vector.extract_strided_slice %1 {offsets = [0, 0], sizes = [1, 16], strides = [1, 1]} : vector<1x128xf32> to vector<1x16xf32>
    %5 = vector.shape_cast %4 : vector<1x16xf32> to vector<1x1x1x16xf32>
    %6 = vector.broadcast %5 : vector<1x1x1x16xf32> to vector<8x8x8x16xf32>
    %7 = arith.mulf %3, %6 : vector<8x8x8x16xf32>
    %8 = vector.extract_strided_slice %2 {offsets = [0, 0], sizes = [1, 16], strides = [1, 1]} : vector<1x128xf32> to vector<1x16xf32>
    %9 = vector.shape_cast %8 : vector<1x16xf32> to vector<1x1x1x16xf32>
    %10 = vector.broadcast %9 : vector<1x1x1x16xf32> to vector<8x8x8x16xf32>
    %11 = arith.addf %7, %10 : vector<8x8x8x16xf32>
    %c0_7 = arith.constant 0 : index
    %c0_8 = arith.constant 0 : index
    %c0_9 = arith.constant 0 : index
    %c0_10 = arith.constant 0 : index
    %12 = vector.load %arg4[%c0_7, %c0_8, %c0_9, %c0_10] : memref<8x8x8x16xf32, #tpu.memory_space<vmem>>, vector<8x8x8x16xf32>
    %13 = arith.addf %11, %12 : vector<8x8x8x16xf32>
    %cst = arith.constant 0.000000e+00 : f32
    %14 = vector.broadcast %cst : f32 to vector<8x8x8x16xf32>
    %15 = arith.maximumf %13, %14 : vector<8x8x8x16xf32>
    %c0_11 = arith.constant 0 : index
    %c0_12 = arith.constant 0 : index
    %c0_13 = arith.constant 0 : index
    %c0_14 = arith.constant 0 : index
    %16 = vector.load %arg5[%c0_11, %c0_12, %c0_13, %c0_14] : memref<8x8x8x16xf32, #tpu.memory_space<vmem>>, vector<8x8x8x16xf32>
    tpu.vector_store %arg5[%c0_11, %c0_12, %c0_13, %c0_14], %15 {strides = array<i32>} : memref<8x8x8x16xf32, #tpu.memory_space<vmem>>, vector<8x8x8x16xf32>,
    return
  }
  func.func @transform_0(%arg0: i32) -> (i32, i32, i32, i32) {
    %c0_i32 = arith.constant 0 : i32
    %c0_i32_0 = arith.constant 0 : i32
    %c0_i32_1 = arith.constant 0 : i32
    %c0_i32_2 = arith.constant 0 : i32
    return %arg0, %c0_i32, %c0_i32_0, %c0_i32_1 : i32, i32, i32, i32
  }
  func.func @transform_1(%arg0: i32) -> (i32, i32) {
    %c0_i32 = arith.constant 0 : i32
    %c0_i32_0 = arith.constant 0 : i32
    %c0_i32_1 = arith.constant 0 : i32
    return %c0_i32, %c0_i32_0 : i32, i32
  }
  func.func @transform_2(%arg0: i32) -> (i32, i32) {
    %c0_i32 = arith.constant 0 : i32
    %c0_i32_0 = arith.constant 0 : i32
    %c0_i32_1 = arith.constant 0 : i32
    return %c0_i32, %c0_i32_0 : i32, i32
  }
  func.func @transform_3(%arg0: i32) -> (i32, i32, i32, i32) {
    %c0_i32 = arith.constant 0 : i32
    %c0_i32_0 = arith.constant 0 : i32
    %c0_i32_1 = arith.constant 0 : i32
    %c0_i32_2 = arith.constant 0 : i32
    return %arg0, %c0_i32, %c0_i32_0, %c0_i32_1 : i32, i32, i32, i32
  }
  func.func @transform_4(%arg0: i32) -> (i32, i32, i32, i32) {
    %c0_i32 = arith.constant 0 : i32
    %c0_i32_0 = arith.constant 0 : i32
    %c0_i32_1 = arith.constant 0 : i32
    %c0_i32_2 = arith.constant 0 : i32
    return %arg0, %c0_i32, %c0_i32_0, %c0_i32_1 : i32, i32, i32, i32
  }
}

module attributes {stable_mosaic.version = 11 : i64} {
  func.func @bn_relu_conv_stats_kernel(%arg0: i32, %arg1: memref<2x8x8x128xf32, #tpu.memory_space<vmem>>, %arg2: memref<1x128xf32, #tpu.memory_space<vmem>>, %arg3: memref<1x128xf32, #tpu.memory_space<vmem>>, %arg4: memref<9x16x128xf32, #tpu.memory_space<vmem>>, %arg5: memref<2x8x8x128xf32, #tpu.memory_space<vmem>>, %arg6: memref<1x8x128xf32, #tpu.memory_space<vmem>>, %arg7: memref<2x10x24x16xf32, #tpu.memory_space<vmem>>) attributes {dimension_semantics = [#tpu.dimension_semantics<parallel>], iteration_bounds = array<i64: 4>, scalar_prefetch = 0 : i64, scratch_operands = 1 : i64, tpu.core_type = #tpu.core_type<tc>, window_params = [{transform_indices = @transform_0, window_bounds = array<i64: 2, 8, 8, 128>}, {pipeline_mode = #tpu.pipeline_mode<synchronous>, transform_indices = @transform_1, window_bounds = array<i64: 1, 128>}, {pipeline_mode = #tpu.pipeline_mode<synchronous>, transform_indices = @transform_2, window_bounds = array<i64: 1, 128>}, {pipeline_mode = #tpu.pipeline_mode<synchronous>, transform_indices = @transform_3, window_bounds = array<i64: 9, 16, 128>}, {transform_indices = @transform_4, window_bounds = array<i64: 2, 8, 8, 128>}, {transform_indices = @transform_5, window_bounds = array<i64: 1, 8, 128>}]} {
    %c0 = arith.constant 0 : index
    %c0_0 = arith.constant 0 : index
    %c0_1 = arith.constant 0 : index
    %c0_2 = arith.constant 0 : index
    %0 = vector.load %arg1[%c0, %c0_0, %c0_1, %c0_2] : memref<2x8x8x128xf32, #tpu.memory_space<vmem>>, vector<2x8x8x128xf32>
    %c0_3 = arith.constant 0 : index
    %c0_4 = arith.constant 0 : index
    %1 = vector.load %arg2[%c0_3, %c0_4] : memref<1x128xf32, #tpu.memory_space<vmem>>, vector<1x128xf32>
    %c0_5 = arith.constant 0 : index
    %c0_6 = arith.constant 0 : index
    %2 = vector.load %arg3[%c0_5, %c0_6] : memref<1x128xf32, #tpu.memory_space<vmem>>, vector<1x128xf32>
    %3 = vector.extract_strided_slice %0 {offsets = [0, 0, 0, 0], sizes = [2, 8, 8, 16], strides = [1, 1, 1, 1]} : vector<2x8x8x128xf32> to vector<2x8x8x16xf32>
    %4 = vector.extract_strided_slice %1 {offsets = [0, 0], sizes = [1, 16], strides = [1, 1]} : vector<1x128xf32> to vector<1x16xf32>
    %5 = vector.shape_cast %4 : vector<1x16xf32> to vector<1x1x1x16xf32>
    %6 = vector.broadcast %5 : vector<1x1x1x16xf32> to vector<2x8x8x16xf32>
    %7 = arith.mulf %3, %6 : vector<2x8x8x16xf32>
    %8 = vector.extract_strided_slice %2 {offsets = [0, 0], sizes = [1, 16], strides = [1, 1]} : vector<1x128xf32> to vector<1x16xf32>
    %9 = vector.shape_cast %8 : vector<1x16xf32> to vector<1x1x1x16xf32>
    %10 = vector.broadcast %9 : vector<1x1x1x16xf32> to vector<2x8x8x16xf32>
    %11 = arith.addf %7, %10 : vector<2x8x8x16xf32>
    %cst = arith.constant 0.000000e+00 : f32
    %12 = vector.broadcast %cst : f32 to vector<2x8x8x16xf32>
    %13 = arith.maximumf %11, %12 : vector<2x8x8x16xf32>
    %cst_7 = arith.constant 0.000000e+00 : f32
    %14 = vector.broadcast %cst_7 : f32 to vector<2x1x10x16xf32>
    %c0_8 = arith.constant 0 : index
    %c0_9 = arith.constant 0 : index
    %c7 = arith.constant 7 : index
    %c0_10 = arith.constant 0 : index
    %15 = vector.load %arg7[%c0_8, %c0_9, %c7, %c0_10] : memref<2x10x24x16xf32, #tpu.memory_space<vmem>>, vector<2x1x10x16xf32>
    tpu.vector_store %arg7[%c0_8, %c0_9, %c7, %c0_10], %14 {strides = array<i32>} : memref<2x10x24x16xf32, #tpu.memory_space<vmem>>, vector<2x1x10x16xf32>,
    %c0_11 = arith.constant 0 : index
    %c9 = arith.constant 9 : index
    %c7_12 = arith.constant 7 : index
    %c0_13 = arith.constant 0 : index
    %16 = vector.load %arg7[%c0_11, %c9, %c7_12, %c0_13] : memref<2x10x24x16xf32, #tpu.memory_space<vmem>>, vector<2x1x10x16xf32>
    tpu.vector_store %arg7[%c0_11, %c9, %c7_12, %c0_13], %14 {strides = array<i32>} : memref<2x10x24x16xf32, #tpu.memory_space<vmem>>, vector<2x1x10x16xf32>,
    %cst_14 = arith.constant 0.000000e+00 : f32
    %17 = vector.broadcast %cst_14 : f32 to vector<2x10x1x16xf32>
    %c0_15 = arith.constant 0 : index
    %c0_16 = arith.constant 0 : index
    %c7_17 = arith.constant 7 : index
    %c0_18 = arith.constant 0 : index
    %18 = vector.load %arg7[%c0_15, %c0_16, %c7_17, %c0_18] : memref<2x10x24x16xf32, #tpu.memory_space<vmem>>, vector<2x10x1x16xf32>
    tpu.vector_store %arg7[%c0_15, %c0_16, %c7_17, %c0_18], %17 {strides = array<i32>} : memref<2x10x24x16xf32, #tpu.memory_space<vmem>>, vector<2x10x1x16xf32>,
    %c0_19 = arith.constant 0 : index
    %c0_20 = arith.constant 0 : index
    %c16 = arith.constant 16 : index
    %c0_21 = arith.constant 0 : index
    %19 = vector.load %arg7[%c0_19, %c0_20, %c16, %c0_21] : memref<2x10x24x16xf32, #tpu.memory_space<vmem>>, vector<2x10x1x16xf32>
    tpu.vector_store %arg7[%c0_19, %c0_20, %c16, %c0_21], %17 {strides = array<i32>} : memref<2x10x24x16xf32, #tpu.memory_space<vmem>>, vector<2x10x1x16xf32>,
    %c0_22 = arith.constant 0 : index
    %c1 = arith.constant 1 : index
    %c8 = arith.constant 8 : index
    %c0_23 = arith.constant 0 : index
    %20 = vector.load %arg7[%c0_22, %c1, %c8, %c0_23] : memref<2x10x24x16xf32, #tpu.memory_space<vmem>>, vector<2x8x8x16xf32>
    tpu.vector_store %arg7[%c0_22, %c1, %c8, %c0_23], %13 {strides = array<i32>} : memref<2x10x24x16xf32, #tpu.memory_space<vmem>>, vector<2x8x8x16xf32>,
    %cst_24 = arith.constant 0.000000e+00 : f32
    %21 = vector.broadcast %cst_24 : f32 to vector<128x128xf32>
    %c0_25 = arith.constant 0 : index
    %c0_26 = arith.constant 0 : index
    %c7_27 = arith.constant 7 : index
    %c0_28 = arith.constant 0 : index
    %22 = vector.load %arg7[%c0_25, %c0_26, %c7_27, %c0_28] : memref<2x10x24x16xf32, #tpu.memory_space<vmem>>, vector<2x8x8x16xf32>
    %23 = vector.shape_cast %22 : vector<2x8x8x16xf32> to vector<128x16xf32>
    %c0_29 = arith.constant 0 : index
    %c0_30 = arith.constant 0 : index
    %c0_31 = arith.constant 0 : index
    %24 = vector.load %arg4[%c0_29, %c0_30, %c0_31] : memref<9x16x128xf32, #tpu.memory_space<vmem>>, vector<1x16x128xf32>
    %25 = vector.shape_cast %24 : vector<1x16x128xf32> to vector<16x128xf32>
    %cst_32 = arith.constant dense<0.000000e+00> : vector<128x128xf32>
    %26 = tpu.matmul %23, %25, %cst_32 {dimension_numbers = #tpu.dot_dimension_numbers<[1], [0], [0], [1], [0, 0, 1, 1], [], []>} : vector<128x16xf32>, vector<16x128xf32>, vector<128x128xf32> -> vector<128x128xf32>
    %27 = arith.addf %21, %26 : vector<128x128xf32>
    %c0_33 = arith.constant 0 : index
    %c0_34 = arith.constant 0 : index
    %c8_35 = arith.constant 8 : index
    %c0_36 = arith.constant 0 : index
    %28 = vector.load %arg7[%c0_33, %c0_34, %c8_35, %c0_36] : memref<2x10x24x16xf32, #tpu.memory_space<vmem>>, vector<2x8x8x16xf32>
    %29 = vector.shape_cast %28 : vector<2x8x8x16xf32> to vector<128x16xf32>
    %c1_37 = arith.constant 1 : index
    %c0_38 = arith.constant 0 : index
    %c0_39 = arith.constant 0 : index
    %30 = vector.load %arg4[%c1_37, %c0_38, %c0_39] : memref<9x16x128xf32, #tpu.memory_space<vmem>>, vector<1x16x128xf32>
    %31 = vector.shape_cast %30 : vector<1x16x128xf32> to vector<16x128xf32>
    %cst_40 = arith.constant dense<0.000000e+00> : vector<128x128xf32>
    %32 = tpu.matmul %29, %31, %cst_40 {dimension_numbers = #tpu.dot_dimension_numbers<[1], [0], [0], [1], [0, 0, 1, 1], [], []>} : vector<128x16xf32>, vector<16x128xf32>, vector<128x128xf32> -> vector<128x128xf32>
    %33 = arith.addf %27, %32 : vector<128x128xf32>
    %c0_41 = arith.constant 0 : index
    %c0_42 = arith.constant 0 : index
    %c9_43 = arith.constant 9 : index
    %c0_44 = arith.constant 0 : index
    %34 = vector.load %arg7[%c0_41, %c0_42, %c9_43, %c0_44] : memref<2x10x24x16xf32, #tpu.memory_space<vmem>>, vector<2x8x8x16xf32>
    %35 = vector.shape_cast %34 : vector<2x8x8x16xf32> to vector<128x16xf32>
    %c2 = arith.constant 2 : index
    %c0_45 = arith.constant 0 : index
    %c0_46 = arith.constant 0 : index
    %36 = vector.load %arg4[%c2, %c0_45, %c0_46] : memref<9x16x128xf32, #tpu.memory_space<vmem>>, vector<1x16x128xf32>
    %37 = vector.shape_cast %36 : vector<1x16x128xf32> to vector<16x128xf32>
    %cst_47 = arith.constant dense<0.000000e+00> : vector<128x128xf32>
    %38 = tpu.matmul %35, %37, %cst_47 {dimension_numbers = #tpu.dot_dimension_numbers<[1], [0], [0], [1], [0, 0, 1, 1], [], []>} : vector<128x16xf32>, vector<16x128xf32>, vector<128x128xf32> -> vector<128x128xf32>
    %39 = arith.addf %33, %38 : vector<128x128xf32>
    %c0_48 = arith.constant 0 : index
    %c1_49 = arith.constant 1 : index
    %c7_50 = arith.constant 7 : index
    %c0_51 = arith.constant 0 : index
    %40 = vector.load %arg7[%c0_48, %c1_49, %c7_50, %c0_51] : memref<2x10x24x16xf32, #tpu.memory_space<vmem>>, vector<2x8x8x16xf32>
    %41 = vector.shape_cast %40 : vector<2x8x8x16xf32> to vector<128x16xf32>
    %c3 = arith.constant 3 : index
    %c0_52 = arith.constant 0 : index
    %c0_53 = arith.constant 0 : index
    %42 = vector.load %arg4[%c3, %c0_52, %c0_53] : memref<9x16x128xf32, #tpu.memory_space<vmem>>, vector<1x16x128xf32>
    %43 = vector.shape_cast %42 : vector<1x16x128xf32> to vector<16x128xf32>
    %cst_54 = arith.constant dense<0.000000e+00> : vector<128x128xf32>
    %44 = tpu.matmul %41, %43, %cst_54 {dimension_numbers = #tpu.dot_dimension_numbers<[1], [0], [0], [1], [0, 0, 1, 1], [], []>} : vector<128x16xf32>, vector<16x128xf32>, vector<128x128xf32> -> vector<128x128xf32>
    %45 = arith.addf %39, %44 : vector<128x128xf32>
    %c0_55 = arith.constant 0 : index
    %c1_56 = arith.constant 1 : index
    %c8_57 = arith.constant 8 : index
    %c0_58 = arith.constant 0 : index
    %46 = vector.load %arg7[%c0_55, %c1_56, %c8_57, %c0_58] : memref<2x10x24x16xf32, #tpu.memory_space<vmem>>, vector<2x8x8x16xf32>
    %47 = vector.shape_cast %46 : vector<2x8x8x16xf32> to vector<128x16xf32>
    %c4 = arith.constant 4 : index
    %c0_59 = arith.constant 0 : index
    %c0_60 = arith.constant 0 : index
    %48 = vector.load %arg4[%c4, %c0_59, %c0_60] : memref<9x16x128xf32, #tpu.memory_space<vmem>>, vector<1x16x128xf32>
    %49 = vector.shape_cast %48 : vector<1x16x128xf32> to vector<16x128xf32>
    %cst_61 = arith.constant dense<0.000000e+00> : vector<128x128xf32>
    %50 = tpu.matmul %47, %49, %cst_61 {dimension_numbers = #tpu.dot_dimension_numbers<[1], [0], [0], [1], [0, 0, 1, 1], [], []>} : vector<128x16xf32>, vector<16x128xf32>, vector<128x128xf32> -> vector<128x128xf32>
    %51 = arith.addf %45, %50 : vector<128x128xf32>
    %c0_62 = arith.constant 0 : index
    %c1_63 = arith.constant 1 : index
    %c9_64 = arith.constant 9 : index
    %c0_65 = arith.constant 0 : index
    %52 = vector.load %arg7[%c0_62, %c1_63, %c9_64, %c0_65] : memref<2x10x24x16xf32, #tpu.memory_space<vmem>>, vector<2x8x8x16xf32>
    %53 = vector.shape_cast %52 : vector<2x8x8x16xf32> to vector<128x16xf32>
    %c5 = arith.constant 5 : index
    %c0_66 = arith.constant 0 : index
    %c0_67 = arith.constant 0 : index
    %54 = vector.load %arg4[%c5, %c0_66, %c0_67] : memref<9x16x128xf32, #tpu.memory_space<vmem>>, vector<1x16x128xf32>
    %55 = vector.shape_cast %54 : vector<1x16x128xf32> to vector<16x128xf32>
    %cst_68 = arith.constant dense<0.000000e+00> : vector<128x128xf32>
    %56 = tpu.matmul %53, %55, %cst_68 {dimension_numbers = #tpu.dot_dimension_numbers<[1], [0], [0], [1], [0, 0, 1, 1], [], []>} : vector<128x16xf32>, vector<16x128xf32>, vector<128x128xf32> -> vector<128x128xf32>
    %57 = arith.addf %51, %56 : vector<128x128xf32>
    %c0_69 = arith.constant 0 : index
    %c2_70 = arith.constant 2 : index
    %c7_71 = arith.constant 7 : index
    %c0_72 = arith.constant 0 : index
    %58 = vector.load %arg7[%c0_69, %c2_70, %c7_71, %c0_72] : memref<2x10x24x16xf32, #tpu.memory_space<vmem>>, vector<2x8x8x16xf32>
    %59 = vector.shape_cast %58 : vector<2x8x8x16xf32> to vector<128x16xf32>
    %c6 = arith.constant 6 : index
    %c0_73 = arith.constant 0 : index
    %c0_74 = arith.constant 0 : index
    %60 = vector.load %arg4[%c6, %c0_73, %c0_74] : memref<9x16x128xf32, #tpu.memory_space<vmem>>, vector<1x16x128xf32>
    %61 = vector.shape_cast %60 : vector<1x16x128xf32> to vector<16x128xf32>
    %cst_75 = arith.constant dense<0.000000e+00> : vector<128x128xf32>
    %62 = tpu.matmul %59, %61, %cst_75 {dimension_numbers = #tpu.dot_dimension_numbers<[1], [0], [0], [1], [0, 0, 1, 1], [], []>} : vector<128x16xf32>, vector<16x128xf32>, vector<128x128xf32> -> vector<128x128xf32>
    %63 = arith.addf %57, %62 : vector<128x128xf32>
    %c0_76 = arith.constant 0 : index
    %c2_77 = arith.constant 2 : index
    %c8_78 = arith.constant 8 : index
    %c0_79 = arith.constant 0 : index
    %64 = vector.load %arg7[%c0_76, %c2_77, %c8_78, %c0_79] : memref<2x10x24x16xf32, #tpu.memory_space<vmem>>, vector<2x8x8x16xf32>
    %65 = vector.shape_cast %64 : vector<2x8x8x16xf32> to vector<128x16xf32>
    %c7_80 = arith.constant 7 : index
    %c0_81 = arith.constant 0 : index
    %c0_82 = arith.constant 0 : index
    %66 = vector.load %arg4[%c7_80, %c0_81, %c0_82] : memref<9x16x128xf32, #tpu.memory_space<vmem>>, vector<1x16x128xf32>
    %67 = vector.shape_cast %66 : vector<1x16x128xf32> to vector<16x128xf32>
    %cst_83 = arith.constant dense<0.000000e+00> : vector<128x128xf32>
    %68 = tpu.matmul %65, %67, %cst_83 {dimension_numbers = #tpu.dot_dimension_numbers<[1], [0], [0], [1], [0, 0, 1, 1], [], []>} : vector<128x16xf32>, vector<16x128xf32>, vector<128x128xf32> -> vector<128x128xf32>
    %69 = arith.addf %63, %68 : vector<128x128xf32>
    %c0_84 = arith.constant 0 : index
    %c2_85 = arith.constant 2 : index
    %c9_86 = arith.constant 9 : index
    %c0_87 = arith.constant 0 : index
    %70 = vector.load %arg7[%c0_84, %c2_85, %c9_86, %c0_87] : memref<2x10x24x16xf32, #tpu.memory_space<vmem>>, vector<2x8x8x16xf32>
    %71 = vector.shape_cast %70 : vector<2x8x8x16xf32> to vector<128x16xf32>
    %c8_88 = arith.constant 8 : index
    %c0_89 = arith.constant 0 : index
    %c0_90 = arith.constant 0 : index
    %72 = vector.load %arg4[%c8_88, %c0_89, %c0_90] : memref<9x16x128xf32, #tpu.memory_space<vmem>>, vector<1x16x128xf32>
    %73 = vector.shape_cast %72 : vector<1x16x128xf32> to vector<16x128xf32>
    %cst_91 = arith.constant dense<0.000000e+00> : vector<128x128xf32>
    %74 = tpu.matmul %71, %73, %cst_91 {dimension_numbers = #tpu.dot_dimension_numbers<[1], [0], [0], [1], [0, 0, 1, 1], [], []>} : vector<128x16xf32>, vector<16x128xf32>, vector<128x128xf32> -> vector<128x128xf32>
    %75 = arith.addf %69, %74 : vector<128x128xf32>
    %76 = vector.shape_cast %75 : vector<128x128xf32> to vector<2x8x8x128xf32>
    %c0_92 = arith.constant 0 : index
    %c0_93 = arith.constant 0 : index
    %c0_94 = arith.constant 0 : index
    %c0_95 = arith.constant 0 : index
    %77 = vector.load %arg5[%c0_92, %c0_93, %c0_94, %c0_95] : memref<2x8x8x128xf32, #tpu.memory_space<vmem>>, vector<2x8x8x128xf32>
    tpu.vector_store %arg5[%c0_92, %c0_93, %c0_94, %c0_95], %76 {strides = array<i32>} : memref<2x8x8x128xf32, #tpu.memory_space<vmem>>, vector<2x8x8x128xf32>,
    %cst_96 = arith.constant dense<0.000000e+00> : vector<128xf32>
    %78 = vector.multi_reduction <add>, %75, %cst_96 [0] : vector<128x128xf32> to vector<128xf32>
    %79 = vector.shape_cast %78 : vector<128xf32> to vector<1x128xf32>
    %80 = arith.mulf %75, %75 : vector<128x128xf32>
    %cst_97 = arith.constant dense<0.000000e+00> : vector<128xf32>
    %81 = vector.multi_reduction <add>, %80, %cst_97 [0] : vector<128x128xf32> to vector<128xf32>
    %82 = vector.shape_cast %81 : vector<128xf32> to vector<1x128xf32>
    %83 = tpu.iota {dimensions = array<i32: 0>} : vector<8x128xi32>
    %c0_i32 = arith.constant 0 : i32
    %84 = vector.broadcast %c0_i32 : i32 to vector<8x128xi32>
    %85 = arith.cmpi eq, %83, %84 : vector<8x128xi32>
    %c1_i32 = arith.constant 1 : i32
    %86 = vector.broadcast %c1_i32 : i32 to vector<8x128xi32>
    %87 = arith.cmpi eq, %83, %86 : vector<8x128xi32>
    %cst_98 = arith.constant 0.000000e+00 : f32
    %88 = vector.shape_cast %82 : vector<1x128xf32> to vector<1x128xf32>
    %89 = vector.broadcast %88 : vector<1x128xf32> to vector<8x128xf32>
    %90 = vector.broadcast %cst_98 : f32 to vector<8x128xf32>
    %91 = arith.select %87, %89, %90 : vector<8x128xi1>, vector<8x128xf32>
    %92 = vector.shape_cast %79 : vector<1x128xf32> to vector<1x128xf32>
    %93 = vector.broadcast %92 : vector<1x128xf32> to vector<8x128xf32>
    %94 = arith.select %85, %93, %91 : vector<8x128xi1>, vector<8x128xf32>
    %c0_99 = arith.constant 0 : index
    %c0_100 = arith.constant 0 : index
    %c0_101 = arith.constant 0 : index
    %95 = vector.load %arg6[%c0_99, %c0_100, %c0_101] : memref<1x8x128xf32, #tpu.memory_space<vmem>>, vector<1x8x128xf32>
    %96 = vector.shape_cast %95 : vector<1x8x128xf32> to vector<8x128xf32>
    %97 = vector.shape_cast %94 : vector<8x128xf32> to vector<1x8x128xf32>
    tpu.vector_store %arg6[%c0_99, %c0_100, %c0_101], %97 {strides = array<i32>} : memref<1x8x128xf32, #tpu.memory_space<vmem>>, vector<1x8x128xf32>,
    return
  }
  func.func @transform_0(%arg0: i32) -> (i32, i32, i32, i32) {
    %c0_i32 = arith.constant 0 : i32
    %c0_i32_0 = arith.constant 0 : i32
    %c0_i32_1 = arith.constant 0 : i32
    %c0_i32_2 = arith.constant 0 : i32
    return %arg0, %c0_i32, %c0_i32_0, %c0_i32_1 : i32, i32, i32, i32
  }
  func.func @transform_1(%arg0: i32) -> (i32, i32) {
    %c0_i32 = arith.constant 0 : i32
    %c0_i32_0 = arith.constant 0 : i32
    %c0_i32_1 = arith.constant 0 : i32
    return %c0_i32, %c0_i32_0 : i32, i32
  }
  func.func @transform_2(%arg0: i32) -> (i32, i32) {
    %c0_i32 = arith.constant 0 : i32
    %c0_i32_0 = arith.constant 0 : i32
    %c0_i32_1 = arith.constant 0 : i32
    return %c0_i32, %c0_i32_0 : i32, i32
  }
  func.func @transform_3(%arg0: i32) -> (i32, i32, i32) {
    %c0_i32 = arith.constant 0 : i32
    %c0_i32_0 = arith.constant 0 : i32
    %c0_i32_1 = arith.constant 0 : i32
    %c0_i32_2 = arith.constant 0 : i32
    return %c0_i32, %c0_i32_0, %c0_i32_1 : i32, i32, i32
  }
  func.func @transform_4(%arg0: i32) -> (i32, i32, i32, i32) {
    %c0_i32 = arith.constant 0 : i32
    %c0_i32_0 = arith.constant 0 : i32
    %c0_i32_1 = arith.constant 0 : i32
    %c0_i32_2 = arith.constant 0 : i32
    return %arg0, %c0_i32, %c0_i32_0, %c0_i32_1 : i32, i32, i32, i32
  }
  func.func @transform_5(%arg0: i32) -> (i32, i32, i32) {
    %c0_i32 = arith.constant 0 : i32
    %c0_i32_0 = arith.constant 0 : i32
    %c0_i32_1 = arith.constant 0 : i32
    return %arg0, %c0_i32, %c0_i32_0 : i32, i32, i32
  }
}

</mosaic_0001>

<llo_original>
// kernel: basic_block_forward.5
$region0: #{basic_block_forward.5}
  #allocation0 [shape = 'u32[]', space=smem, size = 0x4, offset = 0x4, fixed_abs, tag = 'smem constant byte address 0x4 - core index']
  #allocation1 [shape = 'u32[144,128]{1,0:T(1,128)}', space=vmem, size = 0x12000, scoped, tag = 'internal scratch']
  %s0 = inlined_call_operand.vmem [shape: f32[8,8,8,128], index: 0, kind: input, shape index: {}]
  %s1 = inlined_call_operand.vmem [shape: f32[1,128], index: 1, kind: input, shape index: {}]
  %s2 = inlined_call_operand.vmem [shape: f32[1,128], index: 2, kind: input, shape index: {}]
  %s3 = inlined_call_operand.vmem [shape: f32[8,8,8,16], index: 3, kind: input, shape index: {}]
  %s4 = inlined_call_operand.hbm [shape: f32[8,8,8,16], index: 4, kind: output, shape index: {}]
  %s5 = sld [smem:[#allocation0]]
  $region26: #{basic_block_forward.5} parent=0
    _
  %s7 = ssub.s32 1, %s5
  %s8 = scalar_select 0, %s7, %s5
  $region1: #{basic_block_forward.5} parent=0
    #allocation2 [shape = 'u8[262144]{0}', space=vmem, size = 0x40000, scoped, tag = 'output window, operand 0, single buffered']
    #allocation3 [shape = 's32[1]{0}', space=sflag, size = 0x4, scoped, tag = 'scoped memory for basic_block_forward.5']
    %9 = vsyncpa [#allocation3], 0
    // Predicated region
    $region2: #{basic_block_forward.5} parent=1 // pred_check
      _
    $region3: #{basic_block_forward.5} parent=1 // pred_check_branch
      %11 = sbr.rel (0) target = $region5
    $region4: #{basic_block_forward.5} parent=1 // pred_region
      _
    $region5: #{basic_block_forward.5} parent=1 // pred_fallthru
      _
    // Predicated region
    $region6: #{basic_block_forward.5} parent=1 // pred_check
      _
    $region7: #{basic_block_forward.5} parent=1 // pred_check_branch
      %13 = sbr.rel (0) target = $region9
    $region8: #{basic_block_forward.5} parent=1 // pred_region
      _
    $region9: #{basic_block_forward.5} parent=1 // pred_fallthru
      _
    // Predicated region
    $region10: #{basic_block_forward.5} parent=1 // pred_check
      _
    $region11: #{basic_block_forward.5} parent=1 // pred_check_branch
      %15 = sbr.rel (0) target = $region13
    $region12: #{basic_block_forward.5} parent=1 // pred_region
      _
    $region13: #{basic_block_forward.5} parent=1 // pred_fallthru
      _
    // Predicated region
    $region14: #{basic_block_forward.5} parent=1 // pred_check
      _
    $region15: #{basic_block_forward.5} parent=1 // pred_check_branch
      %17 = sbr.rel (0) target = $region17
    $region16: #{basic_block_forward.5} parent=1 // pred_region
      _
    $region17: #{basic_block_forward.5} parent=1 // pred_fallthru
      _
    %v18 = vld [vmem:[%s0] sm:$0xff]
    %v19 = vld [vmem:[%s0 + $0x8] sm:$0xff]
    %v20 = vld [vmem:[%s0 + $0x10] sm:$0xff]
    %v21 = vld [vmem:[%s0 + $0x18] sm:$0xff]
    %v22 = vld [vmem:[%s0 + $0x20] sm:$0xff]
    %v23 = vld [vmem:[%s0 + $0x28] sm:$0xff]
    %v24 = vld [vmem:[%s0 + $0x30] sm:$0xff]
    %v25 = vld [vmem:[%s0 + $0x38] sm:$0xff]
    %v26 = vld [vmem:[%s0 + $0x40] sm:$0xff]
    %v27 = vld [vmem:[%s0 + $0x48] sm:$0xff]
    %v28 = vld [vmem:[%s0 + $0x50] sm:$0xff]
    %v29 = vld [vmem:[%s0 + $0x58] sm:$0xff]
    %v30 = vld [vmem:[%s0 + $0x60] sm:$0xff]
    %v31 = vld [vmem:[%s0 + $0x68] sm:$0xff]
    %v32 = vld [vmem:[%s0 + $0x70] sm:$0xff]
    %v33 = vld [vmem:[%s0 + $0x78] sm:$0xff]
    %v34 = vld [vmem:[%s0 + $0x80] sm:$0xff]
    %v35 = vld [vmem:[%s0 + $0x88] sm:$0xff]
    %v36 = vld [vmem:[%s0 + $0x90] sm:$0xff]
    %v37 = vld [vmem:[%s0 + $0x98] sm:$0xff]
    %v38 = vld [vmem:[%s0 + $0xa0] sm:$0xff]
    %v39 = vld [vmem:[%s0 + $0xa8] sm:$0xff]
    %v40 = vld [vmem:[%s0 + $0xb0] sm:$0xff]
    %v41 = vld [vmem:[%s0 + $0xb8] sm:$0xff]
    %v42 = vld [vmem:[%s0 + $0xc0] sm:$0xff]
    %v43 = vld [vmem:[%s0 + $0xc8] sm:$0xff]
    %v44 = vld [vmem:[%s0 + $0xd0] sm:$0xff]
    %v45 = vld [vmem:[%s0 + $0xd8] sm:$0xff]
    %v46 = vld [vmem:[%s0 + $0xe0] sm:$0xff]
    %v47 = vld [vmem:[%s0 + $0xe8] sm:$0xff]
    %v48 = vld [vmem:[%s0 + $0xf0] sm:$0xff]
    %v49 = vld [vmem:[%s0 + $0xf8] sm:$0xff]
    %v50 = vld [vmem:[%s0 + $0x100] sm:$0xff]
    %v51 = vld [vmem:[%s0 + $0x108] sm:$0xff]
    %v52 = vld [vmem:[%s0 + $0x110] sm:$0xff]
    %v53 = vld [vmem:[%s0 + $0x118] sm:$0xff]
    %v54 = vld [vmem:[%s0 + $0x120] sm:$0xff]
    %v55 = vld [vmem:[%s0 + $0x128] sm:$0xff]
    %v56 = vld [vmem:[%s0 + $0x130] sm:$0xff]
    %v57 = vld [vmem:[%s0 + $0x138] sm:$0xff]
    %v58 = vld [vmem:[%s0 + $0x140] sm:$0xff]
    %v59 = vld [vmem:[%s0 + $0x148] sm:$0xff]
    %v60 = vld [vmem:[%s0 + $0x150] sm:$0xff]
    %v61 = vld [vmem:[%s0 + $0x158] sm:$0xff]
    %v62 = vld [vmem:[%s0 + $0x160] sm:$0xff]
    %v63 = vld [vmem:[%s0 + $0x168] sm:$0xff]
    %v64 = vld [vmem:[%s0 + $0x170] sm:$0xff]
    %v65 = vld [vmem:[%s0 + $0x178] sm:$0xff]
    %v66 = vld [vmem:[%s0 + $0x180] sm:$0xff]
    %v67 = vld [vmem:[%s0 + $0x188] sm:$0xff]
    %v68 = vld [vmem:[%s0 + $0x190] sm:$0xff]
    %v69 = vld [vmem:[%s0 + $0x198] sm:$0xff]
    %v70 = vld [vmem:[%s0 + $0x1a0] sm:$0xff]
    %v71 = vld [vmem:[%s0 + $0x1a8] sm:$0xff]
    %v72 = vld [vmem:[%s0 + $0x1b0] sm:$0xff]
    %v73 = vld [vmem:[%s0 + $0x1b8] sm:$0xff]
    %v74 = vld [vmem:[%s0 + $0x1c0] sm:$0xff]
    %v75 = vld [vmem:[%s0 + $0x1c8] sm:$0xff]
    %v76 = vld [vmem:[%s0 + $0x1d0] sm:$0xff]
    %v77 = vld [vmem:[%s0 + $0x1d8] sm:$0xff]
    %v78 = vld [vmem:[%s0 + $0x1e0] sm:$0xff]
    %v79 = vld [vmem:[%s0 + $0x1e8] sm:$0xff]
    %v80 = vld [vmem:[%s0 + $0x1f0] sm:$0xff]
    %v81 = vld [vmem:[%s0 + $0x1f8] sm:$0xff]
    %v82 = vld [vmem:[%s1] sm:$0x1]
    %v83 = vld [vmem:[%s2] sm:$0x1]
    %v85 = vlaneseq
    %v86 = vshrl.u32 %v85, 7
    %v87 = vsub.s32 0, %v86
    %v88 = vrot.slane %v82, %v87
    %v90 = vmul.f32 %v18, %v88
    %v91 = vmul.f32 %v19, %v88
    %v92 = vmul.f32 %v20, %v88
    %v93 = vmul.f32 %v21, %v88
    %v94 = vmul.f32 %v22, %v88
    %v95 = vmul.f32 %v23, %v88
    %v96 = vmul.f32 %v24, %v88
    %v97 = vmul.f32 %v25, %v88
    %v98 = vmul.f32 %v26, %v88
    %v99 = vmul.f32 %v27, %v88
    %v100 = vmul.f32 %v28, %v88
    %v101 = vmul.f32 %v29, %v88
    %v102 = vmul.f32 %v30, %v88
    %v103 = vmul.f32 %v31, %v88
    %v104 = vmul.f32 %v32, %v88
    %v105 = vmul.f32 %v33, %v88
    %v106 = vmul.f32 %v34, %v88
    %v107 = vmul.f32 %v35, %v88
    %v108 = vmul.f32 %v36, %v88
    %v109 = vmul.f32 %v37, %v88
    %v110 = vmul.f32 %v38, %v88
    %v111 = vmul.f32 %v39, %v88
    %v112 = vmul.f32 %v40, %v88
    %v113 = vmul.f32 %v41, %v88
    %v114 = vmul.f32 %v42, %v88
    %v115 = vmul.f32 %v43, %v88
    %v116 = vmul.f32 %v44, %v88
    %v117 = vmul.f32 %v45, %v88
    %v118 = vmul.f32 %v46, %v88
    %v119 = vmul.f32 %v47, %v88
    %v120 = vmul.f32 %v48, %v88
    %v121 = vmul.f32 %v49, %v88
    %v122 = vmul.f32 %v50, %v88
    %v123 = vmul.f32 %v51, %v88
    %v124 = vmul.f32 %v52, %v88
    %v125 = vmul.f32 %v53, %v88
    %v126 = vmul.f32 %v54, %v88
    %v127 = vmul.f32 %v55, %v88
    %v128 = vmul.f32 %v56, %v88
    %v129 = vmul.f32 %v57, %v88
    %v130 = vmul.f32 %v58, %v88
    %v131 = vmul.f32 %v59, %v88
    %v132 = vmul.f32 %v60, %v88
    %v133 = vmul.f32 %v61, %v88
    %v134 = vmul.f32 %v62, %v88
    %v135 = vmul.f32 %v63, %v88
    %v136 = vmul.f32 %v64, %v88
    %v137 = vmul.f32 %v65, %v88
    %v138 = vmul.f32 %v66, %v88
    %v139 = vmul.f32 %v67, %v88
    %v140 = vmul.f32 %v68, %v88
    %v141 = vmul.f32 %v69, %v88
    %v142 = vmul.f32 %v70, %v88
    %v143 = vmul.f32 %v71, %v88
    %v144 = vmul.f32 %v72, %v88
    %v145 = vmul.f32 %v73, %v88
    %v146 = vmul.f32 %v74, %v88
    %v147 = vmul.f32 %v75, %v88
    %v148 = vmul.f32 %v76, %v88
    %v149 = vmul.f32 %v77, %v88
    %v150 = vmul.f32 %v78, %v88
    %v151 = vmul.f32 %v79, %v88
    %v152 = vmul.f32 %v80, %v88
    %v153 = vmul.f32 %v81, %v88
    %v155 = vlaneseq
    %v156 = vshrl.u32 %v155, 7
    %v157 = vsub.s32 0, %v156
    %v158 = vrot.slane %v83, %v157
    %v160 = vadd.f32 %v90, %v158
    %v161 = vadd.f32 %v91, %v158
    %v162 = vadd.f32 %v92, %v158
    %v163 = vadd.f32 %v93, %v158
    %v164 = vadd.f32 %v94, %v158
    %v165 = vadd.f32 %v95, %v158
    %v166 = vadd.f32 %v96, %v158
    %v167 = vadd.f32 %v97, %v158
    %v168 = vadd.f32 %v98, %v158
    %v169 = vadd.f32 %v99, %v158
    %v170 = vadd.f32 %v100, %v158
    %v171 = vadd.f32 %v101, %v158
    %v172 = vadd.f32 %v102, %v158
    %v173 = vadd.f32 %v103, %v158
    %v174 = vadd.f32 %v104, %v158
    %v175 = vadd.f32 %v105, %v158
    %v176 = vadd.f32 %v106, %v158
    %v177 = vadd.f32 %v107, %v158
    %v178 = vadd.f32 %v108, %v158
    %v179 = vadd.f32 %v109, %v158
    %v180 = vadd.f32 %v110, %v158
    %v181 = vadd.f32 %v111, %v158
    %v182 = vadd.f32 %v112, %v158
    %v183 = vadd.f32 %v113, %v158
    %v184 = vadd.f32 %v114, %v158
    %v185 = vadd.f32 %v115, %v158
    %v186 = vadd.f32 %v116, %v158
    %v187 = vadd.f32 %v117, %v158
    %v188 = vadd.f32 %v118, %v158
    %v189 = vadd.f32 %v119, %v158
    %v190 = vadd.f32 %v120, %v158
    %v191 = vadd.f32 %v121, %v158
    %v192 = vadd.f32 %v122, %v158
    %v193 = vadd.f32 %v123, %v158
    %v194 = vadd.f32 %v124, %v158
    %v195 = vadd.f32 %v125, %v158
    %v196 = vadd.f32 %v126, %v158
    %v197 = vadd.f32 %v127, %v158
    %v198 = vadd.f32 %v128, %v158
    %v199 = vadd.f32 %v129, %v158
    %v200 = vadd.f32 %v130, %v158
    %v201 = vadd.f32 %v131, %v158
    %v202 = vadd.f32 %v132, %v158
    %v203 = vadd.f32 %v133, %v158
    %v204 = vadd.f32 %v134, %v158
    %v205 = vadd.f32 %v135, %v158
    %v206 = vadd.f32 %v136, %v158
    %v207 = vadd.f32 %v137, %v158
    %v208 = vadd.f32 %v138, %v158
    %v209 = vadd.f32 %v139, %v158
    %v210 = vadd.f32 %v140, %v158
    %v211 = vadd.f32 %v141, %v158
    %v212 = vadd.f32 %v142, %v158
    %v213 = vadd.f32 %v143, %v158
    %v214 = vadd.f32 %v144, %v158
    %v215 = vadd.f32 %v145, %v158
    %v216 = vadd.f32 %v146, %v158
    %v217 = vadd.f32 %v147, %v158
    %v218 = vadd.f32 %v148, %v158
    %v219 = vadd.f32 %v149, %v158
    %v220 = vadd.f32 %v150, %v158
    %v221 = vadd.f32 %v151, %v158
    %v222 = vadd.f32 %v152, %v158
    %v223 = vadd.f32 %v153, %v158
    %v224 = vld [vmem:[%s3] sm:$0xff]
    %v225 = vld [vmem:[%s3 + $0x8] sm:$0xff]
    %v226 = vld [vmem:[%s3 + $0x10] sm:$0xff]
    %v227 = vld [vmem:[%s3 + $0x18] sm:$0xff]
    %v228 = vld [vmem:[%s3 + $0x20] sm:$0xff]
    %v229 = vld [vmem:[%s3 + $0x28] sm:$0xff]
    %v230 = vld [vmem:[%s3 + $0x30] sm:$0xff]
    %v231 = vld [vmem:[%s3 + $0x38] sm:$0xff]
    %v232 = vld [vmem:[%s3 + $0x40] sm:$0xff]
    %v233 = vld [vmem:[%s3 + $0x48] sm:$0xff]
    %v234 = vld [vmem:[%s3 + $0x50] sm:$0xff]
    %v235 = vld [vmem:[%s3 + $0x58] sm:$0xff]
    %v236 = vld [vmem:[%s3 + $0x60] sm:$0xff]
    %v237 = vld [vmem:[%s3 + $0x68] sm:$0xff]
    %v238 = vld [vmem:[%s3 + $0x70] sm:$0xff]
    %v239 = vld [vmem:[%s3 + $0x78] sm:$0xff]
    %v240 = vld [vmem:[%s3 + $0x80] sm:$0xff]
    %v241 = vld [vmem:[%s3 + $0x88] sm:$0xff]
    %v242 = vld [vmem:[%s3 + $0x90] sm:$0xff]
    %v243 = vld [vmem:[%s3 + $0x98] sm:$0xff]
    %v244 = vld [vmem:[%s3 + $0xa0] sm:$0xff]
    %v245 = vld [vmem:[%s3 + $0xa8] sm:$0xff]
    %v246 = vld [vmem:[%s3 + $0xb0] sm:$0xff]
    %v247 = vld [vmem:[%s3 + $0xb8] sm:$0xff]
    %v248 = vld [vmem:[%s3 + $0xc0] sm:$0xff]
    %v249 = vld [vmem:[%s3 + $0xc8] sm:$0xff]
    %v250 = vld [vmem:[%s3 + $0xd0] sm:$0xff]
    %v251 = vld [vmem:[%s3 + $0xd8] sm:$0xff]
    %v252 = vld [vmem:[%s3 + $0xe0] sm:$0xff]
    %v253 = vld [vmem:[%s3 + $0xe8] sm:$0xff]
    %v254 = vld [vmem:[%s3 + $0xf0] sm:$0xff]
    %v255 = vld [vmem:[%s3 + $0xf8] sm:$0xff]
    %v256 = vld [vmem:[%s3 + $0x100] sm:$0xff]
    %v257 = vld [vmem:[%s3 + $0x108] sm:$0xff]
    %v258 = vld [vmem:[%s3 + $0x110] sm:$0xff]
    %v259 = vld [vmem:[%s3 + $0x118] sm:$0xff]
    %v260 = vld [vmem:[%s3 + $0x120] sm:$0xff]
    %v261 = vld [vmem:[%s3 + $0x128] sm:$0xff]
    %v262 = vld [vmem:[%s3 + $0x130] sm:$0xff]
    %v263 = vld [vmem:[%s3 + $0x138] sm:$0xff]
    %v264 = vld [vmem:[%s3 + $0x140] sm:$0xff]
    %v265 = vld [vmem:[%s3 + $0x148] sm:$0xff]
    %v266 = vld [vmem:[%s3 + $0x150] sm:$0xff]
    %v267 = vld [vmem:[%s3 + $0x158] sm:$0xff]
    %v268 = vld [vmem:[%s3 + $0x160] sm:$0xff]
    %v269 = vld [vmem:[%s3 + $0x168] sm:$0xff]
    %v270 = vld [vmem:[%s3 + $0x170] sm:$0xff]
    %v271 = vld [vmem:[%s3 + $0x178] sm:$0xff]
    %v272 = vld [vmem:[%s3 + $0x180] sm:$0xff]
    %v273 = vld [vmem:[%s3 + $0x188] sm:$0xff]
    %v274 = vld [vmem:[%s3 + $0x190] sm:$0xff]
    %v275 = vld [vmem:[%s3 + $0x198] sm:$0xff]
    %v276 = vld [vmem:[%s3 + $0x1a0] sm:$0xff]
    %v277 = vld [vmem:[%s3 + $0x1a8] sm:$0xff]
    %v278 = vld [vmem:[%s3 + $0x1b0] sm:$0xff]
    %v279 = vld [vmem:[%s3 + $0x1b8] sm:$0xff]
    %v280 = vld [vmem:[%s3 + $0x1c0] sm:$0xff]
    %v281 = vld [vmem:[%s3 + $0x1c8] sm:$0xff]
    %v282 = vld [vmem:[%s3 + $0x1d0] sm:$0xff]
    %v283 = vld [vmem:[%s3 + $0x1d8] sm:$0xff]
    %v284 = vld [vmem:[%s3 + $0x1e0] sm:$0xff]
    %v285 = vld [vmem:[%s3 + $0x1e8] sm:$0xff]
    %v286 = vld [vmem:[%s3 + $0x1f0] sm:$0xff]
    %v287 = vld [vmem:[%s3 + $0x1f8] sm:$0xff]
    %v288 = vadd.f32 %v160, %v224
    %v289 = vadd.f32 %v161, %v225
    %v290 = vadd.f32 %v162, %v226
    %v291 = vadd.f32 %v163, %v227
    %v292 = vadd.f32 %v164, %v228
    %v293 = vadd.f32 %v165, %v229
    %v294 = vadd.f32 %v166, %v230
    %v295 = vadd.f32 %v167, %v231
    %v296 = vadd.f32 %v168, %v232
    %v297 = vadd.f32 %v169, %v233
    %v298 = vadd.f32 %v170, %v234
    %v299 = vadd.f32 %v171, %v235
    %v300 = vadd.f32 %v172, %v236
    %v301 = vadd.f32 %v173, %v237
    %v302 = vadd.f32 %v174, %v238
    %v303 = vadd.f32 %v175, %v239
    %v304 = vadd.f32 %v176, %v240
    %v305 = vadd.f32 %v177, %v241
    %v306 = vadd.f32 %v178, %v242
    %v307 = vadd.f32 %v179, %v243
    %v308 = vadd.f32 %v180, %v244
    %v309 = vadd.f32 %v181, %v245
    %v310 = vadd.f32 %v182, %v246
    %v311 = vadd.f32 %v183, %v247
    %v312 = vadd.f32 %v184, %v248
    %v313 = vadd.f32 %v185, %v249
    %v314 = vadd.f32 %v186, %v250
    %v315 = vadd.f32 %v187, %v251
    %v316 = vadd.f32 %v188, %v252
    %v317 = vadd.f32 %v189, %v253
    %v318 = vadd.f32 %v190, %v254
    %v319 = vadd.f32 %v191, %v255
    %v320 = vadd.f32 %v192, %v256
    %v321 = vadd.f32 %v193, %v257
    %v322 = vadd.f32 %v194, %v258
    %v323 = vadd.f32 %v195, %v259
    %v324 = vadd.f32 %v196, %v260
    %v325 = vadd.f32 %v197, %v261
    %v326 = vadd.f32 %v198, %v262
    %v327 = vadd.f32 %v199, %v263
    %v328 = vadd.f32 %v200, %v264
    %v329 = vadd.f32 %v201, %v265
    %v330 = vadd.f32 %v202, %v266
    %v331 = vadd.f32 %v203, %v267
    %v332 = vadd.f32 %v204, %v268
    %v333 = vadd.f32 %v205, %v269
    %v334 = vadd.f32 %v206, %v270
    %v335 = vadd.f32 %v207, %v271
    %v336 = vadd.f32 %v208, %v272
    %v337 = vadd.f32 %v209, %v273
    %v338 = vadd.f32 %v210, %v274
    %v339 = vadd.f32 %v211, %v275
    %v340 = vadd.f32 %v212, %v276
    %v341 = vadd.f32 %v213, %v277
    %v342 = vadd.f32 %v214, %v278
    %v343 = vadd.f32 %v215, %v279
    %v344 = vadd.f32 %v216, %v280
    %v345 = vadd.f32 %v217, %v281
    %v346 = vadd.f32 %v218, %v282
    %v347 = vadd.f32 %v219, %v283
    %v348 = vadd.f32 %v220, %v284
    %v349 = vadd.f32 %v221, %v285
    %v350 = vadd.f32 %v222, %v286
    %v351 = vadd.f32 %v223, %v287
    %v352 = vmax.f32 %v288, 0.0
    %v353 = vmax.f32 %v289, 0.0
    %v354 = vmax.f32 %v290, 0.0
    %v355 = vmax.f32 %v291, 0.0
    %v356 = vmax.f32 %v292, 0.0
    %v357 = vmax.f32 %v293, 0.0
    %v358 = vmax.f32 %v294, 0.0
    %v359 = vmax.f32 %v295, 0.0
    %v360 = vmax.f32 %v296, 0.0
    %v361 = vmax.f32 %v297, 0.0
    %v362 = vmax.f32 %v298, 0.0
    %v363 = vmax.f32 %v299, 0.0
    %v364 = vmax.f32 %v300, 0.0
    %v365 = vmax.f32 %v301, 0.0
    %v366 = vmax.f32 %v302, 0.0
    %v367 = vmax.f32 %v303, 0.0
    %v368 = vmax.f32 %v304, 0.0
    %v369 = vmax.f32 %v305, 0.0
    %v370 = vmax.f32 %v306, 0.0
    %v371 = vmax.f32 %v307, 0.0
    %v372 = vmax.f32 %v308, 0.0
    %v373 = vmax.f32 %v309, 0.0
    %v374 = vmax.f32 %v310, 0.0
    %v375 = vmax.f32 %v311, 0.0
    %v376 = vmax.f32 %v312, 0.0
    %v377 = vmax.f32 %v313, 0.0
    %v378 = vmax.f32 %v314, 0.0
    %v379 = vmax.f32 %v315, 0.0
    %v380 = vmax.f32 %v316, 0.0
    %v381 = vmax.f32 %v317, 0.0
    %v382 = vmax.f32 %v318, 0.0
    %v383 = vmax.f32 %v319, 0.0
    %v384 = vmax.f32 %v320, 0.0
    %v385 = vmax.f32 %v321, 0.0
    %v386 = vmax.f32 %v322, 0.0
    %v387 = vmax.f32 %v323, 0.0
    %v388 = vmax.f32 %v324, 0.0
    %v389 = vmax.f32 %v325, 0.0
    %v390 = vmax.f32 %v326, 0.0
    %v391 = vmax.f32 %v327, 0.0
    %v392 = vmax.f32 %v328, 0.0
    %v393 = vmax.f32 %v329, 0.0
    %v394 = vmax.f32 %v330, 0.0
    %v395 = vmax.f32 %v331, 0.0
    %v396 = vmax.f32 %v332, 0.0
    %v397 = vmax.f32 %v333, 0.0
    %v398 = vmax.f32 %v334, 0.0
    %v399 = vmax.f32 %v335, 0.0
    %v400 = vmax.f32 %v336, 0.0
    %v401 = vmax.f32 %v337, 0.0
    %v402 = vmax.f32 %v338, 0.0
    %v403 = vmax.f32 %v339, 0.0
    %v404 = vmax.f32 %v340, 0.0
    %v405 = vmax.f32 %v341, 0.0
    %v406 = vmax.f32 %v342, 0.0
    %v407 = vmax.f32 %v343, 0.0
    %v408 = vmax.f32 %v344, 0.0
    %v409 = vmax.f32 %v345, 0.0
    %v410 = vmax.f32 %v346, 0.0
    %v411 = vmax.f32 %v347, 0.0
    %v412 = vmax.f32 %v348, 0.0
    %v413 = vmax.f32 %v349, 0.0
    %v414 = vmax.f32 %v350, 0.0
    %v415 = vmax.f32 %v351, 0.0
    %vm416 = vcmask 130048
    %417 = vst.msk [vmem:[#allocation2] sm:$0xff] %vm416, %v352
    %418 = vst.msk [vmem:[#allocation2 + $0x8] sm:$0xff] %vm416, %v353
    %419 = vst.msk [vmem:[#allocation2 + $0x10] sm:$0xff] %vm416, %v354
    %420 = vst.msk [vmem:[#allocation2 + $0x18] sm:$0xff] %vm416, %v355
    %421 = vst.msk [vmem:[#allocation2 + $0x20] sm:$0xff] %vm416, %v356
    %422 = vst.msk [vmem:[#allocation2 + $0x28] sm:$0xff] %vm416, %v357
    %423 = vst.msk [vmem:[#allocation2 + $0x30] sm:$0xff] %vm416, %v358
    %424 = vst.msk [vmem:[#allocation2 + $0x38] sm:$0xff] %vm416, %v359
    %425 = vst.msk [vmem:[#allocation2 + $0x40] sm:$0xff] %vm416, %v360
    %426 = vst.msk [vmem:[#allocation2 + $0x48] sm:$0xff] %vm416, %v361
    %427 = vst.msk [vmem:[#allocation2 + $0x50] sm:$0xff] %vm416, %v362
    %428 = vst.msk [vmem:[#allocation2 + $0x58] sm:$0xff] %vm416, %v363
    %429 = vst.msk [vmem:[#allocation2 + $0x60] sm:$0xff] %vm416, %v364
    %430 = vst.msk [vmem:[#allocation2 + $0x68] sm:$0xff] %vm416, %v365
    %431 = vst.msk [vmem:[#allocation2 + $0x70] sm:$0xff] %vm416, %v366
    %432 = vst.msk [vmem:[#allocation2 + $0x78] sm:$0xff] %vm416, %v367
    %433 = vst.msk [vmem:[#allocation2 + $0x80] sm:$0xff] %vm416, %v368
    %434 = vst.msk [vmem:[#allocation2 + $0x88] sm:$0xff] %vm416, %v369
    %435 = vst.msk [vmem:[#allocation2 + $0x90] sm:$0xff] %vm416, %v370
    %436 = vst.msk [vmem:[#allocation2 + $0x98] sm:$0xff] %vm416, %v371
    %437 = vst.msk [vmem:[#allocation2 + $0xa0] sm:$0xff] %vm416, %v372
    %438 = vst.msk [vmem:[#allocation2 + $0xa8] sm:$0xff] %vm416, %v373
    %439 = vst.msk [vmem:[#allocation2 + $0xb0] sm:$0xff] %vm416, %v374
    %440 = vst.msk [vmem:[#allocation2 + $0xb8] sm:$0xff] %vm416, %v375
    %441 = vst.msk [vmem:[#allocation2 + $0xc0] sm:$0xff] %vm416, %v376
    %442 = vst.msk [vmem:[#allocation2 + $0xc8] sm:$0xff] %vm416, %v377
    %443 = vst.msk [vmem:[#allocation2 + $0xd0] sm:$0xff] %vm416, %v378
    %444 = vst.msk [vmem:[#allocation2 + $0xd8] sm:$0xff] %vm416, %v379
    %445 = vst.msk [vmem:[#allocation2 + $0xe0] sm:$0xff] %vm416, %v380
    %446 = vst.msk [vmem:[#allocation2 + $0xe8] sm:$0xff] %vm416, %v381
    %447 = vst.msk [vmem:[#allocation2 + $0xf0] sm:$0xff] %vm416, %v382
    %448 = vst.msk [vmem:[#allocation2 + $0xf8] sm:$0xff] %vm416, %v383
    %449 = vst.msk [vmem:[#allocation2 + $0x100] sm:$0xff] %vm416, %v384
    %450 = vst.msk [vmem:[#allocation2 + $0x108] sm:$0xff] %vm416, %v385
    %451 = vst.msk [vmem:[#allocation2 + $0x110] sm:$0xff] %vm416, %v386
    %452 = vst.msk [vmem:[#allocation2 + $0x118] sm:$0xff] %vm416, %v387
    %453 = vst.msk [vmem:[#allocation2 + $0x120] sm:$0xff] %vm416, %v388
    %454 = vst.msk [vmem:[#allocation2 + $0x128] sm:$0xff] %vm416, %v389
    %455 = vst.msk [vmem:[#allocation2 + $0x130] sm:$0xff] %vm416, %v390
    %456 = vst.msk [vmem:[#allocation2 + $0x138] sm:$0xff] %vm416, %v391
    %457 = vst.msk [vmem:[#allocation2 + $0x140] sm:$0xff] %vm416, %v392
    %458 = vst.msk [vmem:[#allocation2 + $0x148] sm:$0xff] %vm416, %v393
    %459 = vst.msk [vmem:[#allocation2 + $0x150] sm:$0xff] %vm416, %v394
    %460 = vst.msk [vmem:[#allocation2 + $0x158] sm:$0xff] %vm416, %v395
    %461 = vst.msk [vmem:[#allocation2 + $0x160] sm:$0xff] %vm416, %v396
    %462 = vst.msk [vmem:[#allocation2 + $0x168] sm:$0xff] %vm416, %v397
    %463 = vst.msk [vmem:[#allocation2 + $0x170] sm:$0xff] %vm416, %v398
    %464 = vst.msk [vmem:[#allocation2 + $0x178] sm:$0xff] %vm416, %v399
    %465 = vst.msk [vmem:[#allocation2 + $0x180] sm:$0xff] %vm416, %v400
    %466 = vst.msk [vmem:[#allocation2 + $0x188] sm:$0xff] %vm416, %v401
    %467 = vst.msk [vmem:[#allocation2 + $0x190] sm:$0xff] %vm416, %v402
    %468 = vst.msk [vmem:[#allocation2 + $0x198] sm:$0xff] %vm416, %v403
    %469 = vst.msk [vmem:[#allocation2 + $0x1a0] sm:$0xff] %vm416, %v404
    %470 = vst.msk [vmem:[#allocation2 + $0x1a8] sm:$0xff] %vm416, %v405
    %471 = vst.msk [vmem:[#allocation2 + $0x1b0] sm:$0xff] %vm416, %v406
    %472 = vst.msk [vmem:[#allocation2 + $0x1b8] sm:$0xff] %vm416, %v407
    %473 = vst.msk [vmem:[#allocation2 + $0x1c0] sm:$0xff] %vm416, %v408
    %474 = vst.msk [vmem:[#allocation2 + $0x1c8] sm:$0xff] %vm416, %v409
    %475 = vst.msk [vmem:[#allocation2 + $0x1d0] sm:$0xff] %vm416, %v410
    %476 = vst.msk [vmem:[#allocation2 + $0x1d8] sm:$0xff] %vm416, %v411
    %477 = vst.msk [vmem:[#allocation2 + $0x1e0] sm:$0xff] %vm416, %v412
    %478 = vst.msk [vmem:[#allocation2 + $0x1e8] sm:$0xff] %vm416, %v413
    %479 = vst.msk [vmem:[#allocation2 + $0x1f0] sm:$0xff] %vm416, %v414
    %480 = vst.msk [vmem:[#allocation2 + $0x1f8] sm:$0xff] %vm416, %v415
    // Predicated region
    $region18: #{basic_block_forward.5} parent=1 // pred_check
      _
    $region19: #{basic_block_forward.5} parent=1 // pred_check_branch
      %482 = sbr.rel (0) target = $region21
    $region20: #{basic_block_forward.5} parent=1 // pred_region
      %s484 = ssub.s32 8192, 8192
      %485 = vsyncadd [#allocation3], %s484
      %s486 = sshll.u32 [#allocation2], 4
      %s487 = int_to_ptr.vmem [resolvable:$true] %s486
      %492 = dma.vmem_to_hbm [thread:$0]  %s487, 8192, %s4, [#allocation3], 128, 128, 8
    $region21: #{basic_block_forward.5} parent=1 // pred_fallthru
      _
    // Predicated region
    $region22: #{basic_block_forward.5} parent=1 // pred_check
      _
    $region23: #{basic_block_forward.5} parent=1 // pred_check_branch
      %494 = sbr.rel (0) target = $region25
    $region24: #{basic_block_forward.5} parent=1 // pred_region
      %495 = dma.done [#allocation3], 8192
    $region25: #{basic_block_forward.5} parent=1 // pred_fallthru
      _
    %496 = vsyncpa [#allocation3], 1

// kernel: basic_block_forward.4
$region0: #{basic_block_forward.4}
  #allocation0 [shape = 'u32[]', space=smem, size = 0x4, offset = 0x4, fixed_abs, tag = 'smem constant byte address 0x4 - core index']
  #allocation1 [shape = 'u32[144,128]{1,0:T(1,128)}', space=vmem, size = 0x12000, scoped, tag = 'internal scratch']
  #allocation2 [shape = 'f32[2,10,24,16]{3,2,1,0:T(8,128)}', space=vmem, size = 0x3c000, scoped, tag = 'scratch operand']
  %s0 = inlined_call_operand.vmem [shape: f32[8,8,8,128], index: 0, kind: input, shape index: {}]
  %s1 = inlined_call_operand.vmem [shape: f32[1,128], index: 1, kind: input, shape index: {}]
  %s2 = inlined_call_operand.vmem [shape: f32[1,128], index: 2, kind: input, shape index: {}]
  %s3 = inlined_call_operand.vmem [shape: f32[9,16,128], index: 3, kind: input, shape index: {}]
  %s4 = inlined_call_operand.vmem [shape: f32[8,8,8,128], index: 4, kind: output, shape index: {0}]
  %s5 = inlined_call_operand.vmem [shape: f32[4,8,128], index: 5, kind: output, shape index: {1}]
  %6 = xla_tuple %s4, %s5
  %s7 = sld [smem:[#allocation0]]
  $region57: #{basic_block_forward.4} parent=0
    _
  %s9 = ssub.s32 1, %s7
  %s10 = scalar_select 0, %s9, %s7
  loop: start=0, step=1, limit=6
  $region2: #{basic_block_forward.4} parent=0 // loop_pre_header
    _
  $region3: #{basic_block_forward.4} parent=0 // loop_header
    %s12 = sphi 0, %s16
    %p13 = scmp.ge.s32.totalorder %s12, 6
    %s22 = sphi 0, %s24
    %s25 = sphi 0, %s22
    %s26 = sphi 0, %s25
    %s42 = sphi 0, %s26
    %s46 = sphi 0, %s46
    %s48 = sphi 0, %s46
    %s49 = sphi 0, %s48
    %s63 = sphi 0, %s49
    %s67 = sphi 0, %s67
    %s69 = sphi 0, %s67
    %s70 = sphi 0, %s69
    %s84 = sphi 0, %s70
    %s88 = sphi 0, %s88
    %s90 = sphi 0, %s88
    %s91 = sphi 0, %s90
    %s105 = sphi 0, %s91
    %s111 = sphi 0, %s113
    %s114 = sphi 0, %s111
    %s115 = sphi 0, %s114
    %s131 = sphi 0, %s115
    %s137 = sphi 0, %s139
    %s140 = sphi 0, %s137
    %s141 = sphi 0, %s140
    %s157 = sphi 0, %s141
  $region4: #{basic_block_forward.4} parent=0 // loop_header_branch
    %15 = sbr.rel (%p13) target = $region8
  $region5: #{basic_block_forward.4} parent=0 // loop_body
    %s17 = ssub.s32 %s12, 1
    %s18 = ssub.s32 %s12, 2
    %s19 = sadd.s32 %s12, 1
    %s20 = ssub.s32 %s12, %s19
    %p21 = scmp.eq.s32.totalorder %s20, 0
    %s23 = sadd.s32 %s22, 1
    %s24 = scalar_select %p21, %s22, %s23
    %p27 = pneg %p21
    %p28 = scmp.eq.s32.totalorder %s12, 3
    %p29 = por %p27, %p28
    %p30 = scmp.ne.s32.totalorder %s22, %s25
    %p31 = scmp.eq.s32.totalorder %s12, 0
    %p32 = por %p30, %p31
    %p33 = scmp.ne.s32.totalorder %s22, %s25
    %p34 = scmp.eq.s32.totalorder %s17, 3
    %p35 = por %p33, %p34
    %p36 = scmp.ne.s32.totalorder %s25, %s26
    %p37 = scmp.eq.s32.totalorder %s17, 0
    %p38 = por %p36, %p37
    %p39 = scmp.ne.s32.totalorder %s25, %s26
    %p40 = scmp.eq.s32.totalorder %s18, 3
    %p41 = por %p39, %p40
    %p43 = scmp.ne.s32.totalorder %s26, %s42
    %p44 = scmp.eq.s32.totalorder %s18, 0
    %p45 = por %p43, %p44
    %s47 = sadd.s32 %s46, 1
    %p50 = scmp.eq.s32.totalorder %s12, 3
    %p51 = scmp.ne.s32.totalorder %s46, %s48
    %p52 = scmp.eq.s32.totalorder %s12, 0
    %p53 = por %p51, %p52
    %p54 = scmp.ne.s32.totalorder %s46, %s48
    %p55 = scmp.eq.s32.totalorder %s17, 3
    %p56 = por %p54, %p55
    %p57 = scmp.ne.s32.totalorder %s48, %s49
    %p58 = scmp.eq.s32.totalorder %s17, 0
    %p59 = por %p57, %p58
    %p60 = scmp.ne.s32.totalorder %s48, %s49
    %p61 = scmp.eq.s32.totalorder %s18, 3
    %p62 = por %p60, %p61
    %p64 = scmp.ne.s32.totalorder %s49, %s63
    %p65 = scmp.eq.s32.totalorder %s18, 0
    %p66 = por %p64, %p65
    %s68 = sadd.s32 %s67, 1
    %p71 = scmp.eq.s32.totalorder %s12, 3
    %p72 = scmp.ne.s32.totalorder %s67, %s69
    %p73 = scmp.eq.s32.totalorder %s12, 0
    %p74 = por %p72, %p73
    %p75 = scmp.ne.s32.totalorder %s67, %s69
    %p76 = scmp.eq.s32.totalorder %s17, 3
    %p77 = por %p75, %p76
    %p78 = scmp.ne.s32.totalorder %s69, %s70
    %p79 = scmp.eq.s32.totalorder %s17, 0
    %p80 = por %p78, %p79
    %p81 = scmp.ne.s32.totalorder %s69, %s70
    %p82 = scmp.eq.s32.totalorder %s18, 3
    %p83 = por %p81, %p82
    %p85 = scmp.ne.s32.totalorder %s70, %s84
    %p86 = scmp.eq.s32.totalorder %s18, 0
    %p87 = por %p85, %p86
    %s89 = sadd.s32 %s88, 1
    %p92 = scmp.eq.s32.totalorder %s12, 3
    %p93 = scmp.ne.s32.totalorder %s88, %s90
    %p94 = scmp.eq.s32.totalorder %s12, 0
    %p95 = por %p93, %p94
    %p96 = scmp.ne.s32.totalorder %s88, %s90
    %p97 = scmp.eq.s32.totalorder %s17, 3
    %p98 = por %p96, %p97
    %p99 = scmp.ne.s32.totalorder %s90, %s91
    %p100 = scmp.eq.s32.totalorder %s17, 0
    %p101 = por %p99, %p100
    %p102 = scmp.ne.s32.totalorder %s90, %s91
    %p103 = scmp.eq.s32.totalorder %s18, 3
    %p104 = por %p102, %p103
    %p106 = scmp.ne.s32.totalorder %s91, %s105
    %p107 = scmp.eq.s32.totalorder %s18, 0
    %p108 = por %p106, %p107
    %s109 = ssub.s32 %s12, %s19
    %p110 = scmp.eq.s32.totalorder %s109, 0
    %s112 = sadd.s32 %s111, 1
    %s113 = scalar_select %p110, %s111, %s112
    %p116 = pneg %p110
    %p117 = scmp.eq.s32.totalorder %s12, 3
    %p118 = por %p116, %p117
    %p119 = scmp.ne.s32.totalorder %s111, %s114
    %p120 = scmp.eq.s32.totalorder %s12, 0
    %p121 = por %p119, %p120
    %p122 = scmp.ne.s32.totalorder %s111, %s114
    %p123 = scmp.eq.s32.totalorder %s17, 3
    %p124 = por %p122, %p123
    %p125 = scmp.ne.s32.totalorder %s114, %s115
    %p126 = scmp.eq.s32.totalorder %s17, 0
    %p127 = por %p125, %p126
    %p128 = scmp.ne.s32.totalorder %s114, %s115
    %p129 = scmp.eq.s32.totalorder %s18, 3
    %p130 = por %p128, %p129
    %p132 = scmp.ne.s32.totalorder %s115, %s131
    %p133 = scmp.eq.s32.totalorder %s18, 0
    %p134 = por %p132, %p133
    %s135 = ssub.s32 %s12, %s19
    %p136 = scmp.eq.s32.totalorder %s135, 0
    %s138 = sadd.s32 %s137, 1
    %s139 = scalar_select %p136, %s137, %s138
    %p142 = pneg %p136
    %p143 = scmp.eq.s32.totalorder %s12, 3
    %p144 = por %p142, %p143
    %p145 = scmp.ne.s32.totalorder %s137, %s140
    %p146 = scmp.eq.s32.totalorder %s12, 0
    %p147 = por %p145, %p146
    %p148 = scmp.ne.s32.totalorder %s137, %s140
    %p149 = scmp.eq.s32.totalorder %s17, 3
    %p150 = por %p148, %p149
    %p151 = scmp.ne.s32.totalorder %s140, %s141
    %p152 = scmp.eq.s32.totalorder %s17, 0
    %p153 = por %p151, %p152
    %p154 = scmp.ne.s32.totalorder %s140, %s141
    %p155 = scmp.eq.s32.totalorder %s18, 3
    %p156 = por %p154, %p155
    %p158 = scmp.ne.s32.totalorder %s141, %s157
    %p159 = scmp.eq.s32.totalorder %s18, 0
    %p160 = por %p158, %p159
    %p161 = scmp.le.s32.totalorder 1, %s12
    %p162 = scmp.lt.s32.totalorder %s12, 5
    %p163 = pnand %p161, %p162
    %p164 = pneg %p163
    // Predicated region
    $region9: #{basic_block_forward.4} parent=5 // pred_check
      _
    $region10: #{basic_block_forward.4} parent=5 // pred_check_branch
      %166 = sbr.rel (%p163) target = $region12
    $region11: #{basic_block_forward.4} parent=5 // pred_region
      %s167 = ssub.s32 %s12, 1
      // Predicated region
      $region13: #{basic_block_forward.4} parent=11 // pred_check
        %p168 = pneg %p59
      $region14: #{basic_block_forward.4} parent=11 // pred_check_branch
        %170 = sbr.rel (%p168) target = $region16
      $region15: #{basic_block_forward.4} parent=11 // pred_region
        _
      $region16: #{basic_block_forward.4} parent=11 // pred_fallthru
        _
      // Predicated region
      $region17: #{basic_block_forward.4} parent=11 // pred_check
        %p171 = pneg %p80
      $region18: #{basic_block_forward.4} parent=11 // pred_check_branch
        %173 = sbr.rel (%p171) target = $region20
      $region19: #{basic_block_forward.4} parent=11 // pred_region
        _
      $region20: #{basic_block_forward.4} parent=11 // pred_fallthru
        _
      // Predicated region
      $region21: #{basic_block_forward.4} parent=11 // pred_check
        %p174 = pneg %p101
      $region22: #{basic_block_forward.4} parent=11 // pred_check_branch
        %176 = sbr.rel (%p174) target = $region24
      $region23: #{basic_block_forward.4} parent=11 // pred_region
        _
      $region24: #{basic_block_forward.4} parent=11 // pred_fallthru
        _
    $region12: #{basic_block_forward.4} parent=5 // pred_fallthru
      _
    %p177 = scmp.lt.s32.totalorder %s12, 4
    // Predicated region
    $region25: #{basic_block_forward.4} parent=5 // pred_check
      %p178 = pneg %p177
    $region26: #{basic_block_forward.4} parent=5 // pred_check_branch
      %180 = sbr.rel (%p178) target = $region28
    $region27: #{basic_block_forward.4} parent=5 // pred_region
      // Predicated region
      $region29: #{basic_block_forward.4} parent=27 // pred_check
        %p181 = pneg %p32
      $region30: #{basic_block_forward.4} parent=27 // pred_check_branch
        %183 = sbr.rel (%p181) target = $region32
      $region31: #{basic_block_forward.4} parent=27 // pred_region
        %s184 = smul.u32 2, %s12
        %p185 = scmp.lt.s32.totalorder %s184, 7
        %s186 = scalar_select %p185, %s184, 7
        %s187 = smul.addr %s186, 8
        %s188 = smul.addr %s187, 8
        %s189 = scalar_lea.vmem %s0, %s188
        %s190 = smul.u32 2, %s12
      $region32: #{basic_block_forward.4} parent=27 // pred_fallthru
        _
    $region28: #{basic_block_forward.4} parent=5 // pred_fallthru
      _
    %p191 = scmp.le.s32.totalorder 1, %s12
    %p192 = scmp.lt.s32.totalorder %s12, 5
    %p193 = pnand %p191, %p192
    %p194 = pneg %p193
    // Predicated region
    $region33: #{basic_block_forward.4} parent=5 // pred_check
      _
    $region34: #{basic_block_forward.4} parent=5 // pred_check_branch
      %196 = sbr.rel (%p193) target = $region36
    $region35: #{basic_block_forward.4} parent=5 // pred_region
      %s197 = ssub.s32 %s12, 1
      %s198 = smul.u32 2, %s17
      %p199 = scmp.lt.s32.totalorder %s198, 7
      %s200 = scalar_select %p199, %s198, 7
      %s201 = smul.addr %s200, 8
      %s202 = smul.addr %s201, 8
      %s203 = scalar_lea.vmem %s0, %s202
      %p204 = pneg %p38
      %p205 = pneg %p35
      %p206 = pneg %p59
      %p207 = pneg %p56
      %p208 = pneg %p80
      %p209 = pneg %p77
      %p210 = pneg %p101
      %p211 = pneg %p98
      %p212 = pneg %p127
      %p213 = pneg %p124
      %s214 = smul.u32 2, %s17
      %p215 = scmp.lt.s32.totalorder %s214, 7
      %s216 = scalar_select %p215, %s214, 7
      %s217 = smul.addr %s216, 8
      %s218 = smul.addr %s217, 8
      %s219 = scalar_lea.vmem %s4, %s218
      %p220 = pneg %p153
      %p221 = pneg %p150
      %p222 = scmp.lt.s32.totalorder %s17, 3
      %s223 = scalar_select %p222, %s17, 3
      %s224 = smul.addr %s223, 8
      %s225 = scalar_lea.vmem %s5, %s224
      %s226 = smul.u32 2, %s17
      %p227 = scmp.lt.s32.totalorder %s226, 7
      %s228 = scalar_select %p227, %s226, 7
      %s229 = smul.addr %s228, 8
      %s230 = smul.addr %s229, 8
      %s231 = scalar_lea.vmem %s0, %s230
      %s232 = smul.u32 2, %s17
      %s233 = smul.u32 2, %s17
      %p234 = scmp.lt.s32.totalorder %s233, 7
      %s235 = scalar_select %p234, %s233, 7
      %s236 = smul.addr %s235, 8
      %s237 = smul.addr %s236, 8
      %s238 = scalar_lea.vmem %s4, %s237
      %s239 = smul.u32 2, %s17
      %p240 = scmp.lt.s32.totalorder %s17, 3
      %s241 = scalar_select %p240, %s17, 3
      %s242 = smul.addr %s241, 8
      %s243 = scalar_lea.vmem %s5, %s242
      %v244 = vld [vmem:[%s231] sm:$0xff]
      %v245 = vld [vmem:[%s231 + $0x8] sm:$0xff]
      %v246 = vld [vmem:[%s231 + $0x10] sm:$0xff]
      %v247 = vld [vmem:[%s231 + $0x18] sm:$0xff]
      %v248 = vld [vmem:[%s231 + $0x20] sm:$0xff]
      %v249 = vld [vmem:[%s231 + $0x28] sm:$0xff]
      %v250 = vld [vmem:[%s231 + $0x30] sm:$0xff]
      %v251 = vld [vmem:[%s231 + $0x38] sm:$0xff]
      %v252 = vld [vmem:[%s231 + $0x40] sm:$0xff]
      %v253 = vld [vmem:[%s231 + $0x48] sm:$0xff]
      %v254 = vld [vmem:[%s231 + $0x50] sm:$0xff]
      %v255 = vld [vmem:[%s231 + $0x58] sm:$0xff]
      %v256 = vld [vmem:[%s231 + $0x60] sm:$0xff]
      %v257 = vld [vmem:[%s231 + $0x68] sm:$0xff]
      %v258 = vld [vmem:[%s231 + $0x70] sm:$0xff]
      %v259 = vld [vmem:[%s231 + $0x78] sm:$0xff]
      %v260 = vld [vmem:[%s1] sm:$0x1]
      %v261 = vld [vmem:[%s2] sm:$0x1]
      %v263 = vlaneseq
      %v264 = vshrl.u32 %v263, 7
      %v265 = vsub.s32 0, %v264
      %v266 = vrot.slane %v260, %v265
      %v268 = vmul.f32 %v244, %v266
      %v269 = vmul.f32 %v245, %v266
      %v270 = vmul.f32 %v246, %v266
      %v271 = vmul.f32 %v247, %v266
      %v272 = vmul.f32 %v248, %v266
      %v273 = vmul.f32 %v249, %v266
      %v274 = vmul.f32 %v250, %v266
      %v275 = vmul.f32 %v251, %v266
      %v276 = vmul.f32 %v252, %v266
      %v277 = vmul.f32 %v253, %v266
      %v278 = vmul.f32 %v254, %v266
      %v279 = vmul.f32 %v255, %v266
      %v280 = vmul.f32 %v256, %v266
      %v281 = vmul.f32 %v257, %v266
      %v282 = vmul.f32 %v258, %v266
      %v283 = vmul.f32 %v259, %v266
      %v285 = vlaneseq
      %v286 = vshrl.u32 %v285, 7
      %v287 = vsub.s32 0, %v286
      %v288 = vrot.slane %v261, %v287
      %v290 = vadd.f32 %v268, %v288
      %v291 = vadd.f32 %v269, %v288
      %v292 = vadd.f32 %v270, %v288
      %v293 = vadd.f32 %v271, %v288
      %v294 = vadd.f32 %v272, %v288
      %v295 = vadd.f32 %v273, %v288
      %v296 = vadd.f32 %v274, %v288
      %v297 = vadd.f32 %v275, %v288
      %v298 = vadd.f32 %v276, %v288
      %v299 = vadd.f32 %v277, %v288
      %v300 = vadd.f32 %v278, %v288
      %v301 = vadd.f32 %v279, %v288
      %v302 = vadd.f32 %v280, %v288
      %v303 = vadd.f32 %v281, %v288
      %v304 = vadd.f32 %v282, %v288
      %v305 = vadd.f32 %v283, %v288
      %v306 = vmax.f32 %v290, 0.0
      %v307 = vmax.f32 %v291, 0.0
      %v308 = vmax.f32 %v292, 0.0
      %v309 = vmax.f32 %v293, 0.0
      %v310 = vmax.f32 %v294, 0.0
      %v311 = vmax.f32 %v295, 0.0
      %v312 = vmax.f32 %v296, 0.0
      %v313 = vmax.f32 %v297, 0.0
      %v314 = vmax.f32 %v298, 0.0
      %v315 = vmax.f32 %v299, 0.0
      %v316 = vmax.f32 %v300, 0.0
      %v317 = vmax.f32 %v301, 0.0
      %v318 = vmax.f32 %v302, 0.0
      %v319 = vmax.f32 %v303, 0.0
      %v320 = vmax.f32 %v304, 0.0
      %v321 = vmax.f32 %v305, 0.0
      %vm322 = vcmask 130048
      %323 = vst.msk [vmem:[#allocation2 + $0x7] sm:$0xff] %vm322, 0.0
      %vm324 = vcmask 123904
      %325 = vst.msk [vmem:[#allocation2 + $0xf] sm:$0x3] %vm324, 0.0
      %326 = vst.msk [vmem:[#allocation2 + $0xf7] sm:$0xff] %vm322, 0.0
      %327 = vst.msk [vmem:[#allocation2 + $0xff] sm:$0x3] %vm324, 0.0
      %s328 = scalar_lea.vmem [#allocation2], 216
      %329 = vst.msk [vmem:[%s328 + $0x7] sm:$0xff] %vm322, 0.0
      %330 = vst.msk [vmem:[%s328 + $0xf] sm:$0x3] %vm324, 0.0
      %331 = vst.msk [vmem:[%s328 + $0xf7] sm:$0xff] %vm322, 0.0
      %332 = vst.msk [vmem:[%s328 + $0xff] sm:$0x3] %vm324, 0.0
      %vm333 = vcmask 122880
      %334 = vst.msk [vmem:[#allocation2 + $0x7] sm:$0x1] %vm333, 0.0
      %335 = vst.msk [vmem:[#allocation2 + $0x1f] sm:$0x1] %vm333, 0.0
      %336 = vst.msk [vmem:[#allocation2 + $0x37] sm:$0x1] %vm333, 0.0
      %337 = vst.msk [vmem:[#allocation2 + $0x4f] sm:$0x1] %vm333, 0.0
      %338 = vst.msk [vmem:[#allocation2 + $0x67] sm:$0x1] %vm333, 0.0
      %339 = vst.msk [vmem:[#allocation2 + $0x7f] sm:$0x1] %vm333, 0.0
      %340 = vst.msk [vmem:[#allocation2 + $0x97] sm:$0x1] %vm333, 0.0
      %341 = vst.msk [vmem:[#allocation2 + $0xaf] sm:$0x1] %vm333, 0.0
      %342 = vst.msk [vmem:[#allocation2 + $0xc7] sm:$0x1] %vm333, 0.0
      %343 = vst.msk [vmem:[#allocation2 + $0xdf] sm:$0x1] %vm333, 0.0
      %344 = vst.msk [vmem:[#allocation2 + $0xf7] sm:$0x1] %vm333, 0.0
      %345 = vst.msk [vmem:[#allocation2 + $0x10f] sm:$0x1] %vm333, 0.0
      %346 = vst.msk [vmem:[#allocation2 + $0x127] sm:$0x1] %vm333, 0.0
      %347 = vst.msk [vmem:[#allocation2 + $0x13f] sm:$0x1] %vm333, 0.0
      %348 = vst.msk [vmem:[#allocation2 + $0x157] sm:$0x1] %vm333, 0.0
      %349 = vst.msk [vmem:[#allocation2 + $0x16f] sm:$0x1] %vm333, 0.0
      %350 = vst.msk [vmem:[#allocation2 + $0x187] sm:$0x1] %vm333, 0.0
      %351 = vst.msk [vmem:[#allocation2 + $0x19f] sm:$0x1] %vm333, 0.0
      %352 = vst.msk [vmem:[#allocation2 + $0x1b7] sm:$0x1] %vm333, 0.0
      %353 = vst.msk [vmem:[#allocation2 + $0x1cf] sm:$0x1] %vm333, 0.0
      %354 = vst.msk [vmem:[#allocation2 + $0x10] sm:$0x1] %vm333, 0.0
      %355 = vst.msk [vmem:[#allocation2 + $0x28] sm:$0x1] %vm333, 0.0
      %356 = vst.msk [vmem:[#allocation2 + $0x40] sm:$0x1] %vm333, 0.0
      %357 = vst.msk [vmem:[#allocation2 + $0x58] sm:$0x1] %vm333, 0.0
      %358 = vst.msk [vmem:[#allocation2 + $0x70] sm:$0x1] %vm333, 0.0
      %359 = vst.msk [vmem:[#allocation2 + $0x88] sm:$0x1] %vm333, 0.0
      %360 = vst.msk [vmem:[#allocation2 + $0xa0] sm:$0x1] %vm333, 0.0
      %361 = vst.msk [vmem:[#allocation2 + $0xb8] sm:$0x1] %vm333, 0.0
      %362 = vst.msk [vmem:[#allocation2 + $0xd0] sm:$0x1] %vm333, 0.0
      %363 = vst.msk [vmem:[#allocation2 + $0xe8] sm:$0x1] %vm333, 0.0
      %364 = vst.msk [vmem:[#allocation2 + $0x100] sm:$0x1] %vm333, 0.0
      %365 = vst.msk [vmem:[#allocation2 + $0x118] sm:$0x1] %vm333, 0.0
      %366 = vst.msk [vmem:[#allocation2 + $0x130] sm:$0x1] %vm333, 0.0
      %367 = vst.msk [vmem:[#allocation2 + $0x148] sm:$0x1] %vm333, 0.0
      %368 = vst.msk [vmem:[#allocation2 + $0x160] sm:$0x1] %vm333, 0.0
      %369 = vst.msk [vmem:[#allocation2 + $0x178] sm:$0x1] %vm333, 0.0
      %370 = vst.msk [vmem:[#allocation2 + $0x190] sm:$0x1] %vm333, 0.0
      %371 = vst.msk [vmem:[#allocation2 + $0x1a8] sm:$0x1] %vm333, 0.0
      %372 = vst.msk [vmem:[#allocation2 + $0x1c0] sm:$0x1] %vm333, 0.0
      %373 = vst.msk [vmem:[#allocation2 + $0x1d8] sm:$0x1] %vm333, 0.0
      %s374 = scalar_lea.vmem [#allocation2], 24
      %375 = vst.msk [vmem:[%s374 + $0x8] sm:$0xff] %vm322, %v306
      %376 = vst.msk [vmem:[%s374 + $0x20] sm:$0xff] %vm322, %v307
      %377 = vst.msk [vmem:[%s374 + $0x38] sm:$0xff] %vm322, %v308
      %378 = vst.msk [vmem:[%s374 + $0x50] sm:$0xff] %vm322, %v309
      %379 = vst.msk [vmem:[%s374 + $0x68] sm:$0xff] %vm322, %v310
      %380 = vst.msk [vmem:[%s374 + $0x80] sm:$0xff] %vm322, %v311
      %381 = vst.msk [vmem:[%s374 + $0x98] sm:$0xff] %vm322, %v312
      %382 = vst.msk [vmem:[%s374 + $0xb0] sm:$0xff] %vm322, %v313
      %383 = vst.msk [vmem:[%s374 + $0xf8] sm:$0xff] %vm322, %v314
      %384 = vst.msk [vmem:[%s374 + $0x110] sm:$0xff] %vm322, %v315
      %385 = vst.msk [vmem:[%s374 + $0x128] sm:$0xff] %vm322, %v316
      %386 = vst.msk [vmem:[%s374 + $0x140] sm:$0xff] %vm322, %v317
      %387 = vst.msk [vmem:[%s374 + $0x158] sm:$0xff] %vm322, %v318
      %388 = vst.msk [vmem:[%s374 + $0x170] sm:$0xff] %vm322, %v319
      %389 = vst.msk [vmem:[%s374 + $0x188] sm:$0xff] %vm322, %v320
      %390 = vst.msk [vmem:[%s374 + $0x1a0] sm:$0xff] %vm322, %v321
      %v391 = vld [vmem:[#allocation2 + $0x7] sm:$0xff]
      %v392 = vld [vmem:[#allocation2 + $0x1f] sm:$0xff]
      %v393 = vld [vmem:[#allocation2 + $0x37] sm:$0xff]
      %v394 = vld [vmem:[#allocation2 + $0x4f] sm:$0xff]
      %v395 = vld [vmem:[#allocation2 + $0x67] sm:$0xff]
      %v396 = vld [vmem:[#allocation2 + $0x7f] sm:$0xff]
      %v397 = vld [vmem:[#allocation2 + $0x97] sm:$0xff]
      %v398 = vld [vmem:[#allocation2 + $0xaf] sm:$0xff]
      %v399 = vld [vmem:[#allocation2 + $0xf7] sm:$0xff]
      %v400 = vld [vmem:[#allocation2 + $0x10f] sm:$0xff]
      %v401 = vld [vmem:[#allocation2 + $0x127] sm:$0xff]
      %v402 = vld [vmem:[#allocation2 + $0x13f] sm:$0xff]
      %v403 = vld [vmem:[#allocation2 + $0x157] sm:$0xff]
      %v404 = vld [vmem:[#allocation2 + $0x16f] sm:$0xff]
      %v405 = vld [vmem:[#allocation2 + $0x187] sm:$0xff]
      %v406 = vld [vmem:[#allocation2 + $0x19f] sm:$0xff]
      %v407 = vld [vmem:[%s3] sm:$0xff]
      %v408 = vld [vmem:[%s3 + $0x8] sm:$0xff]
      %v409 = vld [vmem:[#allocation2 + $0x8] sm:$0xff]
      %v410 = vld [vmem:[#allocation2 + $0x20] sm:$0xff]
      %v411 = vld [vmem:[#allocation2 + $0x38] sm:$0xff]
      %v412 = vld [vmem:[#allocation2 + $0x50] sm:$0xff]
      %v413 = vld [vmem:[#allocation2 + $0x68] sm:$0xff]
      %v414 = vld [vmem:[#allocation2 + $0x80] sm:$0xff]
      %v415 = vld [vmem:[#allocation2 + $0x98] sm:$0xff]
      %v416 = vld [vmem:[#allocation2 + $0xb0] sm:$0xff]
      %v417 = vld [vmem:[#allocation2 + $0xf8] sm:$0xff]
      %v418 = vld [vmem:[#allocation2 + $0x110] sm:$0xff]
      %v419 = vld [vmem:[#allocation2 + $0x128] sm:$0xff]
      %v420 = vld [vmem:[#allocation2 + $0x140] sm:$0xff]
      %v421 = vld [vmem:[#allocation2 + $0x158] sm:$0xff]
      %v422 = vld [vmem:[#allocation2 + $0x170] sm:$0xff]
      %v423 = vld [vmem:[#allocation2 + $0x188] sm:$0xff]
      %v424 = vld [vmem:[#allocation2 + $0x1a0] sm:$0xff]
      %s425 = scalar_lea.vmem %s3, 16
      %v426 = vld [vmem:[%s425] sm:$0xff]
      %v427 = vld [vmem:[%s425 + $0x8] sm:$0xff]
      %v429 = vsel %vm322, %v409, 0
      %v432 = vsel %vm322, %v410, 0
      %v435 = vsel %vm322, %v411, 0
      %v438 = vsel %vm322, %v412, 0
      %v441 = vsel %vm322, %v413, 0
      %v444 = vsel %vm322, %v414, 0
      %v447 = vsel %vm322, %v415, 0
      %v450 = vsel %vm322, %v416, 0
      %v453 = vsel %vm322, %v417, 0
      %v456 = vsel %vm322, %v418, 0
      %v459 = vsel %vm322, %v419, 0
      %v462 = vsel %vm322, %v420, 0
      %v465 = vsel %vm322, %v421, 0
      %v468 = vsel %vm322, %v422, 0
      %v471 = vsel %vm322, %v423, 0
      %v474 = vsel %vm322, %v424, 0
      %476 = vmatprep.subr.mxu0 0.0
      %477 = vmatpush1.msra.mxu0 %v426
      %478 = vmatprep.subr.mxu0 0.0
      %479 = vmatpush1.msra.mxu0 %v427
      %480 = vmatprep.subr.mxu0 0.0
      %481 = vmatpush1.msra.mxu0 0.0
      %482 = vmatprep.subr.mxu0 0.0
      %483 = vmatpush1.msra.mxu0 0.0
      %484 = vmatprep.subr.mxu0 0.0
      %485 = vmatpush1.msra.mxu0 0.0
      %486 = vmatprep.subr.mxu0 0.0
      %487 = vmatpush1.msra.mxu0 0.0
      %488 = vmatprep.subr.mxu0 0.0
      %489 = vmatpush1.msra.mxu0 0.0
      %490 = vmatprep.subr.mxu0 0.0
      %491 = vmatpush1.msra.mxu0 0.0
      %492 = vmatprep.subr.mxu0 0.0
      %493 = vmatpush1.msra.mxu0 0.0
      %494 = vmatprep.subr.mxu0 0.0
      %495 = vmatpush1.msra.mxu0 0.0
      %496 = vmatprep.subr.mxu0 0.0
      %497 = vmatpush1.msra.mxu0 0.0
      %498 = vmatprep.subr.mxu0 0.0
      %499 = vmatpush1.msra.mxu0 0.0
      %500 = vmatprep.subr.mxu0 0.0
      %501 = vmatpush1.msra.mxu0 0.0
      %502 = vmatprep.subr.mxu0 0.0
      %503 = vmatpush1.msra.mxu0 0.0
      %504 = vmatprep.subr.mxu0 0.0
      %505 = vmatpush1.msra.mxu0 0.0
      %506 = vmatprep.subr.mxu0 0.0
      %507 = vmatpush1.msra.mxu0 0.0
      %508 = vmatprep.subr.mxu0 0.0
      %509 = vmatpush1.msra.mxu0 0.0
      %510 = vmatprep.subr.mxu0 0.0
      %511 = vmatpush1.msra.mxu0 0.0
      %512 = vmatprep.subr.mxu0 0.0
      %513 = vmatpush1.msra.mxu0 0.0
      %514 = vmatprep.subr.mxu0 0.0
      %515 = vmatpush1.msra.mxu0 0.0
      %516 = vmatprep.subr.mxu0 0.0
      %517 = vmatpush1.msra.mxu0 0.0
      %518 = vmatprep.subr.mxu0 0.0
      %519 = vmatpush1.msra.mxu0 0.0
      %520 = vmatprep.subr.mxu0 0.0
      %521 = vmatpush1.msra.mxu0 0.0
      %522 = vmatprep.subr.mxu0 0.0
      %523 = vmatpush1.msra.mxu0 0.0
      %524 = vmatprep.subr.mxu0 0.0
      %525 = vmatpush1.msra.mxu0 0.0
      %526 = vmatprep.subr.mxu0 0.0
      %527 = vmatpush1.msra.mxu0 0.0
      %528 = vmatprep.subr.mxu0 0.0
      %529 = vmatpush1.msra.mxu0 0.0
      %530 = vmatprep.subr.mxu0 0.0
      %531 = vmatpush1.msra.mxu0 0.0
      %532 = vmatprep.subr.mxu0 0.0
      %533 = vmatpush1.msra.mxu0 0.0
      %534 = vmatprep.subr.mxu0 0.0
      %535 = vmatpush1.msra.mxu0 0.0
      %536 = vmatprep.subr.mxu0 0.0
      %537 = vmatpush1.msra.mxu0 0.0
      %538 = vmatprep.subr.mxu0 0.0
      %539 = vmatpush1.msra.mxu0 0.0
      %540 = vmatprep.mubr.f32.mxu0 0.0
      %541 = vmatmul.mubr.f32.gmra.mrb[0].mxu0 %v429
      %v542 = vpop.f32.mrb[0].mxu0
      %v543 = vadd.f32 0.0, %v542
      %v544 = vpop.f32.mrb[0].mxu0
      %545 = vmatprep.mubr.f32.mxu0 0.0
      %546 = vmatmul.mubr.f32.gmra.mrb[0].mxu0 %v432
      %v547 = vpop.f32.mrb[0].mxu0
      %v548 = vadd.f32 0.0, %v547
      %v549 = vpop.f32.mrb[0].mxu0
      %550 = vmatprep.mubr.f32.mxu0 0.0
      %551 = vmatmul.mubr.f32.gmra.mrb[0].mxu0 %v435
      %v552 = vpop.f32.mrb[0].mxu0
      %v553 = vadd.f32 0.0, %v552
      %v554 = vpop.f32.mrb[0].mxu0
      %555 = vmatprep.mubr.f32.mxu0 0.0
      %556 = vmatmul.mubr.f32.gmra.mrb[0].mxu0 %v438
      %v557 = vpop.f32.mrb[0].mxu0
      %v558 = vadd.f32 0.0, %v557
      %v559 = vpop.f32.mrb[0].mxu0
      %560 = vmatprep.mubr.f32.mxu0 0.0
      %561 = vmatmul.mubr.f32.gmra.mrb[0].mxu0 %v441
      %v562 = vpop.f32.mrb[0].mxu0
      %v563 = vadd.f32 0.0, %v562
      %v564 = vpop.f32.mrb[0].mxu0
      %565 = vmatprep.mubr.f32.mxu0 0.0
      %566 = vmatmul.mubr.f32.gmra.mrb[0].mxu0 %v444
      %v567 = vpop.f32.mrb[0].mxu0
      %v568 = vadd.f32 0.0, %v567
      %v569 = vpop.f32.mrb[0].mxu0
      %570 = vmatprep.mubr.f32.mxu0 0.0
      %571 = vmatmul.mubr.f32.gmra.mrb[0].mxu0 %v447
      %v572 = vpop.f32.mrb[0].mxu0
      %v573 = vadd.f32 0.0, %v572
      %v574 = vpop.f32.mrb[0].mxu0
      %575 = vmatprep.mubr.f32.mxu0 0.0
      %576 = vmatmul.mubr.f32.gmra.mrb[0].mxu0 %v450
      %v577 = vpop.f32.mrb[0].mxu0
      %v578 = vadd.f32 0.0, %v577
      %v579 = vpop.f32.mrb[0].mxu0
      %580 = vmatprep.mubr.f32.mxu0 0.0
      %581 = vmatmul.mubr.f32.gmra.mrb[0].mxu0 %v453
      %v582 = vpop.f32.mrb[0].mxu0
      %v583 = vadd.f32 0.0, %v582
      %v584 = vpop.f32.mrb[0].mxu0
      %585 = vmatprep.mubr.f32.mxu0 0.0
      %586 = vmatmul.mubr.f32.gmra.mrb[0].mxu0 %v456
      %v587 = vpop.f32.mrb[0].mxu0
      %v588 = vadd.f32 0.0, %v587
      %v589 = vpop.f32.mrb[0].mxu0
      %590 = vmatprep.mubr.f32.mxu0 0.0
      %591 = vmatmul.mubr.f32.gmra.mrb[0].mxu0 %v459
      %v592 = vpop.f32.mrb[0].mxu0
      %v593 = vadd.f32 0.0, %v592
      %v594 = vpop.f32.mrb[0].mxu0
      %595 = vmatprep.mubr.f32.mxu0 0.0
      %596 = vmatmul.mubr.f32.gmra.mrb[0].mxu0 %v462
      %v597 = vpop.f32.mrb[0].mxu0
      %v598 = vadd.f32 0.0, %v597
      %v599 = vpop.f32.mrb[0].mxu0
      %600 = vmatprep.mubr.f32.mxu0 0.0
      %601 = vmatmul.mubr.f32.gmra.mrb[0].mxu0 %v465
      %v602 = vpop.f32.mrb[0].mxu0
      %v603 = vadd.f32 0.0, %v602
      %v604 = vpop.f32.mrb[0].mxu0
      %605 = vmatprep.mubr.f32.mxu0 0.0
      %606 = vmatmul.mubr.f32.gmra.mrb[0].mxu0 %v468
      %v607 = vpop.f32.mrb[0].mxu0
      %v608 = vadd.f32 0.0, %v607
      %v609 = vpop.f32.mrb[0].mxu0
      %610 = vmatprep.mubr.f32.mxu0 0.0
      %611 = vmatmul.mubr.f32.gmra.mrb[0].mxu0 %v471
      %v612 = vpop.f32.mrb[0].mxu0
      %v613 = vadd.f32 0.0, %v612
      %v614 = vpop.f32.mrb[0].mxu0
      %615 = vmatprep.mubr.f32.mxu0 0.0
      %616 = vmatmul.mubr.f32.gmra.mrb[0].mxu0 %v474
      %v617 = vpop.f32.mrb[0].mxu0
      %v618 = vadd.f32 0.0, %v617
      %v619 = vpop.f32.mrb[0].mxu0
      %620 = vdwg.mxu0
      %v622 = vsel %vm322, %v391, 0
      %v625 = vsel %vm322, %v392, 0
      %v628 = vsel %vm322, %v393, 0
      %v631 = vsel %vm322, %v394, 0
      %v634 = vsel %vm322, %v395, 0
      %v637 = vsel %vm322, %v396, 0
      %v640 = vsel %vm322, %v397, 0
      %v643 = vsel %vm322, %v398, 0
      %v646 = vsel %vm322, %v399, 0
      %v649 = vsel %vm322, %v400, 0
      %v652 = vsel %vm322, %v401, 0
      %v655 = vsel %vm322, %v402, 0
      %v658 = vsel %vm322, %v403, 0
      %v661 = vsel %vm322, %v404, 0
      %v664 = vsel %vm322, %v405, 0
      %v667 = vsel %vm322, %v406, 0
      %669 = vmatprep.subr.mxu0 0.0
      %670 = vmatpush1.msra.mxu0 %v407
      %671 = vmatprep.subr.mxu0 0.0
      %672 = vmatpush1.msra.mxu0 %v408
      %673 = vmatprep.subr.mxu0 0.0
      %674 = vmatpush1.msra.mxu0 0.0
      %675 = vmatprep.subr.mxu0 0.0
      %676 = vmatpush1.msra.mxu0 0.0
      %677 = vmatprep.subr.mxu0 0.0
      %678 = vmatpush1.msra.mxu0 0.0
      %679 = vmatprep.subr.mxu0 0.0
      %680 = vmatpush1.msra.mxu0 0.0
      %681 = vmatprep.subr.mxu0 0.0
      %682 = vmatpush1.msra.mxu0 0.0
      %683 = vmatprep.subr.mxu0 0.0
      %684 = vmatpush1.msra.mxu0 0.0
      %685 = vmatprep.subr.mxu0 0.0
      %686 = vmatpush1.msra.mxu0 0.0
      %687 = vmatprep.subr.mxu0 0.0
      %688 = vmatpush1.msra.mxu0 0.0
      %689 = vmatprep.subr.mxu0 0.0
      %690 = vmatpush1.msra.mxu0 0.0
      %691 = vmatprep.subr.mxu0 0.0
      %692 = vmatpush1.msra.mxu0 0.0
      %693 = vmatprep.subr.mxu0 0.0
      %694 = vmatpush1.msra.mxu0 0.0
      %695 = vmatprep.subr.mxu0 0.0
      %696 = vmatpush1.msra.mxu0 0.0
      %697 = vmatprep.subr.mxu0 0.0
      %698 = vmatpush1.msra.mxu0 0.0
      %699 = vmatprep.subr.mxu0 0.0
      %700 = vmatpush1.msra.mxu0 0.0
      %701 = vmatprep.subr.mxu0 0.0
      %702 = vmatpush1.msra.mxu0 0.0
      %703 = vmatprep.subr.mxu0 0.0
      %704 = vmatpush1.msra.mxu0 0.0
      %705 = vmatprep.subr.mxu0 0.0
      %706 = vmatpush1.msra.mxu0 0.0
      %707 = vmatprep.subr.mxu0 0.0
      %708 = vmatpush1.msra.mxu0 0.0
      %709 = vmatprep.subr.mxu0 0.0
      %710 = vmatpush1.msra.mxu0 0.0
      %711 = vmatprep.subr.mxu0 0.0
      %712 = vmatpush1.msra.mxu0 0.0
      %713 = vmatprep.subr.mxu0 0.0
      %714 = vmatpush1.msra.mxu0 0.0
      %715 = vmatprep.subr.mxu0 0.0
      %716 = vmatpush1.msra.mxu0 0.0
      %717 = vmatprep.subr.mxu0 0.0
      %718 = vmatpush1.msra.mxu0 0.0
      %719 = vmatprep.subr.mxu0 0.0
      %720 = vmatpush1.msra.mxu0 0.0
      %721 = vmatprep.subr.mxu0 0.0
      %722 = vmatpush1.msra.mxu0 0.0
      %723 = vmatprep.subr.mxu0 0.0
      %724 = vmatpush1.msra.mxu0 0.0
      %725 = vmatprep.subr.mxu0 0.0
      %726 = vmatpush1.msra.mxu0 0.0
      %727 = vmatprep.subr.mxu0 0.0
      %728 = vmatpush1.msra.mxu0 0.0
      %729 = vmatprep.subr.mxu0 0.0
      %730 = vmatpush1.msra.mxu0 0.0
      %731 = vmatprep.subr.mxu0 0.0
      %732 = vmatpush1.msra.mxu0 0.0
      %733 = vmatprep.mubr.f32.mxu0 0.0
      %734 = vmatmul.mubr.f32.gmra.mrb[0].mxu0 %v622
      %v735 = vpop.f32.mrb[0].mxu0
      %v736 = vadd.f32 %v543, %v735
      %v737 = vpop.f32.mrb[0].mxu0
      %738 = vmatprep.mubr.f32.mxu0 0.0
      %739 = vmatmul.mubr.f32.gmra.mrb[0].mxu0 %v625
      %v740 = vpop.f32.mrb[0].mxu0
      %v741 = vadd.f32 %v548, %v740
      %v742 = vpop.f32.mrb[0].mxu0
      %743 = vmatprep.mubr.f32.mxu0 0.0
      %744 = vmatmul.mubr.f32.gmra.mrb[0].mxu0 %v628
      %v745 = vpop.f32.mrb[0].mxu0
      %v746 = vadd.f32 %v553, %v745
      %v747 = vpop.f32.mrb[0].mxu0
      %748 = vmatprep.mubr.f32.mxu0 0.0
      %749 = vmatmul.mubr.f32.gmra.mrb[0].mxu0 %v631
      %v750 = vpop.f32.mrb[0].mxu0
      %v751 = vadd.f32 %v558, %v750
      %v752 = vpop.f32.mrb[0].mxu0
      %753 = vmatprep.mubr.f32.mxu0 0.0
      %754 = vmatmul.mubr.f32.gmra.mrb[0].mxu0 %v634
      %v755 = vpop.f32.mrb[0].mxu0
      %v756 = vadd.f32 %v563, %v755
      %v757 = vpop.f32.mrb[0].mxu0
      %758 = vmatprep.mubr.f32.mxu0 0.0
      %759 = vmatmul.mubr.f32.gmra.mrb[0].mxu0 %v637
      %v760 = vpop.f32.mrb[0].mxu0
      %v761 = vadd.f32 %v568, %v760
      %v762 = vpop.f32.mrb[0].mxu0
      %763 = vmatprep.mubr.f32.mxu0 0.0
      %764 = vmatmul.mubr.f32.gmra.mrb[0].mxu0 %v640
      %v765 = vpop.f32.mrb[0].mxu0
      %v766 = vadd.f32 %v573, %v765
      %v767 = vpop.f32.mrb[0].mxu0
      %768 = vmatprep.mubr.f32.mxu0 0.0
      %769 = vmatmul.mubr.f32.gmra.mrb[0].mxu0 %v643
      %v770 = vpop.f32.mrb[0].mxu0
      %v771 = vadd.f32 %v578, %v770
      %v772 = vpop.f32.mrb[0].mxu0
      %773 = vmatprep.mubr.f32.mxu0 0.0
      %774 = vmatmul.mubr.f32.gmra.mrb[0].mxu0 %v646
      %v775 = vpop.f32.mrb[0].mxu0
      %v776 = vadd.f32 %v583, %v775
      %v777 = vpop.f32.mrb[0].mxu0
      %778 = vmatprep.mubr.f32.mxu0 0.0
      %779 = vmatmul.mubr.f32.gmra.mrb[0].mxu0 %v649
      %v780 = vpop.f32.mrb[0].mxu0
      %v781 = vadd.f32 %v588, %v780
      %v782 = vpop.f32.mrb[0].mxu0
      %783 = vmatprep.mubr.f32.mxu0 0.0
      %784 = vmatmul.mubr.f32.gmra.mrb[0].mxu0 %v652
      %v785 = vpop.f32.mrb[0].mxu0
      %v786 = vadd.f32 %v593, %v785
      %v787 = vpop.f32.mrb[0].mxu0
      %788 = vmatprep.mubr.f32.mxu0 0.0
      %789 = vmatmul.mubr.f32.gmra.mrb[0].mxu0 %v655
      %v790 = vpop.f32.mrb[0].mxu0
      %v791 = vadd.f32 %v598, %v790
      %v792 = vpop.f32.mrb[0].mxu0
      %793 = vmatprep.mubr.f32.mxu0 0.0
      %794 = vmatmul.mubr.f32.gmra.mrb[0].mxu0 %v658
      %v795 = vpop.f32.mrb[0].mxu0
      %v796 = vadd.f32 %v603, %v795
      %v797 = vpop.f32.mrb[0].mxu0
      %798 = vmatprep.mubr.f32.mxu0 0.0
      %799 = vmatmul.mubr.f32.gmra.mrb[0].mxu0 %v661
      %v800 = vpop.f32.mrb[0].mxu0
      %v801 = vadd.f32 %v608, %v800
      %v802 = vpop.f32.mrb[0].mxu0
      %803 = vmatprep.mubr.f32.mxu0 0.0
      %804 = vmatmul.mubr.f32.gmra.mrb[0].mxu0 %v664
      %v805 = vpop.f32.mrb[0].mxu0
      %v806 = vadd.f32 %v613, %v805
      %v807 = vpop.f32.mrb[0].mxu0
      %808 = vmatprep.mubr.f32.mxu0 0.0
      %809 = vmatmul.mubr.f32.gmra.mrb[0].mxu0 %v667
      %v810 = vpop.f32.mrb[0].mxu0
      %v811 = vadd.f32 %v618, %v810
      %v812 = vpop.f32.mrb[0].mxu0
      %813 = vdwg.mxu0
      %v814 = vld [vmem:[#allocation2 + $0x9] sm:$0xff]
      %v815 = vld [vmem:[#allocation2 + $0x21] sm:$0xff]
      %v816 = vld [vmem:[#allocation2 + $0x39] sm:$0xff]
      %v817 = vld [vmem:[#allocation2 + $0x51] sm:$0xff]
      %v818 = vld [vmem:[#allocation2 + $0x69] sm:$0xff]
      %v819 = vld [vmem:[#allocation2 + $0x81] sm:$0xff]
      %v820 = vld [vmem:[#allocation2 + $0x99] sm:$0xff]
      %v821 = vld [vmem:[#allocation2 + $0xb1] sm:$0xff]
      %v822 = vld [vmem:[#allocation2 + $0xf9] sm:$0xff]
      %v823 = vld [vmem:[#allocation2 + $0x111] sm:$0xff]
      %v824 = vld [vmem:[#allocation2 + $0x129] sm:$0xff]
      %v825 = vld [vmem:[#allocation2 + $0x141] sm:$0xff]
      %v826 = vld [vmem:[#allocation2 + $0x159] sm:$0xff]
      %v827 = vld [vmem:[#allocation2 + $0x171] sm:$0xff]
      %v828 = vld [vmem:[#allocation2 + $0x189] sm:$0xff]
      %v829 = vld [vmem:[#allocation2 + $0x1a1] sm:$0xff]
      %s830 = scalar_lea.vmem %s3, 32
      %v831 = vld [vmem:[%s830] sm:$0xff]
      %v832 = vld [vmem:[%s830 + $0x8] sm:$0xff]
      %v834 = vsel %vm322, %v814, 0
      %v837 = vsel %vm322, %v815, 0
      %v840 = vsel %vm322, %v816, 0
      %v843 = vsel %vm322, %v817, 0
      %v846 = vsel %vm322, %v818, 0
      %v849 = vsel %vm322, %v819, 0
      %v852 = vsel %vm322, %v820, 0
      %v855 = vsel %vm322, %v821, 0
      %v858 = vsel %vm322, %v822, 0
      %v861 = vsel %vm322, %v823, 0
      %v864 = vsel %vm322, %v824, 0
      %v867 = vsel %vm322, %v825, 0
      %v870 = vsel %vm322, %v826, 0
      %v873 = vsel %vm322, %v827, 0
      %v876 = vsel %vm322, %v828, 0
      %v879 = vsel %vm322, %v829, 0
      %881 = vmatprep.subr.mxu0 0.0
      %882 = vmatpush1.msra.mxu0 %v831
      %883 = vmatprep.subr.mxu0 0.0
      %884 = vmatpush1.msra.mxu0 %v832
      %885 = vmatprep.subr.mxu0 0.0
      %886 = vmatpush1.msra.mxu0 0.0
      %887 = vmatprep.subr.mxu0 0.0
      %888 = vmatpush1.msra.mxu0 0.0
      %889 = vmatprep.subr.mxu0 0.0
      %890 = vmatpush1.msra.mxu0 0.0
      %891 = vmatprep.subr.mxu0 0.0
      %892 = vmatpush1.msra.mxu0 0.0
      %893 = vmatprep.subr.mxu0 0.0
      %894 = vmatpush1.msra.mxu0 0.0
      %895 = vmatprep.subr.mxu0 0.0
      %896 = vmatpush1.msra.mxu0 0.0
      %897 = vmatprep.subr.mxu0 0.0
      %898 = vmatpush1.msra.mxu0 0.0
      %899 = vmatprep.subr.mxu0 0.0
      %900 = vmatpush1.msra.mxu0 0.0
      %901 = vmatprep.subr.mxu0 0.0
      %902 = vmatpush1.msra.mxu0 0.0
      %903 = vmatprep.subr.mxu0 0.0
      %904 = vmatpush1.msra.mxu0 0.0
      %905 = vmatprep.subr.mxu0 0.0
      %906 = vmatpush1.msra.mxu0 0.0
      %907 = vmatprep.subr.mxu0 0.0
      %908 = vmatpush1.msra.mxu0 0.0
      %909 = vmatprep.subr.mxu0 0.0
      %910 = vmatpush1.msra.mxu0 0.0
      %911 = vmatprep.subr.mxu0 0.0
      %912 = vmatpush1.msra.mxu0 0.0
      %913 = vmatprep.subr.mxu0 0.0
      %914 = vmatpush1.msra.mxu0 0.0
      %915 = vmatprep.subr.mxu0 0.0
      %916 = vmatpush1.msra.mxu0 0.0
      %917 = vmatprep.subr.mxu0 0.0
      %918 = vmatpush1.msra.mxu0 0.0
      %919 = vmatprep.subr.mxu0 0.0
      %920 = vmatpush1.msra.mxu0 0.0
      %921 = vmatprep.subr.mxu0 0.0
      %922 = vmatpush1.msra.mxu0 0.0
      %923 = vmatprep.subr.mxu0 0.0
      %924 = vmatpush1.msra.mxu0 0.0
      %925 = vmatprep.subr.mxu0 0.0
      %926 = vmatpush1.msra.mxu0 0.0
      %927 = vmatprep.subr.mxu0 0.0
      %928 = vmatpush1.msra.mxu0 0.0
      %929 = vmatprep.subr.mxu0 0.0
      %930 = vmatpush1.msra.mxu0 0.0
      %931 = vmatprep.subr.mxu0 0.0
      %932 = vmatpush1.msra.mxu0 0.0
      %933 = vmatprep.subr.mxu0 0.0
      %934 = vmatpush1.msra.mxu0 0.0
      %935 = vmatprep.subr.mxu0 0.0
      %936 = vmatpush1.msra.mxu0 0.0
      %937 = vmatprep.subr.mxu0 0.0
      %938 = vmatpush1.msra.mxu0 0.0
      %939 = vmatprep.subr.mxu0 0.0
      %940 = vmatpush1.msra.mxu0 0.0
      %941 = vmatprep.subr.mxu0 0.0
      %942 = vmatpush1.msra.mxu0 0.0
      %943 = vmatprep.subr.mxu0 0.0
      %944 = vmatpush1.msra.mxu0 0.0
      %945 = vmatprep.mubr.f32.mxu0 0.0
      %946 = vmatmul.mubr.f32.gmra.mrb[0].mxu0 %v834
      %v947 = vpop.f32.mrb[0].mxu0
      %v948 = vadd.f32 0.0, %v947
      %v949 = vpop.f32.mrb[0].mxu0
      %950 = vmatprep.mubr.f32.mxu0 0.0
      %951 = vmatmul.mubr.f32.gmra.mrb[0].mxu0 %v837
      %v952 = vpop.f32.mrb[0].mxu0
      %v953 = vadd.f32 0.0, %v952
      %v954 = vpop.f32.mrb[0].mxu0
      %955 = vmatprep.mubr.f32.mxu0 0.0
      %956 = vmatmul.mubr.f32.gmra.mrb[0].mxu0 %v840
      %v957 = vpop.f32.mrb[0].mxu0
      %v958 = vadd.f32 0.0, %v957
      %v959 = vpop.f32.mrb[0].mxu0
      %960 = vmatprep.mubr.f32.mxu0 0.0
      %961 = vmatmul.mubr.f32.gmra.mrb[0].mxu0 %v843
      %v962 = vpop.f32.mrb[0].mxu0
      %v963 = vadd.f32 0.0, %v962
      %v964 = vpop.f32.mrb[0].mxu0
      %965 = vmatprep.mubr.f32.mxu0 0.0
      %966 = vmatmul.mubr.f32.gmra.mrb[0].mxu0 %v846
      %v967 = vpop.f32.mrb[0].mxu0
      %v968 = vadd.f32 0.0, %v967
      %v969 = vpop.f32.mrb[0].mxu0
      %970 = vmatprep.mubr.f32.mxu0 0.0
      %971 = vmatmul.mubr.f32.gmra.mrb[0].mxu0 %v849
      %v972 = vpop.f32.mrb[0].mxu0
      %v973 = vadd.f32 0.0, %v972
      %v974 = vpop.f32.mrb[0].mxu0
      %975 = vmatprep.mubr.f32.mxu0 0.0
      %976 = vmatmul.mubr.f32.gmra.mrb[0].mxu0 %v852
      %v977 = vpop.f32.mrb[0].mxu0
      %v978 = vadd.f32 0.0, %v977
      %v979 = vpop.f32.mrb[0].mxu0
      %980 = vmatprep.mubr.f32.mxu0 0.0
      %981 = vmatmul.mubr.f32.gmra.mrb[0].mxu0 %v855
      %v982 = vpop.f32.mrb[0].mxu0
      %v983 = vadd.f32 0.0, %v982
      %v984 = vpop.f32.mrb[0].mxu0
      %985 = vmatprep.mubr.f32.mxu0 0.0
      %986 = vmatmul.mubr.f32.gmra.mrb[0].mxu0 %v858
      %v987 = vpop.f32.mrb[0].mxu0
      %v988 = vadd.f32 0.0, %v987
      %v989 = vpop.f32.mrb[0].mxu0
      %990 = vmatprep.mubr.f32.mxu0 0.0
      %991 = vmatmul.mubr.f32.gmra.mrb[0].mxu0 %v861
      %v992 = vpop.f32.mrb[0].mxu0
      %v993 = vadd.f32 0.0, %v992
      %v994 = vpop.f32.mrb[0].mxu0
      %995 = vmatprep.mubr.f32.mxu0 0.0
      %996 = vmatmul.mubr.f32.gmra.mrb[0].mxu0 %v864
      %v997 = vpop.f32.mrb[0].mxu0
      %v998 = vadd.f32 0.0, %v997
      %v999 = vpop.f32.mrb[0].mxu0
      %1000 = vmatprep.mubr.f32.mxu0 0.0
      %1001 = vmatmul.mubr.f32.gmra.mrb[0].mxu0 %v867
      %v1002 = vpop.f32.mrb[0].mxu0
      %v1003 = vadd.f32 0.0, %v1002
      %v1004 = vpop.f32.mrb[0].mxu0
      %1005 = vmatprep.mubr.f32.mxu0 0.0
      %1006 = vmatmul.mubr.f32.gmra.mrb[0].mxu0 %v870
      %v1007 = vpop.f32.mrb[0].mxu0
      %v1008 = vadd.f32 0.0, %v1007
      %v1009 = vpop.f32.mrb[0].mxu0
      %1010 = vmatprep.mubr.f32.mxu0 0.0
      %1011 = vmatmul.mubr.f32.gmra.mrb[0].mxu0 %v873
      %v1012 = vpop.f32.mrb[0].mxu0
      %v1013 = vadd.f32 0.0, %v1012
      %v1014 = vpop.f32.mrb[0].mxu0
      %1015 = vmatprep.mubr.f32.mxu0 0.0
      %1016 = vmatmul.mubr.f32.gmra.mrb[0].mxu0 %v876
      %v1017 = vpop.f32.mrb[0].mxu0
      %v1018 = vadd.f32 0.0, %v1017
      %v1019 = vpop.f32.mrb[0].mxu0
      %1020 = vmatprep.mubr.f32.mxu0 0.0
      %1021 = vmatmul.mubr.f32.gmra.mrb[0].mxu0 %v879
      %v1022 = vpop.f32.mrb[0].mxu0
      %v1023 = vadd.f32 0.0, %v1022
      %v1024 = vpop.f32.mrb[0].mxu0
      %1025 = vdwg.mxu0
      %v1026 = vadd.f32 %v736, %v948
      %v1027 = vadd.f32 %v741, %v953
      %v1028 = vadd.f32 %v746, %v958
      %v1029 = vadd.f32 %v751, %v963
      %v1030 = vadd.f32 %v756, %v968
      %v1031 = vadd.f32 %v761, %v973
      %v1032 = vadd.f32 %v766, %v978
      %v1033 = vadd.f32 %v771, %v983
      %v1034 = vadd.f32 %v776, %v988
      %v1035 = vadd.f32 %v781, %v993
      %v1036 = vadd.f32 %v786, %v998
      %v1037 = vadd.f32 %v791, %v1003
      %v1038 = vadd.f32 %v796, %v1008
      %v1039 = vadd.f32 %v801, %v1013
      %v1040 = vadd.f32 %v806, %v1018
      %v1041 = vadd.f32 %v811, %v1023
      %v1042 = vld [vmem:[%s374 + $0x7] sm:$0xff]
      %v1043 = vld [vmem:[%s374 + $0x1f] sm:$0xff]
      %v1044 = vld [vmem:[%s374 + $0x37] sm:$0xff]
      %v1045 = vld [vmem:[%s374 + $0x4f] sm:$0xff]
      %v1046 = vld [vmem:[%s374 + $0x67] sm:$0xff]
      %v1047 = vld [vmem:[%s374 + $0x7f] sm:$0xff]
      %v1048 = vld [vmem:[%s374 + $0x97] sm:$0xff]
      %v1049 = vld [vmem:[%s374 + $0xaf] sm:$0xff]
      %v1050 = vld [vmem:[%s374 + $0xf7] sm:$0xff]
      %v1051 = vld [vmem:[%s374 + $0x10f] sm:$0xff]
      %v1052 = vld [vmem:[%s374 + $0x127] sm:$0xff]
      %v1053 = vld [vmem:[%s374 + $0x13f] sm:$0xff]
      %v1054 = vld [vmem:[%s374 + $0x157] sm:$0xff]
      %v1055 = vld [vmem:[%s374 + $0x16f] sm:$0xff]
      %v1056 = vld [vmem:[%s374 + $0x187] sm:$0xff]
      %v1057 = vld [vmem:[%s374 + $0x19f] sm:$0xff]
      %s1058 = scalar_lea.vmem %s3, 48
      %v1059 = vld [vmem:[%s1058] sm:$0xff]
      %v1060 = vld [vmem:[%s1058 + $0x8] sm:$0xff]
      %v1062 = vsel %vm322, %v1042, 0
      %v1065 = vsel %vm322, %v1043, 0
      %v1068 = vsel %vm322, %v1044, 0
      %v1071 = vsel %vm322, %v1045, 0
      %v1074 = vsel %vm322, %v1046, 0
      %v1077 = vsel %vm322, %v1047, 0
      %v1080 = vsel %vm322, %v1048, 0
      %v1083 = vsel %vm322, %v1049, 0
      %v1086 = vsel %vm322, %v1050, 0
      %v1089 = vsel %vm322, %v1051, 0
      %v1092 = vsel %vm322, %v1052, 0
      %v1095 = vsel %vm322, %v1053, 0
      %v1098 = vsel %vm322, %v1054, 0
      %v1101 = vsel %vm322, %v1055, 0
      %v1104 = vsel %vm322, %v1056, 0
      %v1107 = vsel %vm322, %v1057, 0
      %1109 = vmatprep.subr.mxu0 0.0
      %1110 = vmatpush1.msra.mxu0 %v1059
      %1111 = vmatprep.subr.mxu0 0.0
      %1112 = vmatpush1.msra.mxu0 %v1060
      %1113 = vmatprep.subr.mxu0 0.0
      %1114 = vmatpush1.msra.mxu0 0.0
      %1115 = vmatprep.subr.mxu0 0.0
      %1116 = vmatpush1.msra.mxu0 0.0
      %1117 = vmatprep.subr.mxu0 0.0
      %1118 = vmatpush1.msra.mxu0 0.0
      %1119 = vmatprep.subr.mxu0 0.0
      %1120 = vmatpush1.msra.mxu0 0.0
      %1121 = vmatprep.subr.mxu0 0.0
      %1122 = vmatpush1.msra.mxu0 0.0
      %1123 = vmatprep.subr.mxu0 0.0
      %1124 = vmatpush1.msra.mxu0 0.0
      %1125 = vmatprep.subr.mxu0 0.0
      %1126 = vmatpush1.msra.mxu0 0.0
      %1127 = vmatprep.subr.mxu0 0.0
      %1128 = vmatpush1.msra.mxu0 0.0
      %1129 = vmatprep.subr.mxu0 0.0
      %1130 = vmatpush1.msra.mxu0 0.0
      %1131 = vmatprep.subr.mxu0 0.0
      %1132 = vmatpush1.msra.mxu0 0.0
      %1133 = vmatprep.subr.mxu0 0.0
      %1134 = vmatpush1.msra.mxu0 0.0
      %1135 = vmatprep.subr.mxu0 0.0
      %1136 = vmatpush1.msra.mxu0 0.0
      %1137 = vmatprep.subr.mxu0 0.0
      %1138 = vmatpush1.msra.mxu0 0.0
      %1139 = vmatprep.subr.mxu0 0.0
      %1140 = vmatpush1.msra.mxu0 0.0
      %1141 = vmatprep.subr.mxu0 0.0
      %1142 = vmatpush1.msra.mxu0 0.0
      %1143 = vmatprep.subr.mxu0 0.0
      %1144 = vmatpush1.msra.mxu0 0.0
      %1145 = vmatprep.subr.mxu0 0.0
      %1146 = vmatpush1.msra.mxu0 0.0
      %1147 = vmatprep.subr.mxu0 0.0
      %1148 = vmatpush1.msra.mxu0 0.0
      %1149 = vmatprep.subr.mxu0 0.0
      %1150 = vmatpush1.msra.mxu0 0.0
      %1151 = vmatprep.subr.mxu0 0.0
      %1152 = vmatpush1.msra.mxu0 0.0
      %1153 = vmatprep.subr.mxu0 0.0
      %1154 = vmatpush1.msra.mxu0 0.0
      %1155 = vmatprep.subr.mxu0 0.0
      %1156 = vmatpush1.msra.mxu0 0.0
      %1157 = vmatprep.subr.mxu0 0.0
      %1158 = vmatpush1.msra.mxu0 0.0
      %1159 = vmatprep.subr.mxu0 0.0
      %1160 = vmatpush1.msra.mxu0 0.0
      %1161 = vmatprep.subr.mxu0 0.0
      %1162 = vmatpush1.msra.mxu0 0.0
      %1163 = vmatprep.subr.mxu0 0.0
      %1164 = vmatpush1.msra.mxu0 0.0
      %1165 = vmatprep.subr.mxu0 0.0
      %1166 = vmatpush1.msra.mxu0 0.0
      %1167 = vmatprep.subr.mxu0 0.0
      %1168 = vmatpush1.msra.mxu0 0.0
      %1169 = vmatprep.subr.mxu0 0.0
      %1170 = vmatpush1.msra.mxu0 0.0
      %1171 = vmatprep.subr.mxu0 0.0
      %1172 = vmatpush1.msra.mxu0 0.0
      %1173 = vmatprep.mubr.f32.mxu0 0.0
      %1174 = vmatmul.mubr.f32.gmra.mrb[0].mxu0 %v1062
      %v1175 = vpop.f32.mrb[0].mxu0
      %v1176 = vadd.f32 0.0, %v1175
      %v1177 = vpop.f32.mrb[0].mxu0
      %1178 = vmatprep.mubr.f32.mxu0 0.0
      %1179 = vmatmul.mubr.f32.gmra.mrb[0].mxu0 %v1065
      %v1180 = vpop.f32.mrb[0].mxu0
      %v1181 = vadd.f32 0.0, %v1180
      %v1182 = vpop.f32.mrb[0].mxu0
      %1183 = vmatprep.mubr.f32.mxu0 0.0
      %1184 = vmatmul.mubr.f32.gmra.mrb[0].mxu0 %v1068
      %v1185 = vpop.f32.mrb[0].mxu0
      %v1186 = vadd.f32 0.0, %v1185
      %v1187 = vpop.f32.mrb[0].mxu0
      %1188 = vmatprep.mubr.f32.mxu0 0.0
      %1189 = vmatmul.mubr.f32.gmra.mrb[0].mxu0 %v1071
      %v1190 = vpop.f32.mrb[0].mxu0
      %v1191 = vadd.f32 0.0, %v1190
      %v1192 = vpop.f32.mrb[0].mxu0
      %1193 = vmatprep.mubr.f32.mxu0 0.0
      %1194 = vmatmul.mubr.f32.gmra.mrb[0].mxu0 %v1074
      %v1195 = vpop.f32.mrb[0].mxu0
      %v1196 = vadd.f32 0.0, %v1195
      %v1197 = vpop.f32.mrb[0].mxu0
      %1198 = vmatprep.mubr.f32.mxu0 0.0
      %1199 = vmatmul.mubr.f32.gmra.mrb[0].mxu0 %v1077
      %v1200 = vpop.f32.mrb[0].mxu0
      %v1201 = vadd.f32 0.0, %v1200
      %v1202 = vpop.f32.mrb[0].mxu0
      %1203 = vmatprep.mubr.f32.mxu0 0.0
      %1204 = vmatmul.mubr.f32.gmra.mrb[0].mxu0 %v1080
      %v1205 = vpop.f32.mrb[0].mxu0
      %v1206 = vadd.f32 0.0, %v1205
      %v1207 = vpop.f32.mrb[0].mxu0
      %1208 = vmatprep.mubr.f32.mxu0 0.0
      %1209 = vmatmul.mubr.f32.gmra.mrb[0].mxu0 %v1083
      %v1210 = vpop.f32.mrb[0].mxu0
      %v1211 = vadd.f32 0.0, %v1210
      %v1212 = vpop.f32.mrb[0].mxu0
      %1213 = vmatprep.mubr.f32.mxu0 0.0
      %1214 = vmatmul.mubr.f32.gmra.mrb[0].mxu0 %v1086
      %v1215 = vpop.f32.mrb[0].mxu0
      %v1216 = vadd.f32 0.0, %v1215
      %v1217 = vpop.f32.mrb[0].mxu0
      %1218 = vmatprep.mubr.f32.mxu0 0.0
      %1219 = vmatmul.mubr.f32.gmra.mrb[0].mxu0 %v1089
      %v1220 = vpop.f32.mrb[0].mxu0
      %v1221 = vadd.f32 0.0, %v1220
      %v1222 = vpop.f32.mrb[0].mxu0
      %1223 = vmatprep.mubr.f32.mxu0 0.0
      %1224 = vmatmul.mubr.f32.gmra.mrb[0].mxu0 %v1092
      %v1225 = vpop.f32.mrb[0].mxu0
      %v1226 = vadd.f32 0.0, %v1225
      %v1227 = vpop.f32.mrb[0].mxu0
      %1228 = vmatprep.mubr.f32.mxu0 0.0
      %1229 = vmatmul.mubr.f32.gmra.mrb[0].mxu0 %v1095
      %v1230 = vpop.f32.mrb[0].mxu0
      %v1231 = vadd.f32 0.0, %v1230
      %v1232 = vpop.f32.mrb[0].mxu0
      %1233 = vmatprep.mubr.f32.mxu0 0.0
      %1234 = vmatmul.mubr.f32.gmra.mrb[0].mxu0 %v1098
      %v1235 = vpop.f32.mrb[0].mxu0
      %v1236 = vadd.f32 0.0, %v1235
      %v1237 = vpop.f32.mrb[0].mxu0
      %1238 = vmatprep.mubr.f32.mxu0 0.0
      %1239 = vmatmul.mubr.f32.gmra.mrb[0].mxu0 %v1101
      %v1240 = vpop.f32.mrb[0].mxu0
      %v1241 = vadd.f32 0.0, %v1240
      %v1242 = vpop.f32.mrb[0].mxu0
      %1243 = vmatprep.mubr.f32.mxu0 0.0
      %1244 = vmatmul.mubr.f32.gmra.mrb[0].mxu0 %v1104
      %v1245 = vpop.f32.mrb[0].mxu0
      %v1246 = vadd.f32 0.0, %v1245
      %v1247 = vpop.f32.mrb[0].mxu0
      %1248 = vmatprep.mubr.f32.mxu0 0.0
      %1249 = vmatmul.mubr.f32.gmra.mrb[0].mxu0 %v1107
      %v1250 = vpop.f32.mrb[0].mxu0
      %v1251 = vadd.f32 0.0, %v1250
      %v1252 = vpop.f32.mrb[0].mxu0
      %1253 = vdwg.mxu0
      %v1254 = vadd.f32 %v1026, %v1176
      %v1255 = vadd.f32 %v1027, %v1181
      %v1256 = vadd.f32 %v1028, %v1186
      %v1257 = vadd.f32 %v1029, %v1191
      %v1258 = vadd.f32 %v1030, %v1196
      %v1259 = vadd.f32 %v1031, %v1201
      %v1260 = vadd.f32 %v1032, %v1206
      %v1261 = vadd.f32 %v1033, %v1211
      %v1262 = vadd.f32 %v1034, %v1216
      %v1263 = vadd.f32 %v1035, %v1221
      %v1264 = vadd.f32 %v1036, %v1226
      %v1265 = vadd.f32 %v1037, %v1231
      %v1266 = vadd.f32 %v1038, %v1236
      %v1267 = vadd.f32 %v1039, %v1241
      %v1268 = vadd.f32 %v1040, %v1246
      %v1269 = vadd.f32 %v1041, %v1251
      %v1270 = vld [vmem:[%s374 + $0x8] sm:$0xff]
      %v1271 = vld [vmem:[%s374 + $0x20] sm:$0xff]
      %v1272 = vld [vmem:[%s374 + $0x38] sm:$0xff]
      %v1273 = vld [vmem:[%s374 + $0x50] sm:$0xff]
      %v1274 = vld [vmem:[%s374 + $0x68] sm:$0xff]
      %v1275 = vld [vmem:[%s374 + $0x80] sm:$0xff]
      %v1276 = vld [vmem:[%s374 + $0x98] sm:$0xff]
      %v1277 = vld [vmem:[%s374 + $0xb0] sm:$0xff]
      %v1278 = vld [vmem:[%s374 + $0xf8] sm:$0xff]
      %v1279 = vld [vmem:[%s374 + $0x110] sm:$0xff]
      %v1280 = vld [vmem:[%s374 + $0x128] sm:$0xff]
      %v1281 = vld [vmem:[%s374 + $0x140] sm:$0xff]
      %v1282 = vld [vmem:[%s374 + $0x158] sm:$0xff]
      %v1283 = vld [vmem:[%s374 + $0x170] sm:$0xff]
      %v1284 = vld [vmem:[%s374 + $0x188] sm:$0xff]
      %v1285 = vld [vmem:[%s374 + $0x1a0] sm:$0xff]
      %s1286 = scalar_lea.vmem %s3, 64
      %v1287 = vld [vmem:[%s1286] sm:$0xff]
      %v1288 = vld [vmem:[%s1286 + $0x8] sm:$0xff]
      %v1290 = vsel %vm322, %v1270, 0
      %v1293 = vsel %vm322, %v1271, 0
      %v1296 = vsel %vm322, %v1272, 0
      %v1299 = vsel %vm322, %v1273, 0
      %v1302 = vsel %vm322, %v1274, 0
      %v1305 = vsel %vm322, %v1275, 0
      %v1308 = vsel %vm322, %v1276, 0
      %v1311 = vsel %vm322, %v1277, 0
      %v1314 = vsel %vm322, %v1278, 0
      %v1317 = vsel %vm322, %v1279, 0
      %v1320 = vsel %vm322, %v1280, 0
      %v1323 = vsel %vm322, %v1281, 0
      %v1326 = vsel %vm322, %v1282, 0
      %v1329 = vsel %vm322, %v1283, 0
      %v1332 = vsel %vm322, %v1284, 0
      %v1335 = vsel %vm322, %v1285, 0
      %1337 = vmatprep.subr.mxu0 0.0
      %1338 = vmatpush1.msra.mxu0 %v1287
      %1339 = vmatprep.subr.mxu0 0.0
      %1340 = vmatpush1.msra.mxu0 %v1288
      %1341 = vmatprep.subr.mxu0 0.0
      %1342 = vmatpush1.msra.mxu0 0.0
      %1343 = vmatprep.subr.mxu0 0.0
      %1344 = vmatpush1.msra.mxu0 0.0
      %1345 = vmatprep.subr.mxu0 0.0
      %1346 = vmatpush1.msra.mxu0 0.0
      %1347 = vmatprep.subr.mxu0 0.0
      %1348 = vmatpush1.msra.mxu0 0.0
      %1349 = vmatprep.subr.mxu0 0.0
      %1350 = vmatpush1.msra.mxu0 0.0
      %1351 = vmatprep.subr.mxu0 0.0
      %1352 = vmatpush1.msra.mxu0 0.0
      %1353 = vmatprep.subr.mxu0 0.0
      %1354 = vmatpush1.msra.mxu0 0.0
      %1355 = vmatprep.subr.mxu0 0.0
      %1356 = vmatpush1.msra.mxu0 0.0
      %1357 = vmatprep.subr.mxu0 0.0
      %1358 = vmatpush1.msra.mxu0 0.0
      %1359 = vmatprep.subr.mxu0 0.0
      %1360 = vmatpush1.msra.mxu0 0.0
      %1361 = vmatprep.subr.mxu0 0.0
      %1362 = vmatpush1.msra.mxu0 0.0
      %1363 = vmatprep.subr.mxu0 0.0
      %1364 = vmatpush1.msra.mxu0 0.0
      %1365 = vmatprep.subr.mxu0 0.0
      %1366 = vmatpush1.msra.mxu0 0.0
      %1367 = vmatprep.subr.mxu0 0.0
      %1368 = vmatpush1.msra.mxu0 0.0
      %1369 = vmatprep.subr.mxu0 0.0
      %1370 = vmatpush1.msra.mxu0 0.0
      %1371 = vmatprep.subr.mxu0 0.0
      %1372 = vmatpush1.msra.mxu0 0.0
      %1373 = vmatprep.subr.mxu0 0.0
      %1374 = vmatpush1.msra.mxu0 0.0
      %1375 = vmatprep.subr.mxu0 0.0
      %1376 = vmatpush1.msra.mxu0 0.0
      %1377 = vmatprep.subr.mxu0 0.0
      %1378 = vmatpush1.msra.mxu0 0.0
      %1379 = vmatprep.subr.mxu0 0.0
      %1380 = vmatpush1.msra.mxu0 0.0
      %1381 = vmatprep.subr.mxu0 0.0
      %1382 = vmatpush1.msra.mxu0 0.0
      %1383 = vmatprep.subr.mxu0 0.0
      %1384 = vmatpush1.msra.mxu0 0.0
      %1385 = vmatprep.subr.mxu0 0.0
      %1386 = vmatpush1.msra.mxu0 0.0
      %1387 = vmatprep.subr.mxu0 0.0
      %1388 = vmatpush1.msra.mxu0 0.0
      %1389 = vmatprep.subr.mxu0 0.0
      %1390 = vmatpush1.msra.mxu0 0.0
      %1391 = vmatprep.subr.mxu0 0.0
      %1392 = vmatpush1.msra.mxu0 0.0
      %1393 = vmatprep.subr.mxu0 0.0
      %1394 = vmatpush1.msra.mxu0 0.0
      %1395 = vmatprep.subr.mxu0 0.0
      %1396 = vmatpush1.msra.mxu0 0.0
      %1397 = vmatprep.subr.mxu0 0.0
      %1398 = vmatpush1.msra.mxu0 0.0
      %1399 = vmatprep.subr.mxu0 0.0
      %1400 = vmatpush1.msra.mxu0 0.0
      %1401 = vmatprep.mubr.f32.mxu0 0.0
      %1402 = vmatmul.mubr.f32.gmra.mrb[0].mxu0 %v1290
      %v1403 = vpop.f32.mrb[0].mxu0
      %v1404 = vadd.f32 0.0, %v1403
      %v1405 = vpop.f32.mrb[0].mxu0
      %1406 = vmatprep.mubr.f32.mxu0 0.0
      %1407 = vmatmul.mubr.f32.gmra.mrb[0].mxu0 %v1293
      %v1408 = vpop.f32.mrb[0].mxu0
      %v1409 = vadd.f32 0.0, %v1408
      %v1410 = vpop.f32.mrb[0].mxu0
      %1411 = vmatprep.mubr.f32.mxu0 0.0
      %1412 = vmatmul.mubr.f32.gmra.mrb[0].mxu0 %v1296
      %v1413 = vpop.f32.mrb[0].mxu0
      %v1414 = vadd.f32 0.0, %v1413
      %v1415 = vpop.f32.mrb[0].mxu0
      %1416 = vmatprep.mubr.f32.mxu0 0.0
      %1417 = vmatmul.mubr.f32.gmra.mrb[0].mxu0 %v1299
      %v1418 = vpop.f32.mrb[0].mxu0
      %v1419 = vadd.f32 0.0, %v1418
      %v1420 = vpop.f32.mrb[0].mxu0
      %1421 = vmatprep.mubr.f32.mxu0 0.0
      %1422 = vmatmul.mubr.f32.gmra.mrb[0].mxu0 %v1302
      %v1423 = vpop.f32.mrb[0].mxu0
      %v1424 = vadd.f32 0.0, %v1423
      %v1425 = vpop.f32.mrb[0].mxu0
      %1426 = vmatprep.mubr.f32.mxu0 0.0
      %1427 = vmatmul.mubr.f32.gmra.mrb[0].mxu0 %v1305
      %v1428 = vpop.f32.mrb[0].mxu0
      %v1429 = vadd.f32 0.0, %v1428
      %v1430 = vpop.f32.mrb[0].mxu0
      %1431 = vmatprep.mubr.f32.mxu0 0.0
      %1432 = vmatmul.mubr.f32.gmra.mrb[0].mxu0 %v1308
      %v1433 = vpop.f32.mrb[0].mxu0
      %v1434 = vadd.f32 0.0, %v1433
      %v1435 = vpop.f32.mrb[0].mxu0
      %1436 = vmatprep.mubr.f32.mxu0 0.0
      %1437 = vmatmul.mubr.f32.gmra.mrb[0].mxu0 %v1311
      %v1438 = vpop.f32.mrb[0].mxu0
      %v1439 = vadd.f32 0.0, %v1438
      %v1440 = vpop.f32.mrb[0].mxu0
      %1441 = vmatprep.mubr.f32.mxu0 0.0
      %1442 = vmatmul.mubr.f32.gmra.mrb[0].mxu0 %v1314
      %v1443 = vpop.f32.mrb[0].mxu0
      %v1444 = vadd.f32 0.0, %v1443
      %v1445 = vpop.f32.mrb[0].mxu0
      %1446 = vmatprep.mubr.f32.mxu0 0.0
      %1447 = vmatmul.mubr.f32.gmra.mrb[0].mxu0 %v1317
      %v1448 = vpop.f32.mrb[0].mxu0
      %v1449 = vadd.f32 0.0, %v1448
      %v1450 = vpop.f32.mrb[0].mxu0
      %1451 = vmatprep.mubr.f32.mxu0 0.0
      %1452 = vmatmul.mubr.f32.gmra.mrb[0].mxu0 %v1320
      %v1453 = vpop.f32.mrb[0].mxu0
      %v1454 = vadd.f32 0.0, %v1453
      %v1455 = vpop.f32.mrb[0].mxu0
      %1456 = vmatprep.mubr.f32.mxu0 0.0
      %1457 = vmatmul.mubr.f32.gmra.mrb[0].mxu0 %v1323
      %v1458 = vpop.f32.mrb[0].mxu0
      %v1459 = vadd.f32 0.0, %v1458
      %v1460 = vpop.f32.mrb[0].mxu0
      %1461 = vmatprep.mubr.f32.mxu0 0.0
      %1462 = vmatmul.mubr.f32.gmra.mrb[0].mxu0 %v1326
      %v1463 = vpop.f32.mrb[0].mxu0
      %v1464 = vadd.f32 0.0, %v1463
      %v1465 = vpop.f32.mrb[0].mxu0
      %1466 = vmatprep.mubr.f32.mxu0 0.0
      %1467 = vmatmul.mubr.f32.gmra.mrb[0].mxu0 %v1329
      %v1468 = vpop.f32.mrb[0].mxu0
      %v1469 = vadd.f32 0.0, %v1468
      %v1470 = vpop.f32.mrb[0].mxu0
      %1471 = vmatprep.mubr.f32.mxu0 0.0
      %1472 = vmatmul.mubr.f32.gmra.mrb[0].mxu0 %v1332
      %v1473 = vpop.f32.mrb[0].mxu0
      %v1474 = vadd.f32 0.0, %v1473
      %v1475 = vpop.f32.mrb[0].mxu0
      %1476 = vmatprep.mubr.f32.mxu0 0.0
      %1477 = vmatmul.mubr.f32.gmra.mrb[0].mxu0 %v1335
      %v1478 = vpop.f32.mrb[0].mxu0
      %v1479 = vadd.f32 0.0, %v1478
      %v1480 = vpop.f32.mrb[0].mxu0
      %1481 = vdwg.mxu0
      %v1482 = vadd.f32 %v1254, %v1404
      %v1483 = vadd.f32 %v1255, %v1409
      %v1484 = vadd.f32 %v1256, %v1414
      %v1485 = vadd.f32 %v1257, %v1419
      %v1486 = vadd.f32 %v1258, %v1424
      %v1487 = vadd.f32 %v1259, %v1429
      %v1488 = vadd.f32 %v1260, %v1434
      %v1489 = vadd.f32 %v1261, %v1439
      %v1490 = vadd.f32 %v1262, %v1444
      %v1491 = vadd.f32 %v1263, %v1449
      %v1492 = vadd.f32 %v1264, %v1454
      %v1493 = vadd.f32 %v1265, %v1459
      %v1494 = vadd.f32 %v1266, %v1464
      %v1495 = vadd.f32 %v1267, %v1469
      %v1496 = vadd.f32 %v1268, %v1474
      %v1497 = vadd.f32 %v1269, %v1479
      %v1498 = vld [vmem:[%s374 + $0x9] sm:$0xff]
      %v1499 = vld [vmem:[%s374 + $0x21] sm:$0xff]
      %v1500 = vld [vmem:[%s374 + $0x39] sm:$0xff]
      %v1501 = vld [vmem:[%s374 + $0x51] sm:$0xff]
      %v1502 = vld [vmem:[%s374 + $0x69] sm:$0xff]
      %v1503 = vld [vmem:[%s374 + $0x81] sm:$0xff]
      %v1504 = vld [vmem:[%s374 + $0x99] sm:$0xff]
      %v1505 = vld [vmem:[%s374 + $0xb1] sm:$0xff]
      %v1506 = vld [vmem:[%s374 + $0xf9] sm:$0xff]
      %v1507 = vld [vmem:[%s374 + $0x111] sm:$0xff]
      %v1508 = vld [vmem:[%s374 + $0x129] sm:$0xff]
      %v1509 = vld [vmem:[%s374 + $0x141] sm:$0xff]
      %v1510 = vld [vmem:[%s374 + $0x159] sm:$0xff]
      %v1511 = vld [vmem:[%s374 + $0x171] sm:$0xff]
      %v1512 = vld [vmem:[%s374 + $0x189] sm:$0xff]
      %v1513 = vld [vmem:[%s374 + $0x1a1] sm:$0xff]
      %s1514 = scalar_lea.vmem %s3, 80
      %v1515 = vld [vmem:[%s1514] sm:$0xff]
      %v1516 = vld [vmem:[%s1514 + $0x8] sm:$0xff]
      %v1518 = vsel %vm322, %v1498, 0
      %v1521 = vsel %vm322, %v1499, 0
      %v1524 = vsel %vm322, %v1500, 0
      %v1527 = vsel %vm322, %v1501, 0
      %v1530 = vsel %vm322, %v1502, 0
      %v1533 = vsel %vm322, %v1503, 0
      %v1536 = vsel %vm322, %v1504, 0
      %v1539 = vsel %vm322, %v1505, 0
      %v1542 = vsel %vm322, %v1506, 0
      %v1545 = vsel %vm322, %v1507, 0
      %v1548 = vsel %vm322, %v1508, 0
      %v1551 = vsel %vm322, %v1509, 0
      %v1554 = vsel %vm322, %v1510, 0
      %v1557 = vsel %vm322, %v1511, 0
      %v1560 = vsel %vm322, %v1512, 0
      %v1563 = vsel %vm322, %v1513, 0
      %1565 = vmatprep.subr.mxu0 0.0
      %1566 = vmatpush1.msra.mxu0 %v1515
      %1567 = vmatprep.subr.mxu0 0.0
      %1568 = vmatpush1.msra.mxu0 %v1516
      %1569 = vmatprep.subr.mxu0 0.0
      %1570 = vmatpush1.msra.mxu0 0.0
      %1571 = vmatprep.subr.mxu0 0.0
      %1572 = vmatpush1.msra.mxu0 0.0
      %1573 = vmatprep.subr.mxu0 0.0
      %1574 = vmatpush1.msra.mxu0 0.0
      %1575 = vmatprep.subr.mxu0 0.0
      %1576 = vmatpush1.msra.mxu0 0.0
      %1577 = vmatprep.subr.mxu0 0.0
      %1578 = vmatpush1.msra.mxu0 0.0
      %1579 = vmatprep.subr.mxu0 0.0
      %1580 = vmatpush1.msra.mxu0 0.0
      %1581 = vmatprep.subr.mxu0 0.0
      %1582 = vmatpush1.msra.mxu0 0.0
      %1583 = vmatprep.subr.mxu0 0.0
      %1584 = vmatpush1.msra.mxu0 0.0
      %1585 = vmatprep.subr.mxu0 0.0
      %1586 = vmatpush1.msra.mxu0 0.0
      %1587 = vmatprep.subr.mxu0 0.0
      %1588 = vmatpush1.msra.mxu0 0.0
      %1589 = vmatprep.subr.mxu0 0.0
      %1590 = vmatpush1.msra.mxu0 0.0
      %1591 = vmatprep.subr.mxu0 0.0
      %1592 = vmatpush1.msra.mxu0 0.0
      %1593 = vmatprep.subr.mxu0 0.0
      %1594 = vmatpush1.msra.mxu0 0.0
      %1595 = vmatprep.subr.mxu0 0.0
      %1596 = vmatpush1.msra.mxu0 0.0
      %1597 = vmatprep.subr.mxu0 0.0
      %1598 = vmatpush1.msra.mxu0 0.0
      %1599 = vmatprep.subr.mxu0 0.0
      %1600 = vmatpush1.msra.mxu0 0.0
      %1601 = vmatprep.subr.mxu0 0.0
      %1602 = vmatpush1.msra.mxu0 0.0
      %1603 = vmatprep.subr.mxu0 0.0
      %1604 = vmatpush1.msra.mxu0 0.0
      %1605 = vmatprep.subr.mxu0 0.0
      %1606 = vmatpush1.msra.mxu0 0.0
      %1607 = vmatprep.subr.mxu0 0.0
      %1608 = vmatpush1.msra.mxu0 0.0
      %1609 = vmatprep.subr.mxu0 0.0
      %1610 = vmatpush1.msra.mxu0 0.0
      %1611 = vmatprep.subr.mxu0 0.0
      %1612 = vmatpush1.msra.mxu0 0.0
      %1613 = vmatprep.subr.mxu0 0.0
      %1614 = vmatpush1.msra.mxu0 0.0
      %1615 = vmatprep.subr.mxu0 0.0
      %1616 = vmatpush1.msra.mxu0 0.0
      %1617 = vmatprep.subr.mxu0 0.0
      %1618 = vmatpush1.msra.mxu0 0.0
      %1619 = vmatprep.subr.mxu0 0.0
      %1620 = vmatpush1.msra.mxu0 0.0
      %1621 = vmatprep.subr.mxu0 0.0
      %1622 = vmatpush1.msra.mxu0 0.0
      %1623 = vmatprep.subr.mxu0 0.0
      %1624 = vmatpush1.msra.mxu0 0.0
      %1625 = vmatprep.subr.mxu0 0.0
      %1626 = vmatpush1.msra.mxu0 0.0
      %1627 = vmatprep.subr.mxu0 0.0
      %1628 = vmatpush1.msra.mxu0 0.0
      %1629 = vmatprep.mubr.f32.mxu0 0.0
      %1630 = vmatmul.mubr.f32.gmra.mrb[0].mxu0 %v1518
      %v1631 = vpop.f32.mrb[0].mxu0
      %v1632 = vadd.f32 0.0, %v1631
      %v1633 = vpop.f32.mrb[0].mxu0
      %1634 = vmatprep.mubr.f32.mxu0 0.0
      %1635 = vmatmul.mubr.f32.gmra.mrb[0].mxu0 %v1521
      %v1636 = vpop.f32.mrb[0].mxu0
      %v1637 = vadd.f32 0.0, %v1636
      %v1638 = vpop.f32.mrb[0].mxu0
      %1639 = vmatprep.mubr.f32.mxu0 0.0
      %1640 = vmatmul.mubr.f32.gmra.mrb[0].mxu0 %v1524
      %v1641 = vpop.f32.mrb[0].mxu0
      %v1642 = vadd.f32 0.0, %v1641
      %v1643 = vpop.f32.mrb[0].mxu0
      %1644 = vmatprep.mubr.f32.mxu0 0.0
      %1645 = vmatmul.mubr.f32.gmra.mrb[0].mxu0 %v1527
      %v1646 = vpop.f32.mrb[0].mxu0
      %v1647 = vadd.f32 0.0, %v1646
      %v1648 = vpop.f32.mrb[0].mxu0
      %1649 = vmatprep.mubr.f32.mxu0 0.0
      %1650 = vmatmul.mubr.f32.gmra.mrb[0].mxu0 %v1530
      %v1651 = vpop.f32.mrb[0].mxu0
      %v1652 = vadd.f32 0.0, %v1651
      %v1653 = vpop.f32.mrb[0].mxu0
      %1654 = vmatprep.mubr.f32.mxu0 0.0
      %1655 = vmatmul.mubr.f32.gmra.mrb[0].mxu0 %v1533
      %v1656 = vpop.f32.mrb[0].mxu0
      %v1657 = vadd.f32 0.0, %v1656
      %v1658 = vpop.f32.mrb[0].mxu0
      %1659 = vmatprep.mubr.f32.mxu0 0.0
      %1660 = vmatmul.mubr.f32.gmra.mrb[0].mxu0 %v1536
      %v1661 = vpop.f32.mrb[0].mxu0
      %v1662 = vadd.f32 0.0, %v1661
      %v1663 = vpop.f32.mrb[0].mxu0
      %1664 = vmatprep.mubr.f32.mxu0 0.0
      %1665 = vmatmul.mubr.f32.gmra.mrb[0].mxu0 %v1539
      %v1666 = vpop.f32.mrb[0].mxu0
      %v1667 = vadd.f32 0.0, %v1666
      %v1668 = vpop.f32.mrb[0].mxu0
      %1669 = vmatprep.mubr.f32.mxu0 0.0
      %1670 = vmatmul.mubr.f32.gmra.mrb[0].mxu0 %v1542
      %v1671 = vpop.f32.mrb[0].mxu0
      %v1672 = vadd.f32 0.0, %v1671
      %v1673 = vpop.f32.mrb[0].mxu0
      %1674 = vmatprep.mubr.f32.mxu0 0.0
      %1675 = vmatmul.mubr.f32.gmra.mrb[0].mxu0 %v1545
      %v1676 = vpop.f32.mrb[0].mxu0
      %v1677 = vadd.f32 0.0, %v1676
      %v1678 = vpop.f32.mrb[0].mxu0
      %1679 = vmatprep.mubr.f32.mxu0 0.0
      %1680 = vmatmul.mubr.f32.gmra.mrb[0].mxu0 %v1548
      %v1681 = vpop.f32.mrb[0].mxu0
      %v1682 = vadd.f32 0.0, %v1681
      %v1683 = vpop.f32.mrb[0].mxu0
      %1684 = vmatprep.mubr.f32.mxu0 0.0
      %1685 = vmatmul.mubr.f32.gmra.mrb[0].mxu0 %v1551
      %v1686 = vpop.f32.mrb[0].mxu0
      %v1687 = vadd.f32 0.0, %v1686
      %v1688 = vpop.f32.mrb[0].mxu0
      %1689 = vmatprep.mubr.f32.mxu0 0.0
      %1690 = vmatmul.mubr.f32.gmra.mrb[0].mxu0 %v1554
      %v1691 = vpop.f32.mrb[0].mxu0
      %v1692 = vadd.f32 0.0, %v1691
      %v1693 = vpop.f32.mrb[0].mxu0
      %1694 = vmatprep.mubr.f32.mxu0 0.0
      %1695 = vmatmul.mubr.f32.gmra.mrb[0].mxu0 %v1557
      %v1696 = vpop.f32.mrb[0].mxu0
      %v1697 = vadd.f32 0.0, %v1696
      %v1698 = vpop.f32.mrb[0].mxu0
      %1699 = vmatprep.mubr.f32.mxu0 0.0
      %1700 = vmatmul.mubr.f32.gmra.mrb[0].mxu0 %v1560
      %v1701 = vpop.f32.mrb[0].mxu0
      %v1702 = vadd.f32 0.0, %v1701
      %v1703 = vpop.f32.mrb[0].mxu0
      %1704 = vmatprep.mubr.f32.mxu0 0.0
      %1705 = vmatmul.mubr.f32.gmra.mrb[0].mxu0 %v1563
      %v1706 = vpop.f32.mrb[0].mxu0
      %v1707 = vadd.f32 0.0, %v1706
      %v1708 = vpop.f32.mrb[0].mxu0
      %1709 = vdwg.mxu0
      %v1710 = vadd.f32 %v1482, %v1632
      %v1711 = vadd.f32 %v1483, %v1637
      %v1712 = vadd.f32 %v1484, %v1642
      %v1713 = vadd.f32 %v1485, %v1647
      %v1714 = vadd.f32 %v1486, %v1652
      %v1715 = vadd.f32 %v1487, %v1657
      %v1716 = vadd.f32 %v1488, %v1662
      %v1717 = vadd.f32 %v1489, %v1667
      %v1718 = vadd.f32 %v1490, %v1672
      %v1719 = vadd.f32 %v1491, %v1677
      %v1720 = vadd.f32 %v1492, %v1682
      %v1721 = vadd.f32 %v1493, %v1687
      %v1722 = vadd.f32 %v1494, %v1692
      %v1723 = vadd.f32 %v1495, %v1697
      %v1724 = vadd.f32 %v1496, %v1702
      %v1725 = vadd.f32 %v1497, %v1707
      %s1726 = scalar_lea.vmem [#allocation2], 48
      %v1727 = vld [vmem:[%s1726 + $0x7] sm:$0xff]
      %v1728 = vld [vmem:[%s1726 + $0x1f] sm:$0xff]
      %v1729 = vld [vmem:[%s1726 + $0x37] sm:$0xff]
      %v1730 = vld [vmem:[%s1726 + $0x4f] sm:$0xff]
      %v1731 = vld [vmem:[%s1726 + $0x67] sm:$0xff]
      %v1732 = vld [vmem:[%s1726 + $0x7f] sm:$0xff]
      %v1733 = vld [vmem:[%s1726 + $0x97] sm:$0xff]
      %v1734 = vld [vmem:[%s1726 + $0xaf] sm:$0xff]
      %v1735 = vld [vmem:[%s1726 + $0xf7] sm:$0xff]
      %v1736 = vld [vmem:[%s1726 + $0x10f] sm:$0xff]
      %v1737 = vld [vmem:[%s1726 + $0x127] sm:$0xff]
      %v1738 = vld [vmem:[%s1726 + $0x13f] sm:$0xff]
      %v1739 = vld [vmem:[%s1726 + $0x157] sm:$0xff]
      %v1740 = vld [vmem:[%s1726 + $0x16f] sm:$0xff]
      %v1741 = vld [vmem:[%s1726 + $0x187] sm:$0xff]
      %v1742 = vld [vmem:[%s1726 + $0x19f] sm:$0xff]
      %s1743 = scalar_lea.vmem %s3, 96
      %v1744 = vld [vmem:[%s1743] sm:$0xff]
      %v1745 = vld [vmem:[%s1743 + $0x8] sm:$0xff]
      %v1747 = vsel %vm322, %v1727, 0
      %v1750 = vsel %vm322, %v1728, 0
      %v1753 = vsel %vm322, %v1729, 0
      %v1756 = vsel %vm322, %v1730, 0
      %v1759 = vsel %vm322, %v1731, 0
      %v1762 = vsel %vm322, %v1732, 0
      %v1765 = vsel %vm322, %v1733, 0
      %v1768 = vsel %vm322, %v1734, 0
      %v1771 = vsel %vm322, %v1735, 0
      %v1774 = vsel %vm322, %v1736, 0
      %v1777 = vsel %vm322, %v1737, 0
      %v1780 = vsel %vm322, %v1738, 0
      %v1783 = vsel %vm322, %v1739, 0
      %v1786 = vsel %vm322, %v1740, 0
      %v1789 = vsel %vm322, %v1741, 0
      %v1792 = vsel %vm322, %v1742, 0
      %1794 = vmatprep.subr.mxu0 0.0
      %1795 = vmatpush1.msra.mxu0 %v1744
      %1796 = vmatprep.subr.mxu0 0.0
      %1797 = vmatpush1.msra.mxu0 %v1745
      %1798 = vmatprep.subr.mxu0 0.0
      %1799 = vmatpush1.msra.mxu0 0.0
      %1800 = vmatprep.subr.mxu0 0.0
      %1801 = vmatpush1.msra.mxu0 0.0
      %1802 = vmatprep.subr.mxu0 0.0
      %1803 = vmatpush1.msra.mxu0 0.0
      %1804 = vmatprep.subr.mxu0 0.0
      %1805 = vmatpush1.msra.mxu0 0.0
      %1806 = vmatprep.subr.mxu0 0.0
      %1807 = vmatpush1.msra.mxu0 0.0
      %1808 = vmatprep.subr.mxu0 0.0
      %1809 = vmatpush1.msra.mxu0 0.0
      %1810 = vmatprep.subr.mxu0 0.0
      %1811 = vmatpush1.msra.mxu0 0.0
      %1812 = vmatprep.subr.mxu0 0.0
      %1813 = vmatpush1.msra.mxu0 0.0
      %1814 = vmatprep.subr.mxu0 0.0
      %1815 = vmatpush1.msra.mxu0 0.0
      %1816 = vmatprep.subr.mxu0 0.0
      %1817 = vmatpush1.msra.mxu0 0.0
      %1818 = vmatprep.subr.mxu0 0.0
      %1819 = vmatpush1.msra.mxu0 0.0
      %1820 = vmatprep.subr.mxu0 0.0
      %1821 = vmatpush1.msra.mxu0 0.0
      %1822 = vmatprep.subr.mxu0 0.0
      %1823 = vmatpush1.msra.mxu0 0.0
      %1824 = vmatprep.subr.mxu0 0.0
      %1825 = vmatpush1.msra.mxu0 0.0
      %1826 = vmatprep.subr.mxu0 0.0
      %1827 = vmatpush1.msra.mxu0 0.0
      %1828 = vmatprep.subr.mxu0 0.0
      %1829 = vmatpush1.msra.mxu0 0.0
      %1830 = vmatprep.subr.mxu0 0.0
      %1831 = vmatpush1.msra.mxu0 0.0
      %1832 = vmatprep.subr.mxu0 0.0
      %1833 = vmatpush1.msra.mxu0 0.0
      %1834 = vmatprep.subr.mxu0 0.0
      %1835 = vmatpush1.msra.mxu0 0.0
      %1836 = vmatprep.subr.mxu0 0.0
      %1837 = vmatpush1.msra.mxu0 0.0
      %1838 = vmatprep.subr.mxu0 0.0
      %1839 = vmatpush1.msra.mxu0 0.0
      %1840 = vmatprep.subr.mxu0 0.0
      %1841 = vmatpush1.msra.mxu0 0.0
      %1842 = vmatprep.subr.mxu0 0.0
      %1843 = vmatpush1.msra.mxu0 0.0
      %1844 = vmatprep.subr.mxu0 0.0
      %1845 = vmatpush1.msra.mxu0 0.0
      %1846 = vmatprep.subr.mxu0 0.0
      %1847 = vmatpush1.msra.mxu0 0.0
      %1848 = vmatprep.subr.mxu0 0.0
      %1849 = vmatpush1.msra.mxu0 0.0
      %1850 = vmatprep.subr.mxu0 0.0
      %1851 = vmatpush1.msra.mxu0 0.0
      %1852 = vmatprep.subr.mxu0 0.0
      %1853 = vmatpush1.msra.mxu0 0.0
      %1854 = vmatprep.subr.mxu0 0.0
      %1855 = vmatpush1.msra.mxu0 0.0
      %1856 = vmatprep.subr.mxu0 0.0
      %1857 = vmatpush1.msra.mxu0 0.0
      %1858 = vmatprep.mubr.f32.mxu0 0.0
      %1859 = vmatmul.mubr.f32.gmra.mrb[0].mxu0 %v1747
      %v1860 = vpop.f32.mrb[0].mxu0
      %v1861 = vadd.f32 0.0, %v1860
      %v1862 = vpop.f32.mrb[0].mxu0
      %1863 = vmatprep.mubr.f32.mxu0 0.0
      %1864 = vmatmul.mubr.f32.gmra.mrb[0].mxu0 %v1750
      %v1865 = vpop.f32.mrb[0].mxu0
      %v1866 = vadd.f32 0.0, %v1865
      %v1867 = vpop.f32.mrb[0].mxu0
      %1868 = vmatprep.mubr.f32.mxu0 0.0
      %1869 = vmatmul.mubr.f32.gmra.mrb[0].mxu0 %v1753
      %v1870 = vpop.f32.mrb[0].mxu0
      %v1871 = vadd.f32 0.0, %v1870
      %v1872 = vpop.f32.mrb[0].mxu0
      %1873 = vmatprep.mubr.f32.mxu0 0.0
      %1874 = vmatmul.mubr.f32.gmra.mrb[0].mxu0 %v1756
      %v1875 = vpop.f32.mrb[0].mxu0
      %v1876 = vadd.f32 0.0, %v1875
      %v1877 = vpop.f32.mrb[0].mxu0
      %1878 = vmatprep.mubr.f32.mxu0 0.0
      %1879 = vmatmul.mubr.f32.gmra.mrb[0].mxu0 %v1759
      %v1880 = vpop.f32.mrb[0].mxu0
      %v1881 = vadd.f32 0.0, %v1880
      %v1882 = vpop.f32.mrb[0].mxu0
      %1883 = vmatprep.mubr.f32.mxu0 0.0
      %1884 = vmatmul.mubr.f32.gmra.mrb[0].mxu0 %v1762
      %v1885 = vpop.f32.mrb[0].mxu0
      %v1886 = vadd.f32 0.0, %v1885
      %v1887 = vpop.f32.mrb[0].mxu0
      %1888 = vmatprep.mubr.f32.mxu0 0.0
      %1889 = vmatmul.mubr.f32.gmra.mrb[0].mxu0 %v1765
      %v1890 = vpop.f32.mrb[0].mxu0
      %v1891 = vadd.f32 0.0, %v1890
      %v1892 = vpop.f32.mrb[0].mxu0
      %1893 = vmatprep.mubr.f32.mxu0 0.0
      %1894 = vmatmul.mubr.f32.gmra.mrb[0].mxu0 %v1768
      %v1895 = vpop.f32.mrb[0].mxu0
      %v1896 = vadd.f32 0.0, %v1895
      %v1897 = vpop.f32.mrb[0].mxu0
      %1898 = vmatprep.mubr.f32.mxu0 0.0
      %1899 = vmatmul.mubr.f32.gmra.mrb[0].mxu0 %v1771
      %v1900 = vpop.f32.mrb[0].mxu0
      %v1901 = vadd.f32 0.0, %v1900
      %v1902 = vpop.f32.mrb[0].mxu0
      %1903 = vmatprep.mubr.f32.mxu0 0.0
      %1904 = vmatmul.mubr.f32.gmra.mrb[0].mxu0 %v1774
      %v1905 = vpop.f32.mrb[0].mxu0
      %v1906 = vadd.f32 0.0, %v1905
      %v1907 = vpop.f32.mrb[0].mxu0
      %1908 = vmatprep.mubr.f32.mxu0 0.0
      %1909 = vmatmul.mubr.f32.gmra.mrb[0].mxu0 %v1777
      %v1910 = vpop.f32.mrb[0].mxu0
      %v1911 = vadd.f32 0.0, %v1910
      %v1912 = vpop.f32.mrb[0].mxu0
      %1913 = vmatprep.mubr.f32.mxu0 0.0
      %1914 = vmatmul.mubr.f32.gmra.mrb[0].mxu0 %v1780
      %v1915 = vpop.f32.mrb[0].mxu0
      %v1916 = vadd.f32 0.0, %v1915
      %v1917 = vpop.f32.mrb[0].mxu0
      %1918 = vmatprep.mubr.f32.mxu0 0.0
      %1919 = vmatmul.mubr.f32.gmra.mrb[0].mxu0 %v1783
      %v1920 = vpop.f32.mrb[0].mxu0
      %v1921 = vadd.f32 0.0, %v1920
      %v1922 = vpop.f32.mrb[0].mxu0
      %1923 = vmatprep.mubr.f32.mxu0 0.0
      %1924 = vmatmul.mubr.f32.gmra.mrb[0].mxu0 %v1786
      %v1925 = vpop.f32.mrb[0].mxu0
      %v1926 = vadd.f32 0.0, %v1925
      %v1927 = vpop.f32.mrb[0].mxu0
      %1928 = vmatprep.mubr.f32.mxu0 0.0
      %1929 = vmatmul.mubr.f32.gmra.mrb[0].mxu0 %v1789
      %v1930 = vpop.f32.mrb[0].mxu0
      %v1931 = vadd.f32 0.0, %v1930
      %v1932 = vpop.f32.mrb[0].mxu0
      %1933 = vmatprep.mubr.f32.mxu0 0.0
      %1934 = vmatmul.mubr.f32.gmra.mrb[0].mxu0 %v1792
      %v1935 = vpop.f32.mrb[0].mxu0
      %v1936 = vadd.f32 0.0, %v1935
      %v1937 = vpop.f32.mrb[0].mxu0
      %1938 = vdwg.mxu0
      %v1939 = vadd.f32 %v1710, %v1861
      %v1940 = vadd.f32 %v1711, %v1866
      %v1941 = vadd.f32 %v1712, %v1871
      %v1942 = vadd.f32 %v1713, %v1876
      %v1943 = vadd.f32 %v1714, %v1881
      %v1944 = vadd.f32 %v1715, %v1886
      %v1945 = vadd.f32 %v1716, %v1891
      %v1946 = vadd.f32 %v1717, %v1896
      %v1947 = vadd.f32 %v1718, %v1901
      %v1948 = vadd.f32 %v1719, %v1906
      %v1949 = vadd.f32 %v1720, %v1911
      %v1950 = vadd.f32 %v1721, %v1916
      %v1951 = vadd.f32 %v1722, %v1921
      %v1952 = vadd.f32 %v1723, %v1926
      %v1953 = vadd.f32 %v1724, %v1931
      %v1954 = vadd.f32 %v1725, %v1936
      %v1955 = vld [vmem:[%s1726 + $0x8] sm:$0xff]
      %v1956 = vld [vmem:[%s1726 + $0x20] sm:$0xff]
      %v1957 = vld [vmem:[%s1726 + $0x38] sm:$0xff]
      %v1958 = vld [vmem:[%s1726 + $0x50] sm:$0xff]
      %v1959 = vld [vmem:[%s1726 + $0x68] sm:$0xff]
      %v1960 = vld [vmem:[%s1726 + $0x80] sm:$0xff]
      %v1961 = vld [vmem:[%s1726 + $0x98] sm:$0xff]
      %v1962 = vld [vmem:[%s1726 + $0xb0] sm:$0xff]
      %v1963 = vld [vmem:[%s1726 + $0xf8] sm:$0xff]
      %v1964 = vld [vmem:[%s1726 + $0x110] sm:$0xff]
      %v1965 = vld [vmem:[%s1726 + $0x128] sm:$0xff]
      %v1966 = vld [vmem:[%s1726 + $0x140] sm:$0xff]
      %v1967 = vld [vmem:[%s1726 + $0x158] sm:$0xff]
      %v1968 = vld [vmem:[%s1726 + $0x170] sm:$0xff]
      %v1969 = vld [vmem:[%s1726 + $0x188] sm:$0xff]
      %v1970 = vld [vmem:[%s1726 + $0x1a0] sm:$0xff]
      %s1971 = scalar_lea.vmem %s3, 112
      %v1972 = vld [vmem:[%s1971] sm:$0xff]
      %v1973 = vld [vmem:[%s1971 + $0x8] sm:$0xff]
      %v1975 = vsel %vm322, %v1955, 0
      %v1978 = vsel %vm322, %v1956, 0
      %v1981 = vsel %vm322, %v1957, 0
      %v1984 = vsel %vm322, %v1958, 0
      %v1987 = vsel %vm322, %v1959, 0
      %v1990 = vsel %vm322, %v1960, 0
      %v1993 = vsel %vm322, %v1961, 0
      %v1996 = vsel %vm322, %v1962, 0
      %v1999 = vsel %vm322, %v1963, 0
      %v2002 = vsel %vm322, %v1964, 0
      %v2005 = vsel %vm322, %v1965, 0
      %v2008 = vsel %vm322, %v1966, 0
      %v2011 = vsel %vm322, %v1967, 0
      %v2014 = vsel %vm322, %v1968, 0
      %v2017 = vsel %vm322, %v1969, 0
      %v2020 = vsel %vm322, %v1970, 0
      %2022 = vmatprep.subr.mxu0 0.0
      %2023 = vmatpush1.msra.mxu0 %v1972
      %2024 = vmatprep.subr.mxu0 0.0
      %2025 = vmatpush1.msra.mxu0 %v1973
      %2026 = vmatprep.subr.mxu0 0.0
      %2027 = vmatpush1.msra.mxu0 0.0
      %2028 = vmatprep.subr.mxu0 0.0
      %2029 = vmatpush1.msra.mxu0 0.0
      %2030 = vmatprep.subr.mxu0 0.0
      %2031 = vmatpush1.msra.mxu0 0.0
      %2032 = vmatprep.subr.mxu0 0.0
      %2033 = vmatpush1.msra.mxu0 0.0
      %2034 = vmatprep.subr.mxu0 0.0
      %2035 = vmatpush1.msra.mxu0 0.0
      %2036 = vmatprep.subr.mxu0 0.0
      %2037 = vmatpush1.msra.mxu0 0.0
      %2038 = vmatprep.subr.mxu0 0.0
      %2039 = vmatpush1.msra.mxu0 0.0
      %2040 = vmatprep.subr.mxu0 0.0
      %2041 = vmatpush1.msra.mxu0 0.0
      %2042 = vmatprep.subr.mxu0 0.0
      %2043 = vmatpush1.msra.mxu0 0.0
      %2044 = vmatprep.subr.mxu0 0.0
      %2045 = vmatpush1.msra.mxu0 0.0
      %2046 = vmatprep.subr.mxu0 0.0
      %2047 = vmatpush1.msra.mxu0 0.0
      %2048 = vmatprep.subr.mxu0 0.0
      %2049 = vmatpush1.msra.mxu0 0.0
      %2050 = vmatprep.subr.mxu0 0.0
      %2051 = vmatpush1.msra.mxu0 0.0
      %2052 = vmatprep.subr.mxu0 0.0
      %2053 = vmatpush1.msra.mxu0 0.0
      %2054 = vmatprep.subr.mxu0 0.0
      %2055 = vmatpush1.msra.mxu0 0.0
      %2056 = vmatprep.subr.mxu0 0.0
      %2057 = vmatpush1.msra.mxu0 0.0
      %2058 = vmatprep.subr.mxu0 0.0
      %2059 = vmatpush1.msra.mxu0 0.0
      %2060 = vmatprep.subr.mxu0 0.0
      %2061 = vmatpush1.msra.mxu0 0.0
      %2062 = vmatprep.subr.mxu0 0.0
      %2063 = vmatpush1.msra.mxu0 0.0
      %2064 = vmatprep.subr.mxu0 0.0
      %2065 = vmatpush1.msra.mxu0 0.0
      %2066 = vmatprep.subr.mxu0 0.0
      %2067 = vmatpush1.msra.mxu0 0.0
      %2068 = vmatprep.subr.mxu0 0.0
      %2069 = vmatpush1.msra.mxu0 0.0
      %2070 = vmatprep.subr.mxu0 0.0
      %2071 = vmatpush1.msra.mxu0 0.0
      %2072 = vmatprep.subr.mxu0 0.0
      %2073 = vmatpush1.msra.mxu0 0.0
      %2074 = vmatprep.subr.mxu0 0.0
      %2075 = vmatpush1.msra.mxu0 0.0
      %2076 = vmatprep.subr.mxu0 0.0
      %2077 = vmatpush1.msra.mxu0 0.0
      %2078 = vmatprep.subr.mxu0 0.0
      %2079 = vmatpush1.msra.mxu0 0.0
      %2080 = vmatprep.subr.mxu0 0.0
      %2081 = vmatpush1.msra.mxu0 0.0
      %2082 = vmatprep.subr.mxu0 0.0
      %2083 = vmatpush1.msra.mxu0 0.0
      %2084 = vmatprep.subr.mxu0 0.0
      %2085 = vmatpush1.msra.mxu0 0.0
      %2086 = vmatprep.mubr.f32.mxu0 0.0
      %2087 = vmatmul.mubr.f32.gmra.mrb[0].mxu0 %v1975
      %v2088 = vpop.f32.mrb[0].mxu0
      %v2089 = vadd.f32 0.0, %v2088
      %v2090 = vpop.f32.mrb[0].mxu0
      %2091 = vmatprep.mubr.f32.mxu0 0.0
      %2092 = vmatmul.mubr.f32.gmra.mrb[0].mxu0 %v1978
      %v2093 = vpop.f32.mrb[0].mxu0
      %v2094 = vadd.f32 0.0, %v2093
      %v2095 = vpop.f32.mrb[0].mxu0
      %2096 = vmatprep.mubr.f32.mxu0 0.0
      %2097 = vmatmul.mubr.f32.gmra.mrb[0].mxu0 %v1981
      %v2098 = vpop.f32.mrb[0].mxu0
      %v2099 = vadd.f32 0.0, %v2098
      %v2100 = vpop.f32.mrb[0].mxu0
      %2101 = vmatprep.mubr.f32.mxu0 0.0
      %2102 = vmatmul.mubr.f32.gmra.mrb[0].mxu0 %v1984
      %v2103 = vpop.f32.mrb[0].mxu0
      %v2104 = vadd.f32 0.0, %v2103
      %v2105 = vpop.f32.mrb[0].mxu0
      %2106 = vmatprep.mubr.f32.mxu0 0.0
      %2107 = vmatmul.mubr.f32.gmra.mrb[0].mxu0 %v1987
      %v2108 = vpop.f32.mrb[0].mxu0
      %v2109 = vadd.f32 0.0, %v2108
      %v2110 = vpop.f32.mrb[0].mxu0
      %2111 = vmatprep.mubr.f32.mxu0 0.0
      %2112 = vmatmul.mubr.f32.gmra.mrb[0].mxu0 %v1990
      %v2113 = vpop.f32.mrb[0].mxu0
      %v2114 = vadd.f32 0.0, %v2113
      %v2115 = vpop.f32.mrb[0].mxu0
      %2116 = vmatprep.mubr.f32.mxu0 0.0
      %2117 = vmatmul.mubr.f32.gmra.mrb[0].mxu0 %v1993
      %v2118 = vpop.f32.mrb[0].mxu0
      %v2119 = vadd.f32 0.0, %v2118
      %v2120 = vpop.f32.mrb[0].mxu0
      %2121 = vmatprep.mubr.f32.mxu0 0.0
      %2122 = vmatmul.mubr.f32.gmra.mrb[0].mxu0 %v1996
      %v2123 = vpop.f32.mrb[0].mxu0
      %v2124 = vadd.f32 0.0, %v2123
      %v2125 = vpop.f32.mrb[0].mxu0
      %2126 = vmatprep.mubr.f32.mxu0 0.0
      %2127 = vmatmul.mubr.f32.gmra.mrb[0].mxu0 %v1999
      %v2128 = vpop.f32.mrb[0].mxu0
      %v2129 = vadd.f32 0.0, %v2128
      %v2130 = vpop.f32.mrb[0].mxu0
      %2131 = vmatprep.mubr.f32.mxu0 0.0
      %2132 = vmatmul.mubr.f32.gmra.mrb[0].mxu0 %v2002
      %v2133 = vpop.f32.mrb[0].mxu0
      %v2134 = vadd.f32 0.0, %v2133
      %v2135 = vpop.f32.mrb[0].mxu0
      %2136 = vmatprep.mubr.f32.mxu0 0.0
      %2137 = vmatmul.mubr.f32.gmra.mrb[0].mxu0 %v2005
      %v2138 = vpop.f32.mrb[0].mxu0
      %v2139 = vadd.f32 0.0, %v2138
      %v2140 = vpop.f32.mrb[0].mxu0
      %2141 = vmatprep.mubr.f32.mxu0 0.0
      %2142 = vmatmul.mubr.f32.gmra.mrb[0].mxu0 %v2008
      %v2143 = vpop.f32.mrb[0].mxu0
      %v2144 = vadd.f32 0.0, %v2143
      %v2145 = vpop.f32.mrb[0].mxu0
      %2146 = vmatprep.mubr.f32.mxu0 0.0
      %2147 = vmatmul.mubr.f32.gmra.mrb[0].mxu0 %v2011
      %v2148 = vpop.f32.mrb[0].mxu0
      %v2149 = vadd.f32 0.0, %v2148
      %v2150 = vpop.f32.mrb[0].mxu0
      %2151 = vmatprep.mubr.f32.mxu0 0.0
      %2152 = vmatmul.mubr.f32.gmra.mrb[0].mxu0 %v2014
      %v2153 = vpop.f32.mrb[0].mxu0
      %v2154 = vadd.f32 0.0, %v2153
      %v2155 = vpop.f32.mrb[0].mxu0
      %2156 = vmatprep.mubr.f32.mxu0 0.0
      %2157 = vmatmul.mubr.f32.gmra.mrb[0].mxu0 %v2017
      %v2158 = vpop.f32.mrb[0].mxu0
      %v2159 = vadd.f32 0.0, %v2158
      %v2160 = vpop.f32.mrb[0].mxu0
      %2161 = vmatprep.mubr.f32.mxu0 0.0
      %2162 = vmatmul.mubr.f32.gmra.mrb[0].mxu0 %v2020
      %v2163 = vpop.f32.mrb[0].mxu0
      %v2164 = vadd.f32 0.0, %v2163
      %v2165 = vpop.f32.mrb[0].mxu0
      %2166 = vdwg.mxu0
      %v2167 = vadd.f32 %v1939, %v2089
      %v2168 = vadd.f32 %v1940, %v2094
      %v2169 = vadd.f32 %v1941, %v2099
      %v2170 = vadd.f32 %v1942, %v2104
      %v2171 = vadd.f32 %v1943, %v2109
      %v2172 = vadd.f32 %v1944, %v2114
      %v2173 = vadd.f32 %v1945, %v2119
      %v2174 = vadd.f32 %v1946, %v2124
      %v2175 = vadd.f32 %v1947, %v2129
      %v2176 = vadd.f32 %v1948, %v2134
      %v2177 = vadd.f32 %v1949, %v2139
      %v2178 = vadd.f32 %v1950, %v2144
      %v2179 = vadd.f32 %v1951, %v2149
      %v2180 = vadd.f32 %v1952, %v2154
      %v2181 = vadd.f32 %v1953, %v2159
      %v2182 = vadd.f32 %v1954, %v2164
      %v2183 = vld [vmem:[%s1726 + $0x9] sm:$0xff]
      %v2184 = vld [vmem:[%s1726 + $0x21] sm:$0xff]
      %v2185 = vld [vmem:[%s1726 + $0x39] sm:$0xff]
      %v2186 = vld [vmem:[%s1726 + $0x51] sm:$0xff]
      %v2187 = vld [vmem:[%s1726 + $0x69] sm:$0xff]
      %v2188 = vld [vmem:[%s1726 + $0x81] sm:$0xff]
      %v2189 = vld [vmem:[%s1726 + $0x99] sm:$0xff]
      %v2190 = vld [vmem:[%s1726 + $0xb1] sm:$0xff]
      %v2191 = vld [vmem:[%s1726 + $0xf9] sm:$0xff]
      %v2192 = vld [vmem:[%s1726 + $0x111] sm:$0xff]
      %v2193 = vld [vmem:[%s1726 + $0x129] sm:$0xff]
      %v2194 = vld [vmem:[%s1726 + $0x141] sm:$0xff]
      %v2195 = vld [vmem:[%s1726 + $0x159] sm:$0xff]
      %v2196 = vld [vmem:[%s1726 + $0x171] sm:$0xff]
      %v2197 = vld [vmem:[%s1726 + $0x189] sm:$0xff]
      %v2198 = vld [vmem:[%s1726 + $0x1a1] sm:$0xff]
      %s2199 = scalar_lea.vmem %s3, 128
      %v2200 = vld [vmem:[%s2199] sm:$0xff]
      %v2201 = vld [vmem:[%s2199 + $0x8] sm:$0xff]
      %v2203 = vsel %vm322, %v2183, 0
      %v2206 = vsel %vm322, %v2184, 0
      %v2209 = vsel %vm322, %v2185, 0
      %v2212 = vsel %vm322, %v2186, 0
      %v2215 = vsel %vm322, %v2187, 0
      %v2218 = vsel %vm322, %v2188, 0
      %v2221 = vsel %vm322, %v2189, 0
      %v2224 = vsel %vm322, %v2190, 0
      %v2227 = vsel %vm322, %v2191, 0
      %v2230 = vsel %vm322, %v2192, 0
      %v2233 = vsel %vm322, %v2193, 0
      %v2236 = vsel %vm322, %v2194, 0
      %v2239 = vsel %vm322, %v2195, 0
      %v2242 = vsel %vm322, %v2196, 0
      %v2245 = vsel %vm322, %v2197, 0
      %v2248 = vsel %vm322, %v2198, 0
      %2250 = vmatprep.subr.mxu0 0.0
      %2251 = vmatpush1.msra.mxu0 %v2200
      %2252 = vmatprep.subr.mxu0 0.0
      %2253 = vmatpush1.msra.mxu0 %v2201
      %2254 = vmatprep.subr.mxu0 0.0
      %2255 = vmatpush1.msra.mxu0 0.0
      %2256 = vmatprep.subr.mxu0 0.0
      %2257 = vmatpush1.msra.mxu0 0.0
      %2258 = vmatprep.subr.mxu0 0.0
      %2259 = vmatpush1.msra.mxu0 0.0
      %2260 = vmatprep.subr.mxu0 0.0
      %2261 = vmatpush1.msra.mxu0 0.0
      %2262 = vmatprep.subr.mxu0 0.0
      %2263 = vmatpush1.msra.mxu0 0.0
      %2264 = vmatprep.subr.mxu0 0.0
      %2265 = vmatpush1.msra.mxu0 0.0
      %2266 = vmatprep.subr.mxu0 0.0
      %2267 = vmatpush1.msra.mxu0 0.0
      %2268 = vmatprep.subr.mxu0 0.0
      %2269 = vmatpush1.msra.mxu0 0.0
      %2270 = vmatprep.subr.mxu0 0.0
      %2271 = vmatpush1.msra.mxu0 0.0
      %2272 = vmatprep.subr.mxu0 0.0
      %2273 = vmatpush1.msra.mxu0 0.0
      %2274 = vmatprep.subr.mxu0 0.0
      %2275 = vmatpush1.msra.mxu0 0.0
      %2276 = vmatprep.subr.mxu0 0.0
      %2277 = vmatpush1.msra.mxu0 0.0
      %2278 = vmatprep.subr.mxu0 0.0
      %2279 = vmatpush1.msra.mxu0 0.0
      %2280 = vmatprep.subr.mxu0 0.0
      %2281 = vmatpush1.msra.mxu0 0.0
      %2282 = vmatprep.subr.mxu0 0.0
      %2283 = vmatpush1.msra.mxu0 0.0
      %2284 = vmatprep.subr.mxu0 0.0
      %2285 = vmatpush1.msra.mxu0 0.0
      %2286 = vmatprep.subr.mxu0 0.0
      %2287 = vmatpush1.msra.mxu0 0.0
      %2288 = vmatprep.subr.mxu0 0.0
      %2289 = vmatpush1.msra.mxu0 0.0
      %2290 = vmatprep.subr.mxu0 0.0
      %2291 = vmatpush1.msra.mxu0 0.0
      %2292 = vmatprep.subr.mxu0 0.0
      %2293 = vmatpush1.msra.mxu0 0.0
      %2294 = vmatprep.subr.mxu0 0.0
      %2295 = vmatpush1.msra.mxu0 0.0
      %2296 = vmatprep.subr.mxu0 0.0
      %2297 = vmatpush1.msra.mxu0 0.0
      %2298 = vmatprep.subr.mxu0 0.0
      %2299 = vmatpush1.msra.mxu0 0.0
      %2300 = vmatprep.subr.mxu0 0.0
      %2301 = vmatpush1.msra.mxu0 0.0
      %2302 = vmatprep.subr.mxu0 0.0
      %2303 = vmatpush1.msra.mxu0 0.0
      %2304 = vmatprep.subr.mxu0 0.0
      %2305 = vmatpush1.msra.mxu0 0.0
      %2306 = vmatprep.subr.mxu0 0.0
      %2307 = vmatpush1.msra.mxu0 0.0
      %2308 = vmatprep.subr.mxu0 0.0
      %2309 = vmatpush1.msra.mxu0 0.0
      %2310 = vmatprep.subr.mxu0 0.0
      %2311 = vmatpush1.msra.mxu0 0.0
      %2312 = vmatprep.subr.mxu0 0.0
      %2313 = vmatpush1.msra.mxu0 0.0
      %2314 = vmatprep.mubr.f32.mxu0 0.0
      %2315 = vmatmul.mubr.f32.gmra.mrb[0].mxu0 %v2203
      %v2316 = vpop.f32.mrb[0].mxu0
      %v2317 = vadd.f32 0.0, %v2316
      %v2318 = vpop.f32.mrb[0].mxu0
      %2319 = vmatprep.mubr.f32.mxu0 0.0
      %2320 = vmatmul.mubr.f32.gmra.mrb[0].mxu0 %v2206
      %v2321 = vpop.f32.mrb[0].mxu0
      %v2322 = vadd.f32 0.0, %v2321
      %v2323 = vpop.f32.mrb[0].mxu0
      %2324 = vmatprep.mubr.f32.mxu0 0.0
      %2325 = vmatmul.mubr.f32.gmra.mrb[0].mxu0 %v2209
      %v2326 = vpop.f32.mrb[0].mxu0
      %v2327 = vadd.f32 0.0, %v2326
      %v2328 = vpop.f32.mrb[0].mxu0
      %2329 = vmatprep.mubr.f32.mxu0 0.0
      %2330 = vmatmul.mubr.f32.gmra.mrb[0].mxu0 %v2212
      %v2331 = vpop.f32.mrb[0].mxu0
      %v2332 = vadd.f32 0.0, %v2331
      %v2333 = vpop.f32.mrb[0].mxu0
      %2334 = vmatprep.mubr.f32.mxu0 0.0
      %2335 = vmatmul.mubr.f32.gmra.mrb[0].mxu0 %v2215
      %v2336 = vpop.f32.mrb[0].mxu0
      %v2337 = vadd.f32 0.0, %v2336
      %v2338 = vpop.f32.mrb[0].mxu0
      %2339 = vmatprep.mubr.f32.mxu0 0.0
      %2340 = vmatmul.mubr.f32.gmra.mrb[0].mxu0 %v2218
      %v2341 = vpop.f32.mrb[0].mxu0
      %v2342 = vadd.f32 0.0, %v2341
      %v2343 = vpop.f32.mrb[0].mxu0
      %2344 = vmatprep.mubr.f32.mxu0 0.0
      %2345 = vmatmul.mubr.f32.gmra.mrb[0].mxu0 %v2221
      %v2346 = vpop.f32.mrb[0].mxu0
      %v2347 = vadd.f32 0.0, %v2346
      %v2348 = vpop.f32.mrb[0].mxu0
      %2349 = vmatprep.mubr.f32.mxu0 0.0
      %2350 = vmatmul.mubr.f32.gmra.mrb[0].mxu0 %v2224
      %v2351 = vpop.f32.mrb[0].mxu0
      %v2352 = vadd.f32 0.0, %v2351
      %v2353 = vpop.f32.mrb[0].mxu0
      %2354 = vmatprep.mubr.f32.mxu0 0.0
      %2355 = vmatmul.mubr.f32.gmra.mrb[0].mxu0 %v2227
      %v2356 = vpop.f32.mrb[0].mxu0
      %v2357 = vadd.f32 0.0, %v2356
      %v2358 = vpop.f32.mrb[0].mxu0
      %2359 = vmatprep.mubr.f32.mxu0 0.0
      %2360 = vmatmul.mubr.f32.gmra.mrb[0].mxu0 %v2230
      %v2361 = vpop.f32.mrb[0].mxu0
      %v2362 = vadd.f32 0.0, %v2361
      %v2363 = vpop.f32.mrb[0].mxu0
      %2364 = vmatprep.mubr.f32.mxu0 0.0
      %2365 = vmatmul.mubr.f32.gmra.mrb[0].mxu0 %v2233
      %v2366 = vpop.f32.mrb[0].mxu0
      %v2367 = vadd.f32 0.0, %v2366
      %v2368 = vpop.f32.mrb[0].mxu0
      %2369 = vmatprep.mubr.f32.mxu0 0.0
      %2370 = vmatmul.mubr.f32.gmra.mrb[0].mxu0 %v2236
      %v2371 = vpop.f32.mrb[0].mxu0
      %v2372 = vadd.f32 0.0, %v2371
      %v2373 = vpop.f32.mrb[0].mxu0
      %2374 = vmatprep.mubr.f32.mxu0 0.0
      %2375 = vmatmul.mubr.f32.gmra.mrb[0].mxu0 %v2239
      %v2376 = vpop.f32.mrb[0].mxu0
      %v2377 = vadd.f32 0.0, %v2376
      %v2378 = vpop.f32.mrb[0].mxu0
      %2379 = vmatprep.mubr.f32.mxu0 0.0
      %2380 = vmatmul.mubr.f32.gmra.mrb[0].mxu0 %v2242
      %v2381 = vpop.f32.mrb[0].mxu0
      %v2382 = vadd.f32 0.0, %v2381
      %v2383 = vpop.f32.mrb[0].mxu0
      %2384 = vmatprep.mubr.f32.mxu0 0.0
      %2385 = vmatmul.mubr.f32.gmra.mrb[0].mxu0 %v2245
      %v2386 = vpop.f32.mrb[0].mxu0
      %v2387 = vadd.f32 0.0, %v2386
      %v2388 = vpop.f32.mrb[0].mxu0
      %2389 = vmatprep.mubr.f32.mxu0 0.0
      %2390 = vmatmul.mubr.f32.gmra.mrb[0].mxu0 %v2248
      %v2391 = vpop.f32.mrb[0].mxu0
      %v2392 = vadd.f32 0.0, %v2391
      %v2393 = vpop.f32.mrb[0].mxu0
      %2394 = vdwg.mxu0
      %v2395 = vadd.f32 %v2167, %v2317
      %v2396 = vadd.f32 %v2168, %v2322
      %v2397 = vadd.f32 %v2169, %v2327
      %v2398 = vadd.f32 %v2170, %v2332
      %v2399 = vadd.f32 %v2171, %v2337
      %v2400 = vadd.f32 %v2172, %v2342
      %v2401 = vadd.f32 %v2173, %v2347
      %v2402 = vadd.f32 %v2174, %v2352
      %v2403 = vadd.f32 %v2175, %v2357
      %v2404 = vadd.f32 %v2176, %v2362
      %v2405 = vadd.f32 %v2177, %v2367
      %v2406 = vadd.f32 %v2178, %v2372
      %v2407 = vadd.f32 %v2179, %v2377
      %v2408 = vadd.f32 %v2180, %v2382
      %v2409 = vadd.f32 %v2181, %v2387
      %v2410 = vadd.f32 %v2182, %v2392
      %2411 = vst [vmem:[%s238] sm:$0xff] %v2395
      %2412 = vst [vmem:[%s238 + $0x8] sm:$0xff] %v2396
      %2413 = vst [vmem:[%s238 + $0x10] sm:$0xff] %v2397
      %2414 = vst [vmem:[%s238 + $0x18] sm:$0xff] %v2398
      %2415 = vst [vmem:[%s238 + $0x20] sm:$0xff] %v2399
      %2416 = vst [vmem:[%s238 + $0x28] sm:$0xff] %v2400
      %2417 = vst [vmem:[%s238 + $0x30] sm:$0xff] %v2401
      %2418 = vst [vmem:[%s238 + $0x38] sm:$0xff] %v2402
      %2419 = vst [vmem:[%s238 + $0x40] sm:$0xff] %v2403
      %2420 = vst [vmem:[%s238 + $0x48] sm:$0xff] %v2404
      %2421 = vst [vmem:[%s238 + $0x50] sm:$0xff] %v2405
      %2422 = vst [vmem:[%s238 + $0x58] sm:$0xff] %v2406
      %2423 = vst [vmem:[%s238 + $0x60] sm:$0xff] %v2407
      %2424 = vst [vmem:[%s238 + $0x68] sm:$0xff] %v2408
      %2425 = vst [vmem:[%s238 + $0x70] sm:$0xff] %v2409
      %2426 = vst [vmem:[%s238 + $0x78] sm:$0xff] %v2410
      %v2427 = vadd.f32 %v2395, %v2396
      %v2428 = vadd.f32 %v2427, %v2397
      %v2429 = vadd.f32 %v2428, %v2398
      %v2430 = vadd.f32 %v2429, %v2399
      %v2431 = vadd.f32 %v2430, %v2400
      %v2432 = vadd.f32 %v2431, %v2401
      %v2433 = vadd.f32 %v2432, %v2402
      %v2434 = vadd.f32 %v2433, %v2403
      %v2435 = vadd.f32 %v2434, %v2404
      %v2436 = vadd.f32 %v2435, %v2405
      %v2437 = vadd.f32 %v2436, %v2406
      %v2438 = vadd.f32 %v2437, %v2407
      %v2439 = vadd.f32 %v2438, %v2408
      %v2440 = vadd.f32 %v2439, %v2409
      %v2441 = vadd.f32 %v2440, %v2410
      %v2442 = vrot.slane %v2441, 4
      %v2443 = vadd.f32 %v2441, %v2442
      %v2444 = vrot.slane %v2443, 2
      %v2445 = vadd.f32 %v2443, %v2444
      %v2446 = vrot.slane %v2445, 1
      %v2447 = vadd.f32 %v2445, %v2446
      %v2448 = vmul.f32 %v2395, %v2395
      %v2449 = vmul.f32 %v2396, %v2396
      %v2450 = vmul.f32 %v2397, %v2397
      %v2451 = vmul.f32 %v2398, %v2398
      %v2452 = vmul.f32 %v2399, %v2399
      %v2453 = vmul.f32 %v2400, %v2400
      %v2454 = vmul.f32 %v2401, %v2401
      %v2455 = vmul.f32 %v2402, %v2402
      %v2456 = vmul.f32 %v2403, %v2403
      %v2457 = vmul.f32 %v2404, %v2404
      %v2458 = vmul.f32 %v2405, %v2405
      %v2459 = vmul.f32 %v2406, %v2406
      %v2460 = vmul.f32 %v2407, %v2407
      %v2461 = vmul.f32 %v2408, %v2408
      %v2462 = vmul.f32 %v2409, %v2409
      %v2463 = vmul.f32 %v2410, %v2410
      %v2464 = vadd.f32 %v2448, %v2449
      %v2465 = vadd.f32 %v2464, %v2450
      %v2466 = vadd.f32 %v2465, %v2451
      %v2467 = vadd.f32 %v2466, %v2452
      %v2468 = vadd.f32 %v2467, %v2453
      %v2469 = vadd.f32 %v2468, %v2454
      %v2470 = vadd.f32 %v2469, %v2455
      %v2471 = vadd.f32 %v2470, %v2456
      %v2472 = vadd.f32 %v2471, %v2457
      %v2473 = vadd.f32 %v2472, %v2458
      %v2474 = vadd.f32 %v2473, %v2459
      %v2475 = vadd.f32 %v2474, %v2460
      %v2476 = vadd.f32 %v2475, %v2461
      %v2477 = vadd.f32 %v2476, %v2462
      %v2478 = vadd.f32 %v2477, %v2463
      %v2479 = vrot.slane %v2478, 4
      %v2480 = vadd.f32 %v2478, %v2479
      %v2481 = vrot.slane %v2480, 2
      %v2482 = vadd.f32 %v2480, %v2481
      %v2483 = vrot.slane %v2482, 1
      %v2484 = vadd.f32 %v2482, %v2483
      %v2485 = vlaneseq
      %v2486 = vshrl.u32 %v2485, 7
      %vm2487 = vcmp.eq.s32.totalorder %v2486, 0
      %vm2488 = vcmp.eq.s32.totalorder %v2486, 1
      %v2489 = vsel %vm2488, %v2484, 0.0
      %v2490 = vsel %vm2487, %v2447, %v2489
      %2491 = vst [vmem:[%s243] sm:$0xff] %v2490
      %s2492 = smul.u32 2, %s17
      %p2493 = scmp.lt.s32.totalorder %s2492, 7
      %s2494 = scalar_select %p2493, %s2492, 7
      %s2495 = smul.addr %s2494, 8
      %s2496 = smul.addr %s2495, 8
      %s2497 = scalar_lea.vmem %s4, %s2496
      %p2498 = scmp.lt.s32.totalorder %s17, 3
      %s2499 = scalar_select %p2498, %s17, 3
      %s2500 = smul.addr %s2499, 8
      %s2501 = scalar_lea.vmem %s5, %s2500
      // Predicated region
      $region37: #{basic_block_forward.4} parent=35 // pred_check
        %p2502 = pneg %p124
      $region38: #{basic_block_forward.4} parent=35 // pred_check_branch
        %2504 = sbr.rel (%p2502) target = $region40
      $region39: #{basic_block_forward.4} parent=35 // pred_region
        %s2505 = smul.u32 2, %s17
      $region40: #{basic_block_forward.4} parent=35 // pred_fallthru
        _
      // Predicated region
      $region41: #{basic_block_forward.4} parent=35 // pred_check
        %p2506 = pneg %p150
      $region42: #{basic_block_forward.4} parent=35 // pred_check_branch
        %2508 = sbr.rel (%p2506) target = $region44
      $region43: #{basic_block_forward.4} parent=35 // pred_region
        _
      $region44: #{basic_block_forward.4} parent=35 // pred_fallthru
        _
    $region36: #{basic_block_forward.4} parent=5 // pred_fallthru
      _
    %p2509 = scmp.le.s32.totalorder 2, %s12
    // Predicated region
    $region45: #{basic_block_forward.4} parent=5 // pred_check
      %p2510 = pneg %p2509
    $region46: #{basic_block_forward.4} parent=5 // pred_check_branch
      %2512 = sbr.rel (%p2510) target = $region48
    $region47: #{basic_block_forward.4} parent=5 // pred_region
      %s2513 = ssub.s32 %s12, 2
      // Predicated region
      $region49: #{basic_block_forward.4} parent=47 // pred_check
        %p2514 = pneg %p130
      $region50: #{basic_block_forward.4} parent=47 // pred_check_branch
        %2516 = sbr.rel (%p2514) target = $region52
      $region51: #{basic_block_forward.4} parent=47 // pred_region
        %s2517 = smul.u32 2, %s18
        %p2518 = scmp.lt.s32.totalorder %s2517, 7
        %s2519 = scalar_select %p2518, %s2517, 7
        %s2520 = smul.addr %s2519, 8
        %s2521 = smul.addr %s2520, 8
        %s2522 = scalar_lea.vmem %s4, %s2521
      $region52: #{basic_block_forward.4} parent=47 // pred_fallthru
        _
      // Predicated region
      $region53: #{basic_block_forward.4} parent=47 // pred_check
        %p2523 = pneg %p156
      $region54: #{basic_block_forward.4} parent=47 // pred_check_branch
        %2525 = sbr.rel (%p2523) target = $region56
      $region55: #{basic_block_forward.4} parent=47 // pred_region
        %p2526 = scmp.lt.s32.totalorder %s18, 3
        %s2527 = scalar_select %p2526, %s18, 3
        %s2528 = smul.addr %s2527, 8
        %s2529 = scalar_lea.vmem %s5, %s2528
      $region56: #{basic_block_forward.4} parent=47 // pred_fallthru
        _
    $region48: #{basic_block_forward.4} parent=5 // pred_fallthru
      _
  $region6: #{basic_block_forward.4} parent=0 // loop_footer
    %s16 = sadd.s32 1, %s12
  $region7: #{basic_block_forward.4} parent=0 // loop_footer_branch
    %11 = sbr.rel target = $region3
  $region8: #{basic_block_forward.4} parent=0 // loop_exit
    _

// kernel: basic_block_forward.3
$region0: #{basic_block_forward.3}
  #allocation0 [shape = 'u32[]', space=smem, size = 0x4, offset = 0x4, fixed_abs, tag = 'smem constant byte address 0x4 - core index']
  #allocation1 [shape = 'u32[144,128]{1,0:T(1,128)}', space=vmem, size = 0x12000, scoped, tag = 'internal scratch']
  #allocation2 [shape = 'f32[2,10,24,16]{3,2,1,0:T(8,128)}', space=vmem, size = 0x3c000, scoped, tag = 'scratch operand']
  %s0 = inlined_call_operand.vmem [shape: f32[8,8,8,16], index: 0, kind: input, shape index: {}]
  %s1 = inlined_call_operand.vmem [shape: f32[9,16,128], index: 1, kind: input, shape index: {}]
  %s2 = inlined_call_operand.vmem [shape: f32[8,8,8,128], index: 2, kind: output, shape index: {0}]
  %s3 = inlined_call_operand.vmem [shape: f32[4,8,128], index: 3, kind: output, shape index: {1}]
  %4 = xla_tuple %s2, %s3
  %s5 = sld [smem:[#allocation0]]
  $region49: #{basic_block_forward.3} parent=0
    _
  %s7 = ssub.s32 1, %s5
  %s8 = scalar_select 0, %s7, %s5
  loop: start=0, step=1, limit=6
  $region2: #{basic_block_forward.3} parent=0 // loop_pre_header
    _
  $region3: #{basic_block_forward.3} parent=0 // loop_header
    %s10 = sphi 0, %s14
    %p11 = scmp.ge.s32.totalorder %s10, 6
    %s20 = sphi 0, %s22
    %s23 = sphi 0, %s20
    %s24 = sphi 0, %s23
    %s40 = sphi 0, %s24
    %s44 = sphi 0, %s44
    %s46 = sphi 0, %s44
    %s47 = sphi 0, %s46
    %s61 = sphi 0, %s47
    %s67 = sphi 0, %s69
    %s70 = sphi 0, %s67
    %s71 = sphi 0, %s70
    %s87 = sphi 0, %s71
    %s93 = sphi 0, %s95
    %s96 = sphi 0, %s93
    %s97 = sphi 0, %s96
    %s113 = sphi 0, %s97
  $region4: #{basic_block_forward.3} parent=0 // loop_header_branch
    %13 = sbr.rel (%p11) target = $region8
  $region5: #{basic_block_forward.3} parent=0 // loop_body
    %s15 = ssub.s32 %s10, 1
    %s16 = ssub.s32 %s10, 2
    %s17 = sadd.s32 %s10, 1
    %s18 = ssub.s32 %s10, %s17
    %p19 = scmp.eq.s32.totalorder %s18, 0
    %s21 = sadd.s32 %s20, 1
    %s22 = scalar_select %p19, %s20, %s21
    %p25 = pneg %p19
    %p26 = scmp.eq.s32.totalorder %s10, 3
    %p27 = por %p25, %p26
    %p28 = scmp.ne.s32.totalorder %s20, %s23
    %p29 = scmp.eq.s32.totalorder %s10, 0
    %p30 = por %p28, %p29
    %p31 = scmp.ne.s32.totalorder %s20, %s23
    %p32 = scmp.eq.s32.totalorder %s15, 3
    %p33 = por %p31, %p32
    %p34 = scmp.ne.s32.totalorder %s23, %s24
    %p35 = scmp.eq.s32.totalorder %s15, 0
    %p36 = por %p34, %p35
    %p37 = scmp.ne.s32.totalorder %s23, %s24
    %p38 = scmp.eq.s32.totalorder %s16, 3
    %p39 = por %p37, %p38
    %p41 = scmp.ne.s32.totalorder %s24, %s40
    %p42 = scmp.eq.s32.totalorder %s16, 0
    %p43 = por %p41, %p42
    %s45 = sadd.s32 %s44, 1
    %p48 = scmp.eq.s32.totalorder %s10, 3
    %p49 = scmp.ne.s32.totalorder %s44, %s46
    %p50 = scmp.eq.s32.totalorder %s10, 0
    %p51 = por %p49, %p50
    %p52 = scmp.ne.s32.totalorder %s44, %s46
    %p53 = scmp.eq.s32.totalorder %s15, 3
    %p54 = por %p52, %p53
    %p55 = scmp.ne.s32.totalorder %s46, %s47
    %p56 = scmp.eq.s32.totalorder %s15, 0
    %p57 = por %p55, %p56
    %p58 = scmp.ne.s32.totalorder %s46, %s47
    %p59 = scmp.eq.s32.totalorder %s16, 3
    %p60 = por %p58, %p59
    %p62 = scmp.ne.s32.totalorder %s47, %s61
    %p63 = scmp.eq.s32.totalorder %s16, 0
    %p64 = por %p62, %p63
    %s65 = ssub.s32 %s10, %s17
    %p66 = scmp.eq.s32.totalorder %s65, 0
    %s68 = sadd.s32 %s67, 1
    %s69 = scalar_select %p66, %s67, %s68
    %p72 = pneg %p66
    %p73 = scmp.eq.s32.totalorder %s10, 3
    %p74 = por %p72, %p73
    %p75 = scmp.ne.s32.totalorder %s67, %s70
    %p76 = scmp.eq.s32.totalorder %s10, 0
    %p77 = por %p75, %p76
    %p78 = scmp.ne.s32.totalorder %s67, %s70
    %p79 = scmp.eq.s32.totalorder %s15, 3
    %p80 = por %p78, %p79
    %p81 = scmp.ne.s32.totalorder %s70, %s71
    %p82 = scmp.eq.s32.totalorder %s15, 0
    %p83 = por %p81, %p82
    %p84 = scmp.ne.s32.totalorder %s70, %s71
    %p85 = scmp.eq.s32.totalorder %s16, 3
    %p86 = por %p84, %p85
    %p88 = scmp.ne.s32.totalorder %s71, %s87
    %p89 = scmp.eq.s32.totalorder %s16, 0
    %p90 = por %p88, %p89
    %s91 = ssub.s32 %s10, %s17
    %p92 = scmp.eq.s32.totalorder %s91, 0
    %s94 = sadd.s32 %s93, 1
    %s95 = scalar_select %p92, %s93, %s94
    %p98 = pneg %p92
    %p99 = scmp.eq.s32.totalorder %s10, 3
    %p100 = por %p98, %p99
    %p101 = scmp.ne.s32.totalorder %s93, %s96
    %p102 = scmp.eq.s32.totalorder %s10, 0
    %p103 = por %p101, %p102
    %p104 = scmp.ne.s32.totalorder %s93, %s96
    %p105 = scmp.eq.s32.totalorder %s15, 3
    %p106 = por %p104, %p105
    %p107 = scmp.ne.s32.totalorder %s96, %s97
    %p108 = scmp.eq.s32.totalorder %s15, 0
    %p109 = por %p107, %p108
    %p110 = scmp.ne.s32.totalorder %s96, %s97
    %p111 = scmp.eq.s32.totalorder %s16, 3
    %p112 = por %p110, %p111
    %p114 = scmp.ne.s32.totalorder %s97, %s113
    %p115 = scmp.eq.s32.totalorder %s16, 0
    %p116 = por %p114, %p115
    %p117 = scmp.le.s32.totalorder 1, %s10
    %p118 = scmp.lt.s32.totalorder %s10, 5
    %p119 = pnand %p117, %p118
    %p120 = pneg %p119
    // Predicated region
    $region9: #{basic_block_forward.3} parent=5 // pred_check
      _
    $region10: #{basic_block_forward.3} parent=5 // pred_check_branch
      %122 = sbr.rel (%p119) target = $region12
    $region11: #{basic_block_forward.3} parent=5 // pred_region
      %s123 = ssub.s32 %s10, 1
      // Predicated region
      $region13: #{basic_block_forward.3} parent=11 // pred_check
        %p124 = pneg %p57
      $region14: #{basic_block_forward.3} parent=11 // pred_check_branch
        %126 = sbr.rel (%p124) target = $region16
      $region15: #{basic_block_forward.3} parent=11 // pred_region
        _
      $region16: #{basic_block_forward.3} parent=11 // pred_fallthru
        _
    $region12: #{basic_block_forward.3} parent=5 // pred_fallthru
      _
    %p127 = scmp.lt.s32.totalorder %s10, 4
    // Predicated region
    $region17: #{basic_block_forward.3} parent=5 // pred_check
      %p128 = pneg %p127
    $region18: #{basic_block_forward.3} parent=5 // pred_check_branch
      %130 = sbr.rel (%p128) target = $region20
    $region19: #{basic_block_forward.3} parent=5 // pred_region
      // Predicated region
      $region21: #{basic_block_forward.3} parent=19 // pred_check
        %p131 = pneg %p30
      $region22: #{basic_block_forward.3} parent=19 // pred_check_branch
        %133 = sbr.rel (%p131) target = $region24
      $region23: #{basic_block_forward.3} parent=19 // pred_region
        %s134 = smul.u32 2, %s10
        %p135 = scmp.lt.s32.totalorder %s134, 7
        %s136 = scalar_select %p135, %s134, 7
        %s137 = smul.addr %s136, 8
        %s138 = smul.addr %s137, 8
        %s139 = scalar_lea.vmem %s0, %s138
        %s140 = smul.u32 2, %s10
      $region24: #{basic_block_forward.3} parent=19 // pred_fallthru
        _
    $region20: #{basic_block_forward.3} parent=5 // pred_fallthru
      _
    %p141 = scmp.le.s32.totalorder 1, %s10
    %p142 = scmp.lt.s32.totalorder %s10, 5
    %p143 = pnand %p141, %p142
    %p144 = pneg %p143
    // Predicated region
    $region25: #{basic_block_forward.3} parent=5 // pred_check
      _
    $region26: #{basic_block_forward.3} parent=5 // pred_check_branch
      %146 = sbr.rel (%p143) target = $region28
    $region27: #{basic_block_forward.3} parent=5 // pred_region
      %s147 = ssub.s32 %s10, 1
      %s148 = smul.u32 2, %s15
      %p149 = scmp.lt.s32.totalorder %s148, 7
      %s150 = scalar_select %p149, %s148, 7
      %s151 = smul.addr %s150, 8
      %s152 = smul.addr %s151, 8
      %s153 = scalar_lea.vmem %s0, %s152
      %p154 = pneg %p36
      %p155 = pneg %p33
      %p156 = pneg %p57
      %p157 = pneg %p54
      %p158 = pneg %p83
      %p159 = pneg %p80
      %s160 = smul.u32 2, %s15
      %p161 = scmp.lt.s32.totalorder %s160, 7
      %s162 = scalar_select %p161, %s160, 7
      %s163 = smul.addr %s162, 8
      %s164 = smul.addr %s163, 8
      %s165 = scalar_lea.vmem %s2, %s164
      %p166 = pneg %p109
      %p167 = pneg %p106
      %p168 = scmp.lt.s32.totalorder %s15, 3
      %s169 = scalar_select %p168, %s15, 3
      %s170 = smul.addr %s169, 8
      %s171 = scalar_lea.vmem %s3, %s170
      %s172 = smul.u32 2, %s15
      %p173 = scmp.lt.s32.totalorder %s172, 7
      %s174 = scalar_select %p173, %s172, 7
      %s175 = smul.addr %s174, 8
      %s176 = smul.addr %s175, 8
      %s177 = scalar_lea.vmem %s0, %s176
      %s178 = smul.u32 2, %s15
      %s179 = smul.u32 2, %s15
      %p180 = scmp.lt.s32.totalorder %s179, 7
      %s181 = scalar_select %p180, %s179, 7
      %s182 = smul.addr %s181, 8
      %s183 = smul.addr %s182, 8
      %s184 = scalar_lea.vmem %s2, %s183
      %s185 = smul.u32 2, %s15
      %p186 = scmp.lt.s32.totalorder %s15, 3
      %s187 = scalar_select %p186, %s15, 3
      %s188 = smul.addr %s187, 8
      %s189 = scalar_lea.vmem %s3, %s188
      %vm190 = vcmask 130048
      %191 = vst.msk [vmem:[#allocation2 + $0x7] sm:$0xff] %vm190, 0.0
      %vm192 = vcmask 123904
      %193 = vst.msk [vmem:[#allocation2 + $0xf] sm:$0x3] %vm192, 0.0
      %194 = vst.msk [vmem:[#allocation2 + $0xf7] sm:$0xff] %vm190, 0.0
      %195 = vst.msk [vmem:[#allocation2 + $0xff] sm:$0x3] %vm192, 0.0
      %s196 = scalar_lea.vmem [#allocation2], 216
      %197 = vst.msk [vmem:[%s196 + $0x7] sm:$0xff] %vm190, 0.0
      %198 = vst.msk [vmem:[%s196 + $0xf] sm:$0x3] %vm192, 0.0
      %199 = vst.msk [vmem:[%s196 + $0xf7] sm:$0xff] %vm190, 0.0
      %200 = vst.msk [vmem:[%s196 + $0xff] sm:$0x3] %vm192, 0.0
      %vm201 = vcmask 122880
      %202 = vst.msk [vmem:[#allocation2 + $0x7] sm:$0x1] %vm201, 0.0
      %203 = vst.msk [vmem:[#allocation2 + $0x1f] sm:$0x1] %vm201, 0.0
      %204 = vst.msk [vmem:[#allocation2 + $0x37] sm:$0x1] %vm201, 0.0
      %205 = vst.msk [vmem:[#allocation2 + $0x4f] sm:$0x1] %vm201, 0.0
      %206 = vst.msk [vmem:[#allocation2 + $0x67] sm:$0x1] %vm201, 0.0
      %207 = vst.msk [vmem:[#allocation2 + $0x7f] sm:$0x1] %vm201, 0.0
      %208 = vst.msk [vmem:[#allocation2 + $0x97] sm:$0x1] %vm201, 0.0
      %209 = vst.msk [vmem:[#allocation2 + $0xaf] sm:$0x1] %vm201, 0.0
      %210 = vst.msk [vmem:[#allocation2 + $0xc7] sm:$0x1] %vm201, 0.0
      %211 = vst.msk [vmem:[#allocation2 + $0xdf] sm:$0x1] %vm201, 0.0
      %212 = vst.msk [vmem:[#allocation2 + $0xf7] sm:$0x1] %vm201, 0.0
      %213 = vst.msk [vmem:[#allocation2 + $0x10f] sm:$0x1] %vm201, 0.0
      %214 = vst.msk [vmem:[#allocation2 + $0x127] sm:$0x1] %vm201, 0.0
      %215 = vst.msk [vmem:[#allocation2 + $0x13f] sm:$0x1] %vm201, 0.0
      %216 = vst.msk [vmem:[#allocation2 + $0x157] sm:$0x1] %vm201, 0.0
      %217 = vst.msk [vmem:[#allocation2 + $0x16f] sm:$0x1] %vm201, 0.0
      %218 = vst.msk [vmem:[#allocation2 + $0x187] sm:$0x1] %vm201, 0.0
      %219 = vst.msk [vmem:[#allocation2 + $0x19f] sm:$0x1] %vm201, 0.0
      %220 = vst.msk [vmem:[#allocation2 + $0x1b7] sm:$0x1] %vm201, 0.0
      %221 = vst.msk [vmem:[#allocation2 + $0x1cf] sm:$0x1] %vm201, 0.0
      %222 = vst.msk [vmem:[#allocation2 + $0x10] sm:$0x1] %vm201, 0.0
      %223 = vst.msk [vmem:[#allocation2 + $0x28] sm:$0x1] %vm201, 0.0
      %224 = vst.msk [vmem:[#allocation2 + $0x40] sm:$0x1] %vm201, 0.0
      %225 = vst.msk [vmem:[#allocation2 + $0x58] sm:$0x1] %vm201, 0.0
      %226 = vst.msk [vmem:[#allocation2 + $0x70] sm:$0x1] %vm201, 0.0
      %227 = vst.msk [vmem:[#allocation2 + $0x88] sm:$0x1] %vm201, 0.0
      %228 = vst.msk [vmem:[#allocation2 + $0xa0] sm:$0x1] %vm201, 0.0
      %229 = vst.msk [vmem:[#allocation2 + $0xb8] sm:$0x1] %vm201, 0.0
      %230 = vst.msk [vmem:[#allocation2 + $0xd0] sm:$0x1] %vm201, 0.0
      %231 = vst.msk [vmem:[#allocation2 + $0xe8] sm:$0x1] %vm201, 0.0
      %232 = vst.msk [vmem:[#allocation2 + $0x100] sm:$0x1] %vm201, 0.0
      %233 = vst.msk [vmem:[#allocation2 + $0x118] sm:$0x1] %vm201, 0.0
      %234 = vst.msk [vmem:[#allocation2 + $0x130] sm:$0x1] %vm201, 0.0
      %235 = vst.msk [vmem:[#allocation2 + $0x148] sm:$0x1] %vm201, 0.0
      %236 = vst.msk [vmem:[#allocation2 + $0x160] sm:$0x1] %vm201, 0.0
      %237 = vst.msk [vmem:[#allocation2 + $0x178] sm:$0x1] %vm201, 0.0
      %238 = vst.msk [vmem:[#allocation2 + $0x190] sm:$0x1] %vm201, 0.0
      %239 = vst.msk [vmem:[#allocation2 + $0x1a8] sm:$0x1] %vm201, 0.0
      %240 = vst.msk [vmem:[#allocation2 + $0x1c0] sm:$0x1] %vm201, 0.0
      %241 = vst.msk [vmem:[#allocation2 + $0x1d8] sm:$0x1] %vm201, 0.0
      %v242 = vld [vmem:[%s177] sm:$0xff]
      %v243 = vld [vmem:[%s177 + $0x8] sm:$0xff]
      %v244 = vld [vmem:[%s177 + $0x10] sm:$0xff]
      %v245 = vld [vmem:[%s177 + $0x18] sm:$0xff]
      %v246 = vld [vmem:[%s177 + $0x20] sm:$0xff]
      %v247 = vld [vmem:[%s177 + $0x28] sm:$0xff]
      %v248 = vld [vmem:[%s177 + $0x30] sm:$0xff]
      %v249 = vld [vmem:[%s177 + $0x38] sm:$0xff]
      %v250 = vld [vmem:[%s177 + $0x40] sm:$0xff]
      %v251 = vld [vmem:[%s177 + $0x48] sm:$0xff]
      %v252 = vld [vmem:[%s177 + $0x50] sm:$0xff]
      %v253 = vld [vmem:[%s177 + $0x58] sm:$0xff]
      %v254 = vld [vmem:[%s177 + $0x60] sm:$0xff]
      %v255 = vld [vmem:[%s177 + $0x68] sm:$0xff]
      %v256 = vld [vmem:[%s177 + $0x70] sm:$0xff]
      %v257 = vld [vmem:[%s177 + $0x78] sm:$0xff]
      %s258 = scalar_lea.vmem [#allocation2], 24
      %259 = vst.msk [vmem:[%s258 + $0x8] sm:$0xff] %vm190, %v242
      %260 = vst.msk [vmem:[%s258 + $0x20] sm:$0xff] %vm190, %v243
      %261 = vst.msk [vmem:[%s258 + $0x38] sm:$0xff] %vm190, %v244
      %262 = vst.msk [vmem:[%s258 + $0x50] sm:$0xff] %vm190, %v245
      %263 = vst.msk [vmem:[%s258 + $0x68] sm:$0xff] %vm190, %v246
      %264 = vst.msk [vmem:[%s258 + $0x80] sm:$0xff] %vm190, %v247
      %265 = vst.msk [vmem:[%s258 + $0x98] sm:$0xff] %vm190, %v248
      %266 = vst.msk [vmem:[%s258 + $0xb0] sm:$0xff] %vm190, %v249
      %267 = vst.msk [vmem:[%s258 + $0xf8] sm:$0xff] %vm190, %v250
      %268 = vst.msk [vmem:[%s258 + $0x110] sm:$0xff] %vm190, %v251
      %269 = vst.msk [vmem:[%s258 + $0x128] sm:$0xff] %vm190, %v252
      %270 = vst.msk [vmem:[%s258 + $0x140] sm:$0xff] %vm190, %v253
      %271 = vst.msk [vmem:[%s258 + $0x158] sm:$0xff] %vm190, %v254
      %272 = vst.msk [vmem:[%s258 + $0x170] sm:$0xff] %vm190, %v255
      %273 = vst.msk [vmem:[%s258 + $0x188] sm:$0xff] %vm190, %v256
      %274 = vst.msk [vmem:[%s258 + $0x1a0] sm:$0xff] %vm190, %v257
      %v275 = vld [vmem:[#allocation2 + $0x7] sm:$0xff]
      %v276 = vld [vmem:[#allocation2 + $0x1f] sm:$0xff]
      %v277 = vld [vmem:[#allocation2 + $0x37] sm:$0xff]
      %v278 = vld [vmem:[#allocation2 + $0x4f] sm:$0xff]
      %v279 = vld [vmem:[#allocation2 + $0x67] sm:$0xff]
      %v280 = vld [vmem:[#allocation2 + $0x7f] sm:$0xff]
      %v281 = vld [vmem:[#allocation2 + $0x97] sm:$0xff]
      %v282 = vld [vmem:[#allocation2 + $0xaf] sm:$0xff]
      %v283 = vld [vmem:[#allocation2 + $0xf7] sm:$0xff]
      %v284 = vld [vmem:[#allocation2 + $0x10f] sm:$0xff]
      %v285 = vld [vmem:[#allocation2 + $0x127] sm:$0xff]
      %v286 = vld [vmem:[#allocation2 + $0x13f] sm:$0xff]
      %v287 = vld [vmem:[#allocation2 + $0x157] sm:$0xff]
      %v288 = vld [vmem:[#allocation2 + $0x16f] sm:$0xff]
      %v289 = vld [vmem:[#allocation2 + $0x187] sm:$0xff]
      %v290 = vld [vmem:[#allocation2 + $0x19f] sm:$0xff]
      %v291 = vld [vmem:[%s1] sm:$0xff]
      %v292 = vld [vmem:[%s1 + $0x8] sm:$0xff]
      %v293 = vld [vmem:[#allocation2 + $0x8] sm:$0xff]
      %v294 = vld [vmem:[#allocation2 + $0x20] sm:$0xff]
      %v295 = vld [vmem:[#allocation2 + $0x38] sm:$0xff]
      %v296 = vld [vmem:[#allocation2 + $0x50] sm:$0xff]
      %v297 = vld [vmem:[#allocation2 + $0x68] sm:$0xff]
      %v298 = vld [vmem:[#allocation2 + $0x80] sm:$0xff]
      %v299 = vld [vmem:[#allocation2 + $0x98] sm:$0xff]
      %v300 = vld [vmem:[#allocation2 + $0xb0] sm:$0xff]
      %v301 = vld [vmem:[#allocation2 + $0xf8] sm:$0xff]
      %v302 = vld [vmem:[#allocation2 + $0x110] sm:$0xff]
      %v303 = vld [vmem:[#allocation2 + $0x128] sm:$0xff]
      %v304 = vld [vmem:[#allocation2 + $0x140] sm:$0xff]
      %v305 = vld [vmem:[#allocation2 + $0x158] sm:$0xff]
      %v306 = vld [vmem:[#allocation2 + $0x170] sm:$0xff]
      %v307 = vld [vmem:[#allocation2 + $0x188] sm:$0xff]
      %v308 = vld [vmem:[#allocation2 + $0x1a0] sm:$0xff]
      %s309 = scalar_lea.vmem %s1, 16
      %v310 = vld [vmem:[%s309] sm:$0xff]
      %v311 = vld [vmem:[%s309 + $0x8] sm:$0xff]
      %v313 = vsel %vm190, %v293, 0
      %v316 = vsel %vm190, %v294, 0
      %v319 = vsel %vm190, %v295, 0
      %v322 = vsel %vm190, %v296, 0
      %v325 = vsel %vm190, %v297, 0
      %v328 = vsel %vm190, %v298, 0
      %v331 = vsel %vm190, %v299, 0
      %v334 = vsel %vm190, %v300, 0
      %v337 = vsel %vm190, %v301, 0
      %v340 = vsel %vm190, %v302, 0
      %v343 = vsel %vm190, %v303, 0
      %v346 = vsel %vm190, %v304, 0
      %v349 = vsel %vm190, %v305, 0
      %v352 = vsel %vm190, %v306, 0
      %v355 = vsel %vm190, %v307, 0
      %v358 = vsel %vm190, %v308, 0
      %360 = vmatprep.subr.mxu0 0.0
      %361 = vmatpush1.msra.mxu0 %v310
      %362 = vmatprep.subr.mxu0 0.0
      %363 = vmatpush1.msra.mxu0 %v311
      %364 = vmatprep.subr.mxu0 0.0
      %365 = vmatpush1.msra.mxu0 0.0
      %366 = vmatprep.subr.mxu0 0.0
      %367 = vmatpush1.msra.mxu0 0.0
      %368 = vmatprep.subr.mxu0 0.0
      %369 = vmatpush1.msra.mxu0 0.0
      %370 = vmatprep.subr.mxu0 0.0
      %371 = vmatpush1.msra.mxu0 0.0
      %372 = vmatprep.subr.mxu0 0.0
      %373 = vmatpush1.msra.mxu0 0.0
      %374 = vmatprep.subr.mxu0 0.0
      %375 = vmatpush1.msra.mxu0 0.0
      %376 = vmatprep.subr.mxu0 0.0
      %377 = vmatpush1.msra.mxu0 0.0
      %378 = vmatprep.subr.mxu0 0.0
      %379 = vmatpush1.msra.mxu0 0.0
      %380 = vmatprep.subr.mxu0 0.0
      %381 = vmatpush1.msra.mxu0 0.0
      %382 = vmatprep.subr.mxu0 0.0
      %383 = vmatpush1.msra.mxu0 0.0
      %384 = vmatprep.subr.mxu0 0.0
      %385 = vmatpush1.msra.mxu0 0.0
      %386 = vmatprep.subr.mxu0 0.0
      %387 = vmatpush1.msra.mxu0 0.0
      %388 = vmatprep.subr.mxu0 0.0
      %389 = vmatpush1.msra.mxu0 0.0
      %390 = vmatprep.subr.mxu0 0.0
      %391 = vmatpush1.msra.mxu0 0.0
      %392 = vmatprep.subr.mxu0 0.0
      %393 = vmatpush1.msra.mxu0 0.0
      %394 = vmatprep.subr.mxu0 0.0
      %395 = vmatpush1.msra.mxu0 0.0
      %396 = vmatprep.subr.mxu0 0.0
      %397 = vmatpush1.msra.mxu0 0.0
      %398 = vmatprep.subr.mxu0 0.0
      %399 = vmatpush1.msra.mxu0 0.0
      %400 = vmatprep.subr.mxu0 0.0
      %401 = vmatpush1.msra.mxu0 0.0
      %402 = vmatprep.subr.mxu0 0.0
      %403 = vmatpush1.msra.mxu0 0.0
      %404 = vmatprep.subr.mxu0 0.0
      %405 = vmatpush1.msra.mxu0 0.0
      %406 = vmatprep.subr.mxu0 0.0
      %407 = vmatpush1.msra.mxu0 0.0
      %408 = vmatprep.subr.mxu0 0.0
      %409 = vmatpush1.msra.mxu0 0.0
      %410 = vmatprep.subr.mxu0 0.0
      %411 = vmatpush1.msra.mxu0 0.0
      %412 = vmatprep.subr.mxu0 0.0
      %413 = vmatpush1.msra.mxu0 0.0
      %414 = vmatprep.subr.mxu0 0.0
      %415 = vmatpush1.msra.mxu0 0.0
      %416 = vmatprep.subr.mxu0 0.0
      %417 = vmatpush1.msra.mxu0 0.0
      %418 = vmatprep.subr.mxu0 0.0
      %419 = vmatpush1.msra.mxu0 0.0
      %420 = vmatprep.subr.mxu0 0.0
      %421 = vmatpush1.msra.mxu0 0.0
      %422 = vmatprep.subr.mxu0 0.0
      %423 = vmatpush1.msra.mxu0 0.0
      %424 = vmatprep.mubr.f32.mxu0 0.0
      %425 = vmatmul.mubr.f32.gmra.mrb[0].mxu0 %v313
      %v426 = vpop.f32.mrb[0].mxu0
      %v427 = vadd.f32 0.0, %v426
      %v428 = vpop.f32.mrb[0].mxu0
      %429 = vmatprep.mubr.f32.mxu0 0.0
      %430 = vmatmul.mubr.f32.gmra.mrb[0].mxu0 %v316
      %v431 = vpop.f32.mrb[0].mxu0
      %v432 = vadd.f32 0.0, %v431
      %v433 = vpop.f32.mrb[0].mxu0
      %434 = vmatprep.mubr.f32.mxu0 0.0
      %435 = vmatmul.mubr.f32.gmra.mrb[0].mxu0 %v319
      %v436 = vpop.f32.mrb[0].mxu0
      %v437 = vadd.f32 0.0, %v436
      %v438 = vpop.f32.mrb[0].mxu0
      %439 = vmatprep.mubr.f32.mxu0 0.0
      %440 = vmatmul.mubr.f32.gmra.mrb[0].mxu0 %v322
      %v441 = vpop.f32.mrb[0].mxu0
      %v442 = vadd.f32 0.0, %v441
      %v443 = vpop.f32.mrb[0].mxu0
      %444 = vmatprep.mubr.f32.mxu0 0.0
      %445 = vmatmul.mubr.f32.gmra.mrb[0].mxu0 %v325
      %v446 = vpop.f32.mrb[0].mxu0
      %v447 = vadd.f32 0.0, %v446
      %v448 = vpop.f32.mrb[0].mxu0
      %449 = vmatprep.mubr.f32.mxu0 0.0
      %450 = vmatmul.mubr.f32.gmra.mrb[0].mxu0 %v328
      %v451 = vpop.f32.mrb[0].mxu0
      %v452 = vadd.f32 0.0, %v451
      %v453 = vpop.f32.mrb[0].mxu0
      %454 = vmatprep.mubr.f32.mxu0 0.0
      %455 = vmatmul.mubr.f32.gmra.mrb[0].mxu0 %v331
      %v456 = vpop.f32.mrb[0].mxu0
      %v457 = vadd.f32 0.0, %v456
      %v458 = vpop.f32.mrb[0].mxu0
      %459 = vmatprep.mubr.f32.mxu0 0.0
      %460 = vmatmul.mubr.f32.gmra.mrb[0].mxu0 %v334
      %v461 = vpop.f32.mrb[0].mxu0
      %v462 = vadd.f32 0.0, %v461
      %v463 = vpop.f32.mrb[0].mxu0
      %464 = vmatprep.mubr.f32.mxu0 0.0
      %465 = vmatmul.mubr.f32.gmra.mrb[0].mxu0 %v337
      %v466 = vpop.f32.mrb[0].mxu0
      %v467 = vadd.f32 0.0, %v466
      %v468 = vpop.f32.mrb[0].mxu0
      %469 = vmatprep.mubr.f32.mxu0 0.0
      %470 = vmatmul.mubr.f32.gmra.mrb[0].mxu0 %v340
      %v471 = vpop.f32.mrb[0].mxu0
      %v472 = vadd.f32 0.0, %v471
      %v473 = vpop.f32.mrb[0].mxu0
      %474 = vmatprep.mubr.f32.mxu0 0.0
      %475 = vmatmul.mubr.f32.gmra.mrb[0].mxu0 %v343
      %v476 = vpop.f32.mrb[0].mxu0
      %v477 = vadd.f32 0.0, %v476
      %v478 = vpop.f32.mrb[0].mxu0
      %479 = vmatprep.mubr.f32.mxu0 0.0
      %480 = vmatmul.mubr.f32.gmra.mrb[0].mxu0 %v346
      %v481 = vpop.f32.mrb[0].mxu0
      %v482 = vadd.f32 0.0, %v481
      %v483 = vpop.f32.mrb[0].mxu0
      %484 = vmatprep.mubr.f32.mxu0 0.0
      %485 = vmatmul.mubr.f32.gmra.mrb[0].mxu0 %v349
      %v486 = vpop.f32.mrb[0].mxu0
      %v487 = vadd.f32 0.0, %v486
      %v488 = vpop.f32.mrb[0].mxu0
      %489 = vmatprep.mubr.f32.mxu0 0.0
      %490 = vmatmul.mubr.f32.gmra.mrb[0].mxu0 %v352
      %v491 = vpop.f32.mrb[0].mxu0
      %v492 = vadd.f32 0.0, %v491
      %v493 = vpop.f32.mrb[0].mxu0
      %494 = vmatprep.mubr.f32.mxu0 0.0
      %495 = vmatmul.mubr.f32.gmra.mrb[0].mxu0 %v355
      %v496 = vpop.f32.mrb[0].mxu0
      %v497 = vadd.f32 0.0, %v496
      %v498 = vpop.f32.mrb[0].mxu0
      %499 = vmatprep.mubr.f32.mxu0 0.0
      %500 = vmatmul.mubr.f32.gmra.mrb[0].mxu0 %v358
      %v501 = vpop.f32.mrb[0].mxu0
      %v502 = vadd.f32 0.0, %v501
      %v503 = vpop.f32.mrb[0].mxu0
      %504 = vdwg.mxu0
      %v506 = vsel %vm190, %v275, 0
      %v509 = vsel %vm190, %v276, 0
      %v512 = vsel %vm190, %v277, 0
      %v515 = vsel %vm190, %v278, 0
      %v518 = vsel %vm190, %v279, 0
      %v521 = vsel %vm190, %v280, 0
      %v524 = vsel %vm190, %v281, 0
      %v527 = vsel %vm190, %v282, 0
      %v530 = vsel %vm190, %v283, 0
      %v533 = vsel %vm190, %v284, 0
      %v536 = vsel %vm190, %v285, 0
      %v539 = vsel %vm190, %v286, 0
      %v542 = vsel %vm190, %v287, 0
      %v545 = vsel %vm190, %v288, 0
      %v548 = vsel %vm190, %v289, 0
      %v551 = vsel %vm190, %v290, 0
      %553 = vmatprep.subr.mxu0 0.0
      %554 = vmatpush1.msra.mxu0 %v291
      %555 = vmatprep.subr.mxu0 0.0
      %556 = vmatpush1.msra.mxu0 %v292
      %557 = vmatprep.subr.mxu0 0.0
      %558 = vmatpush1.msra.mxu0 0.0
      %559 = vmatprep.subr.mxu0 0.0
      %560 = vmatpush1.msra.mxu0 0.0
      %561 = vmatprep.subr.mxu0 0.0
      %562 = vmatpush1.msra.mxu0 0.0
      %563 = vmatprep.subr.mxu0 0.0
      %564 = vmatpush1.msra.mxu0 0.0
      %565 = vmatprep.subr.mxu0 0.0
      %566 = vmatpush1.msra.mxu0 0.0
      %567 = vmatprep.subr.mxu0 0.0
      %568 = vmatpush1.msra.mxu0 0.0
      %569 = vmatprep.subr.mxu0 0.0
      %570 = vmatpush1.msra.mxu0 0.0
      %571 = vmatprep.subr.mxu0 0.0
      %572 = vmatpush1.msra.mxu0 0.0
      %573 = vmatprep.subr.mxu0 0.0
      %574 = vmatpush1.msra.mxu0 0.0
      %575 = vmatprep.subr.mxu0 0.0
      %576 = vmatpush1.msra.mxu0 0.0
      %577 = vmatprep.subr.mxu0 0.0
      %578 = vmatpush1.msra.mxu0 0.0
      %579 = vmatprep.subr.mxu0 0.0
      %580 = vmatpush1.msra.mxu0 0.0
      %581 = vmatprep.subr.mxu0 0.0
      %582 = vmatpush1.msra.mxu0 0.0
      %583 = vmatprep.subr.mxu0 0.0
      %584 = vmatpush1.msra.mxu0 0.0
      %585 = vmatprep.subr.mxu0 0.0
      %586 = vmatpush1.msra.mxu0 0.0
      %587 = vmatprep.subr.mxu0 0.0
      %588 = vmatpush1.msra.mxu0 0.0
      %589 = vmatprep.subr.mxu0 0.0
      %590 = vmatpush1.msra.mxu0 0.0
      %591 = vmatprep.subr.mxu0 0.0
      %592 = vmatpush1.msra.mxu0 0.0
      %593 = vmatprep.subr.mxu0 0.0
      %594 = vmatpush1.msra.mxu0 0.0
      %595 = vmatprep.subr.mxu0 0.0
      %596 = vmatpush1.msra.mxu0 0.0
      %597 = vmatprep.subr.mxu0 0.0
      %598 = vmatpush1.msra.mxu0 0.0
      %599 = vmatprep.subr.mxu0 0.0
      %600 = vmatpush1.msra.mxu0 0.0
      %601 = vmatprep.subr.mxu0 0.0
      %602 = vmatpush1.msra.mxu0 0.0
      %603 = vmatprep.subr.mxu0 0.0
      %604 = vmatpush1.msra.mxu0 0.0
      %605 = vmatprep.subr.mxu0 0.0
      %606 = vmatpush1.msra.mxu0 0.0
      %607 = vmatprep.subr.mxu0 0.0
      %608 = vmatpush1.msra.mxu0 0.0
      %609 = vmatprep.subr.mxu0 0.0
      %610 = vmatpush1.msra.mxu0 0.0
      %611 = vmatprep.subr.mxu0 0.0
      %612 = vmatpush1.msra.mxu0 0.0
      %613 = vmatprep.subr.mxu0 0.0
      %614 = vmatpush1.msra.mxu0 0.0
      %615 = vmatprep.subr.mxu0 0.0
      %616 = vmatpush1.msra.mxu0 0.0
      %617 = vmatprep.mubr.f32.mxu0 0.0
      %618 = vmatmul.mubr.f32.gmra.mrb[0].mxu0 %v506
      %v619 = vpop.f32.mrb[0].mxu0
      %v620 = vadd.f32 %v427, %v619
      %v621 = vpop.f32.mrb[0].mxu0
      %622 = vmatprep.mubr.f32.mxu0 0.0
      %623 = vmatmul.mubr.f32.gmra.mrb[0].mxu0 %v509
      %v624 = vpop.f32.mrb[0].mxu0
      %v625 = vadd.f32 %v432, %v624
      %v626 = vpop.f32.mrb[0].mxu0
      %627 = vmatprep.mubr.f32.mxu0 0.0
      %628 = vmatmul.mubr.f32.gmra.mrb[0].mxu0 %v512
      %v629 = vpop.f32.mrb[0].mxu0
      %v630 = vadd.f32 %v437, %v629
      %v631 = vpop.f32.mrb[0].mxu0
      %632 = vmatprep.mubr.f32.mxu0 0.0
      %633 = vmatmul.mubr.f32.gmra.mrb[0].mxu0 %v515
      %v634 = vpop.f32.mrb[0].mxu0
      %v635 = vadd.f32 %v442, %v634
      %v636 = vpop.f32.mrb[0].mxu0
      %637 = vmatprep.mubr.f32.mxu0 0.0
      %638 = vmatmul.mubr.f32.gmra.mrb[0].mxu0 %v518
      %v639 = vpop.f32.mrb[0].mxu0
      %v640 = vadd.f32 %v447, %v639
      %v641 = vpop.f32.mrb[0].mxu0
      %642 = vmatprep.mubr.f32.mxu0 0.0
      %643 = vmatmul.mubr.f32.gmra.mrb[0].mxu0 %v521
      %v644 = vpop.f32.mrb[0].mxu0
      %v645 = vadd.f32 %v452, %v644
      %v646 = vpop.f32.mrb[0].mxu0
      %647 = vmatprep.mubr.f32.mxu0 0.0
      %648 = vmatmul.mubr.f32.gmra.mrb[0].mxu0 %v524
      %v649 = vpop.f32.mrb[0].mxu0
      %v650 = vadd.f32 %v457, %v649
      %v651 = vpop.f32.mrb[0].mxu0
      %652 = vmatprep.mubr.f32.mxu0 0.0
      %653 = vmatmul.mubr.f32.gmra.mrb[0].mxu0 %v527
      %v654 = vpop.f32.mrb[0].mxu0
      %v655 = vadd.f32 %v462, %v654
      %v656 = vpop.f32.mrb[0].mxu0
      %657 = vmatprep.mubr.f32.mxu0 0.0
      %658 = vmatmul.mubr.f32.gmra.mrb[0].mxu0 %v530
      %v659 = vpop.f32.mrb[0].mxu0
      %v660 = vadd.f32 %v467, %v659
      %v661 = vpop.f32.mrb[0].mxu0
      %662 = vmatprep.mubr.f32.mxu0 0.0
      %663 = vmatmul.mubr.f32.gmra.mrb[0].mxu0 %v533
      %v664 = vpop.f32.mrb[0].mxu0
      %v665 = vadd.f32 %v472, %v664
      %v666 = vpop.f32.mrb[0].mxu0
      %667 = vmatprep.mubr.f32.mxu0 0.0
      %668 = vmatmul.mubr.f32.gmra.mrb[0].mxu0 %v536
      %v669 = vpop.f32.mrb[0].mxu0
      %v670 = vadd.f32 %v477, %v669
      %v671 = vpop.f32.mrb[0].mxu0
      %672 = vmatprep.mubr.f32.mxu0 0.0
      %673 = vmatmul.mubr.f32.gmra.mrb[0].mxu0 %v539
      %v674 = vpop.f32.mrb[0].mxu0
      %v675 = vadd.f32 %v482, %v674
      %v676 = vpop.f32.mrb[0].mxu0
      %677 = vmatprep.mubr.f32.mxu0 0.0
      %678 = vmatmul.mubr.f32.gmra.mrb[0].mxu0 %v542
      %v679 = vpop.f32.mrb[0].mxu0
      %v680 = vadd.f32 %v487, %v679
      %v681 = vpop.f32.mrb[0].mxu0
      %682 = vmatprep.mubr.f32.mxu0 0.0
      %683 = vmatmul.mubr.f32.gmra.mrb[0].mxu0 %v545
      %v684 = vpop.f32.mrb[0].mxu0
      %v685 = vadd.f32 %v492, %v684
      %v686 = vpop.f32.mrb[0].mxu0
      %687 = vmatprep.mubr.f32.mxu0 0.0
      %688 = vmatmul.mubr.f32.gmra.mrb[0].mxu0 %v548
      %v689 = vpop.f32.mrb[0].mxu0
      %v690 = vadd.f32 %v497, %v689
      %v691 = vpop.f32.mrb[0].mxu0
      %692 = vmatprep.mubr.f32.mxu0 0.0
      %693 = vmatmul.mubr.f32.gmra.mrb[0].mxu0 %v551
      %v694 = vpop.f32.mrb[0].mxu0
      %v695 = vadd.f32 %v502, %v694
      %v696 = vpop.f32.mrb[0].mxu0
      %697 = vdwg.mxu0
      %v698 = vld [vmem:[#allocation2 + $0x9] sm:$0xff]
      %v699 = vld [vmem:[#allocation2 + $0x21] sm:$0xff]
      %v700 = vld [vmem:[#allocation2 + $0x39] sm:$0xff]
      %v701 = vld [vmem:[#allocation2 + $0x51] sm:$0xff]
      %v702 = vld [vmem:[#allocation2 + $0x69] sm:$0xff]
      %v703 = vld [vmem:[#allocation2 + $0x81] sm:$0xff]
      %v704 = vld [vmem:[#allocation2 + $0x99] sm:$0xff]
      %v705 = vld [vmem:[#allocation2 + $0xb1] sm:$0xff]
      %v706 = vld [vmem:[#allocation2 + $0xf9] sm:$0xff]
      %v707 = vld [vmem:[#allocation2 + $0x111] sm:$0xff]
      %v708 = vld [vmem:[#allocation2 + $0x129] sm:$0xff]
      %v709 = vld [vmem:[#allocation2 + $0x141] sm:$0xff]
      %v710 = vld [vmem:[#allocation2 + $0x159] sm:$0xff]
      %v711 = vld [vmem:[#allocation2 + $0x171] sm:$0xff]
      %v712 = vld [vmem:[#allocation2 + $0x189] sm:$0xff]
      %v713 = vld [vmem:[#allocation2 + $0x1a1] sm:$0xff]
      %s714 = scalar_lea.vmem %s1, 32
      %v715 = vld [vmem:[%s714] sm:$0xff]
      %v716 = vld [vmem:[%s714 + $0x8] sm:$0xff]
      %v718 = vsel %vm190, %v698, 0
      %v721 = vsel %vm190, %v699, 0
      %v724 = vsel %vm190, %v700, 0
      %v727 = vsel %vm190, %v701, 0
      %v730 = vsel %vm190, %v702, 0
      %v733 = vsel %vm190, %v703, 0
      %v736 = vsel %vm190, %v704, 0
      %v739 = vsel %vm190, %v705, 0
      %v742 = vsel %vm190, %v706, 0
      %v745 = vsel %vm190, %v707, 0
      %v748 = vsel %vm190, %v708, 0
      %v751 = vsel %vm190, %v709, 0
      %v754 = vsel %vm190, %v710, 0
      %v757 = vsel %vm190, %v711, 0
      %v760 = vsel %vm190, %v712, 0
      %v763 = vsel %vm190, %v713, 0
      %765 = vmatprep.subr.mxu0 0.0
      %766 = vmatpush1.msra.mxu0 %v715
      %767 = vmatprep.subr.mxu0 0.0
      %768 = vmatpush1.msra.mxu0 %v716
      %769 = vmatprep.subr.mxu0 0.0
      %770 = vmatpush1.msra.mxu0 0.0
      %771 = vmatprep.subr.mxu0 0.0
      %772 = vmatpush1.msra.mxu0 0.0
      %773 = vmatprep.subr.mxu0 0.0
      %774 = vmatpush1.msra.mxu0 0.0
      %775 = vmatprep.subr.mxu0 0.0
      %776 = vmatpush1.msra.mxu0 0.0
      %777 = vmatprep.subr.mxu0 0.0
      %778 = vmatpush1.msra.mxu0 0.0
      %779 = vmatprep.subr.mxu0 0.0
      %780 = vmatpush1.msra.mxu0 0.0
      %781 = vmatprep.subr.mxu0 0.0
      %782 = vmatpush1.msra.mxu0 0.0
      %783 = vmatprep.subr.mxu0 0.0
      %784 = vmatpush1.msra.mxu0 0.0
      %785 = vmatprep.subr.mxu0 0.0
      %786 = vmatpush1.msra.mxu0 0.0
      %787 = vmatprep.subr.mxu0 0.0
      %788 = vmatpush1.msra.mxu0 0.0
      %789 = vmatprep.subr.mxu0 0.0
      %790 = vmatpush1.msra.mxu0 0.0
      %791 = vmatprep.subr.mxu0 0.0
      %792 = vmatpush1.msra.mxu0 0.0
      %793 = vmatprep.subr.mxu0 0.0
      %794 = vmatpush1.msra.mxu0 0.0
      %795 = vmatprep.subr.mxu0 0.0
      %796 = vmatpush1.msra.mxu0 0.0
      %797 = vmatprep.subr.mxu0 0.0
      %798 = vmatpush1.msra.mxu0 0.0
      %799 = vmatprep.subr.mxu0 0.0
      %800 = vmatpush1.msra.mxu0 0.0
      %801 = vmatprep.subr.mxu0 0.0
      %802 = vmatpush1.msra.mxu0 0.0
      %803 = vmatprep.subr.mxu0 0.0
      %804 = vmatpush1.msra.mxu0 0.0
      %805 = vmatprep.subr.mxu0 0.0
      %806 = vmatpush1.msra.mxu0 0.0
      %807 = vmatprep.subr.mxu0 0.0
      %808 = vmatpush1.msra.mxu0 0.0
      %809 = vmatprep.subr.mxu0 0.0
      %810 = vmatpush1.msra.mxu0 0.0
      %811 = vmatprep.subr.mxu0 0.0
      %812 = vmatpush1.msra.mxu0 0.0
      %813 = vmatprep.subr.mxu0 0.0
      %814 = vmatpush1.msra.mxu0 0.0
      %815 = vmatprep.subr.mxu0 0.0
      %816 = vmatpush1.msra.mxu0 0.0
      %817 = vmatprep.subr.mxu0 0.0
      %818 = vmatpush1.msra.mxu0 0.0
      %819 = vmatprep.subr.mxu0 0.0
      %820 = vmatpush1.msra.mxu0 0.0
      %821 = vmatprep.subr.mxu0 0.0
      %822 = vmatpush1.msra.mxu0 0.0
      %823 = vmatprep.subr.mxu0 0.0
      %824 = vmatpush1.msra.mxu0 0.0
      %825 = vmatprep.subr.mxu0 0.0
      %826 = vmatpush1.msra.mxu0 0.0
      %827 = vmatprep.subr.mxu0 0.0
      %828 = vmatpush1.msra.mxu0 0.0
      %829 = vmatprep.mubr.f32.mxu0 0.0
      %830 = vmatmul.mubr.f32.gmra.mrb[0].mxu0 %v718
      %v831 = vpop.f32.mrb[0].mxu0
      %v832 = vadd.f32 0.0, %v831
      %v833 = vpop.f32.mrb[0].mxu0
      %834 = vmatprep.mubr.f32.mxu0 0.0
      %835 = vmatmul.mubr.f32.gmra.mrb[0].mxu0 %v721
      %v836 = vpop.f32.mrb[0].mxu0
      %v837 = vadd.f32 0.0, %v836
      %v838 = vpop.f32.mrb[0].mxu0
      %839 = vmatprep.mubr.f32.mxu0 0.0
      %840 = vmatmul.mubr.f32.gmra.mrb[0].mxu0 %v724
      %v841 = vpop.f32.mrb[0].mxu0
      %v842 = vadd.f32 0.0, %v841
      %v843 = vpop.f32.mrb[0].mxu0
      %844 = vmatprep.mubr.f32.mxu0 0.0
      %845 = vmatmul.mubr.f32.gmra.mrb[0].mxu0 %v727
      %v846 = vpop.f32.mrb[0].mxu0
      %v847 = vadd.f32 0.0, %v846
      %v848 = vpop.f32.mrb[0].mxu0
      %849 = vmatprep.mubr.f32.mxu0 0.0
      %850 = vmatmul.mubr.f32.gmra.mrb[0].mxu0 %v730
      %v851 = vpop.f32.mrb[0].mxu0
      %v852 = vadd.f32 0.0, %v851
      %v853 = vpop.f32.mrb[0].mxu0
      %854 = vmatprep.mubr.f32.mxu0 0.0
      %855 = vmatmul.mubr.f32.gmra.mrb[0].mxu0 %v733
      %v856 = vpop.f32.mrb[0].mxu0
      %v857 = vadd.f32 0.0, %v856
      %v858 = vpop.f32.mrb[0].mxu0
      %859 = vmatprep.mubr.f32.mxu0 0.0
      %860 = vmatmul.mubr.f32.gmra.mrb[0].mxu0 %v736
      %v861 = vpop.f32.mrb[0].mxu0
      %v862 = vadd.f32 0.0, %v861
      %v863 = vpop.f32.mrb[0].mxu0
      %864 = vmatprep.mubr.f32.mxu0 0.0
      %865 = vmatmul.mubr.f32.gmra.mrb[0].mxu0 %v739
      %v866 = vpop.f32.mrb[0].mxu0
      %v867 = vadd.f32 0.0, %v866
      %v868 = vpop.f32.mrb[0].mxu0
      %869 = vmatprep.mubr.f32.mxu0 0.0
      %870 = vmatmul.mubr.f32.gmra.mrb[0].mxu0 %v742
      %v871 = vpop.f32.mrb[0].mxu0
      %v872 = vadd.f32 0.0, %v871
      %v873 = vpop.f32.mrb[0].mxu0
      %874 = vmatprep.mubr.f32.mxu0 0.0
      %875 = vmatmul.mubr.f32.gmra.mrb[0].mxu0 %v745
      %v876 = vpop.f32.mrb[0].mxu0
      %v877 = vadd.f32 0.0, %v876
      %v878 = vpop.f32.mrb[0].mxu0
      %879 = vmatprep.mubr.f32.mxu0 0.0
      %880 = vmatmul.mubr.f32.gmra.mrb[0].mxu0 %v748
      %v881 = vpop.f32.mrb[0].mxu0
      %v882 = vadd.f32 0.0, %v881
      %v883 = vpop.f32.mrb[0].mxu0
      %884 = vmatprep.mubr.f32.mxu0 0.0
      %885 = vmatmul.mubr.f32.gmra.mrb[0].mxu0 %v751
      %v886 = vpop.f32.mrb[0].mxu0
      %v887 = vadd.f32 0.0, %v886
      %v888 = vpop.f32.mrb[0].mxu0
      %889 = vmatprep.mubr.f32.mxu0 0.0
      %890 = vmatmul.mubr.f32.gmra.mrb[0].mxu0 %v754
      %v891 = vpop.f32.mrb[0].mxu0
      %v892 = vadd.f32 0.0, %v891
      %v893 = vpop.f32.mrb[0].mxu0
      %894 = vmatprep.mubr.f32.mxu0 0.0
      %895 = vmatmul.mubr.f32.gmra.mrb[0].mxu0 %v757
      %v896 = vpop.f32.mrb[0].mxu0
      %v897 = vadd.f32 0.0, %v896
      %v898 = vpop.f32.mrb[0].mxu0
      %899 = vmatprep.mubr.f32.mxu0 0.0
      %900 = vmatmul.mubr.f32.gmra.mrb[0].mxu0 %v760
      %v901 = vpop.f32.mrb[0].mxu0
      %v902 = vadd.f32 0.0, %v901
      %v903 = vpop.f32.mrb[0].mxu0
      %904 = vmatprep.mubr.f32.mxu0 0.0
      %905 = vmatmul.mubr.f32.gmra.mrb[0].mxu0 %v763
      %v906 = vpop.f32.mrb[0].mxu0
      %v907 = vadd.f32 0.0, %v906
      %v908 = vpop.f32.mrb[0].mxu0
      %909 = vdwg.mxu0
      %v910 = vadd.f32 %v620, %v832
      %v911 = vadd.f32 %v625, %v837
      %v912 = vadd.f32 %v630, %v842
      %v913 = vadd.f32 %v635, %v847
      %v914 = vadd.f32 %v640, %v852
      %v915 = vadd.f32 %v645, %v857
      %v916 = vadd.f32 %v650, %v862
      %v917 = vadd.f32 %v655, %v867
      %v918 = vadd.f32 %v660, %v872
      %v919 = vadd.f32 %v665, %v877
      %v920 = vadd.f32 %v670, %v882
      %v921 = vadd.f32 %v675, %v887
      %v922 = vadd.f32 %v680, %v892
      %v923 = vadd.f32 %v685, %v897
      %v924 = vadd.f32 %v690, %v902
      %v925 = vadd.f32 %v695, %v907
      %v926 = vld [vmem:[%s258 + $0x7] sm:$0xff]
      %v927 = vld [vmem:[%s258 + $0x1f] sm:$0xff]
      %v928 = vld [vmem:[%s258 + $0x37] sm:$0xff]
      %v929 = vld [vmem:[%s258 + $0x4f] sm:$0xff]
      %v930 = vld [vmem:[%s258 + $0x67] sm:$0xff]
      %v931 = vld [vmem:[%s258 + $0x7f] sm:$0xff]
      %v932 = vld [vmem:[%s258 + $0x97] sm:$0xff]
      %v933 = vld [vmem:[%s258 + $0xaf] sm:$0xff]
      %v934 = vld [vmem:[%s258 + $0xf7] sm:$0xff]
      %v935 = vld [vmem:[%s258 + $0x10f] sm:$0xff]
      %v936 = vld [vmem:[%s258 + $0x127] sm:$0xff]
      %v937 = vld [vmem:[%s258 + $0x13f] sm:$0xff]
      %v938 = vld [vmem:[%s258 + $0x157] sm:$0xff]
      %v939 = vld [vmem:[%s258 + $0x16f] sm:$0xff]
      %v940 = vld [vmem:[%s258 + $0x187] sm:$0xff]
      %v941 = vld [vmem:[%s258 + $0x19f] sm:$0xff]
      %s942 = scalar_lea.vmem %s1, 48
      %v943 = vld [vmem:[%s942] sm:$0xff]
      %v944 = vld [vmem:[%s942 + $0x8] sm:$0xff]
      %v946 = vsel %vm190, %v926, 0
      %v949 = vsel %vm190, %v927, 0
      %v952 = vsel %vm190, %v928, 0
      %v955 = vsel %vm190, %v929, 0
      %v958 = vsel %vm190, %v930, 0
      %v961 = vsel %vm190, %v931, 0
      %v964 = vsel %vm190, %v932, 0
      %v967 = vsel %vm190, %v933, 0
      %v970 = vsel %vm190, %v934, 0
      %v973 = vsel %vm190, %v935, 0
      %v976 = vsel %vm190, %v936, 0
      %v979 = vsel %vm190, %v937, 0
      %v982 = vsel %vm190, %v938, 0
      %v985 = vsel %vm190, %v939, 0
      %v988 = vsel %vm190, %v940, 0
      %v991 = vsel %vm190, %v941, 0
      %993 = vmatprep.subr.mxu0 0.0
      %994 = vmatpush1.msra.mxu0 %v943
      %995 = vmatprep.subr.mxu0 0.0
      %996 = vmatpush1.msra.mxu0 %v944
      %997 = vmatprep.subr.mxu0 0.0
      %998 = vmatpush1.msra.mxu0 0.0
      %999 = vmatprep.subr.mxu0 0.0
      %1000 = vmatpush1.msra.mxu0 0.0
      %1001 = vmatprep.subr.mxu0 0.0
      %1002 = vmatpush1.msra.mxu0 0.0
      %1003 = vmatprep.subr.mxu0 0.0
      %1004 = vmatpush1.msra.mxu0 0.0
      %1005 = vmatprep.subr.mxu0 0.0
      %1006 = vmatpush1.msra.mxu0 0.0
      %1007 = vmatprep.subr.mxu0 0.0
      %1008 = vmatpush1.msra.mxu0 0.0
      %1009 = vmatprep.subr.mxu0 0.0
      %1010 = vmatpush1.msra.mxu0 0.0
      %1011 = vmatprep.subr.mxu0 0.0
      %1012 = vmatpush1.msra.mxu0 0.0
      %1013 = vmatprep.subr.mxu0 0.0
      %1014 = vmatpush1.msra.mxu0 0.0
      %1015 = vmatprep.subr.mxu0 0.0
      %1016 = vmatpush1.msra.mxu0 0.0
      %1017 = vmatprep.subr.mxu0 0.0
      %1018 = vmatpush1.msra.mxu0 0.0
      %1019 = vmatprep.subr.mxu0 0.0
      %1020 = vmatpush1.msra.mxu0 0.0
      %1021 = vmatprep.subr.mxu0 0.0
      %1022 = vmatpush1.msra.mxu0 0.0
      %1023 = vmatprep.subr.mxu0 0.0
      %1024 = vmatpush1.msra.mxu0 0.0
      %1025 = vmatprep.subr.mxu0 0.0
      %1026 = vmatpush1.msra.mxu0 0.0
      %1027 = vmatprep.subr.mxu0 0.0
      %1028 = vmatpush1.msra.mxu0 0.0
      %1029 = vmatprep.subr.mxu0 0.0
      %1030 = vmatpush1.msra.mxu0 0.0
      %1031 = vmatprep.subr.mxu0 0.0
      %1032 = vmatpush1.msra.mxu0 0.0
      %1033 = vmatprep.subr.mxu0 0.0
      %1034 = vmatpush1.msra.mxu0 0.0
      %1035 = vmatprep.subr.mxu0 0.0
      %1036 = vmatpush1.msra.mxu0 0.0
      %1037 = vmatprep.subr.mxu0 0.0
      %1038 = vmatpush1.msra.mxu0 0.0
      %1039 = vmatprep.subr.mxu0 0.0
      %1040 = vmatpush1.msra.mxu0 0.0
      %1041 = vmatprep.subr.mxu0 0.0
      %1042 = vmatpush1.msra.mxu0 0.0
      %1043 = vmatprep.subr.mxu0 0.0
      %1044 = vmatpush1.msra.mxu0 0.0
      %1045 = vmatprep.subr.mxu0 0.0
      %1046 = vmatpush1.msra.mxu0 0.0
      %1047 = vmatprep.subr.mxu0 0.0
      %1048 = vmatpush1.msra.mxu0 0.0
      %1049 = vmatprep.subr.mxu0 0.0
      %1050 = vmatpush1.msra.mxu0 0.0
      %1051 = vmatprep.subr.mxu0 0.0
      %1052 = vmatpush1.msra.mxu0 0.0
      %1053 = vmatprep.subr.mxu0 0.0
      %1054 = vmatpush1.msra.mxu0 0.0
      %1055 = vmatprep.subr.mxu0 0.0
      %1056 = vmatpush1.msra.mxu0 0.0
      %1057 = vmatprep.mubr.f32.mxu0 0.0
      %1058 = vmatmul.mubr.f32.gmra.mrb[0].mxu0 %v946
      %v1059 = vpop.f32.mrb[0].mxu0
      %v1060 = vadd.f32 0.0, %v1059
      %v1061 = vpop.f32.mrb[0].mxu0
      %1062 = vmatprep.mubr.f32.mxu0 0.0
      %1063 = vmatmul.mubr.f32.gmra.mrb[0].mxu0 %v949
      %v1064 = vpop.f32.mrb[0].mxu0
      %v1065 = vadd.f32 0.0, %v1064
      %v1066 = vpop.f32.mrb[0].mxu0
      %1067 = vmatprep.mubr.f32.mxu0 0.0
      %1068 = vmatmul.mubr.f32.gmra.mrb[0].mxu0 %v952
      %v1069 = vpop.f32.mrb[0].mxu0
      %v1070 = vadd.f32 0.0, %v1069
      %v1071 = vpop.f32.mrb[0].mxu0
      %1072 = vmatprep.mubr.f32.mxu0 0.0
      %1073 = vmatmul.mubr.f32.gmra.mrb[0].mxu0 %v955
      %v1074 = vpop.f32.mrb[0].mxu0
      %v1075 = vadd.f32 0.0, %v1074
      %v1076 = vpop.f32.mrb[0].mxu0
      %1077 = vmatprep.mubr.f32.mxu0 0.0
      %1078 = vmatmul.mubr.f32.gmra.mrb[0].mxu0 %v958
      %v1079 = vpop.f32.mrb[0].mxu0
      %v1080 = vadd.f32 0.0, %v1079
      %v1081 = vpop.f32.mrb[0].mxu0
      %1082 = vmatprep.mubr.f32.mxu0 0.0
      %1083 = vmatmul.mubr.f32.gmra.mrb[0].mxu0 %v961
      %v1084 = vpop.f32.mrb[0].mxu0
      %v1085 = vadd.f32 0.0, %v1084
      %v1086 = vpop.f32.mrb[0].mxu0
      %1087 = vmatprep.mubr.f32.mxu0 0.0
      %1088 = vmatmul.mubr.f32.gmra.mrb[0].mxu0 %v964
      %v1089 = vpop.f32.mrb[0].mxu0
      %v1090 = vadd.f32 0.0, %v1089
      %v1091 = vpop.f32.mrb[0].mxu0
      %1092 = vmatprep.mubr.f32.mxu0 0.0
      %1093 = vmatmul.mubr.f32.gmra.mrb[0].mxu0 %v967
      %v1094 = vpop.f32.mrb[0].mxu0
      %v1095 = vadd.f32 0.0, %v1094
      %v1096 = vpop.f32.mrb[0].mxu0
      %1097 = vmatprep.mubr.f32.mxu0 0.0
      %1098 = vmatmul.mubr.f32.gmra.mrb[0].mxu0 %v970
      %v1099 = vpop.f32.mrb[0].mxu0
      %v1100 = vadd.f32 0.0, %v1099
      %v1101 = vpop.f32.mrb[0].mxu0
      %1102 = vmatprep.mubr.f32.mxu0 0.0
      %1103 = vmatmul.mubr.f32.gmra.mrb[0].mxu0 %v973
      %v1104 = vpop.f32.mrb[0].mxu0
      %v1105 = vadd.f32 0.0, %v1104
      %v1106 = vpop.f32.mrb[0].mxu0
      %1107 = vmatprep.mubr.f32.mxu0 0.0
      %1108 = vmatmul.mubr.f32.gmra.mrb[0].mxu0 %v976
      %v1109 = vpop.f32.mrb[0].mxu0
      %v1110 = vadd.f32 0.0, %v1109
      %v1111 = vpop.f32.mrb[0].mxu0
      %1112 = vmatprep.mubr.f32.mxu0 0.0
      %1113 = vmatmul.mubr.f32.gmra.mrb[0].mxu0 %v979
      %v1114 = vpop.f32.mrb[0].mxu0
      %v1115 = vadd.f32 0.0, %v1114
      %v1116 = vpop.f32.mrb[0].mxu0
      %1117 = vmatprep.mubr.f32.mxu0 0.0
      %1118 = vmatmul.mubr.f32.gmra.mrb[0].mxu0 %v982
      %v1119 = vpop.f32.mrb[0].mxu0
      %v1120 = vadd.f32 0.0, %v1119
      %v1121 = vpop.f32.mrb[0].mxu0
      %1122 = vmatprep.mubr.f32.mxu0 0.0
      %1123 = vmatmul.mubr.f32.gmra.mrb[0].mxu0 %v985
      %v1124 = vpop.f32.mrb[0].mxu0
      %v1125 = vadd.f32 0.0, %v1124
      %v1126 = vpop.f32.mrb[0].mxu0
      %1127 = vmatprep.mubr.f32.mxu0 0.0
      %1128 = vmatmul.mubr.f32.gmra.mrb[0].mxu0 %v988
      %v1129 = vpop.f32.mrb[0].mxu0
      %v1130 = vadd.f32 0.0, %v1129
      %v1131 = vpop.f32.mrb[0].mxu0
      %1132 = vmatprep.mubr.f32.mxu0 0.0
      %1133 = vmatmul.mubr.f32.gmra.mrb[0].mxu0 %v991
      %v1134 = vpop.f32.mrb[0].mxu0
      %v1135 = vadd.f32 0.0, %v1134
      %v1136 = vpop.f32.mrb[0].mxu0
      %1137 = vdwg.mxu0
      %v1138 = vadd.f32 %v910, %v1060
      %v1139 = vadd.f32 %v911, %v1065
      %v1140 = vadd.f32 %v912, %v1070
      %v1141 = vadd.f32 %v913, %v1075
      %v1142 = vadd.f32 %v914, %v1080
      %v1143 = vadd.f32 %v915, %v1085
      %v1144 = vadd.f32 %v916, %v1090
      %v1145 = vadd.f32 %v917, %v1095
      %v1146 = vadd.f32 %v918, %v1100
      %v1147 = vadd.f32 %v919, %v1105
      %v1148 = vadd.f32 %v920, %v1110
      %v1149 = vadd.f32 %v921, %v1115
      %v1150 = vadd.f32 %v922, %v1120
      %v1151 = vadd.f32 %v923, %v1125
      %v1152 = vadd.f32 %v924, %v1130
      %v1153 = vadd.f32 %v925, %v1135
      %v1154 = vld [vmem:[%s258 + $0x8] sm:$0xff]
      %v1155 = vld [vmem:[%s258 + $0x20] sm:$0xff]
      %v1156 = vld [vmem:[%s258 + $0x38] sm:$0xff]
      %v1157 = vld [vmem:[%s258 + $0x50] sm:$0xff]
      %v1158 = vld [vmem:[%s258 + $0x68] sm:$0xff]
      %v1159 = vld [vmem:[%s258 + $0x80] sm:$0xff]
      %v1160 = vld [vmem:[%s258 + $0x98] sm:$0xff]
      %v1161 = vld [vmem:[%s258 + $0xb0] sm:$0xff]
      %v1162 = vld [vmem:[%s258 + $0xf8] sm:$0xff]
      %v1163 = vld [vmem:[%s258 + $0x110] sm:$0xff]
      %v1164 = vld [vmem:[%s258 + $0x128] sm:$0xff]
      %v1165 = vld [vmem:[%s258 + $0x140] sm:$0xff]
      %v1166 = vld [vmem:[%s258 + $0x158] sm:$0xff]
      %v1167 = vld [vmem:[%s258 + $0x170] sm:$0xff]
      %v1168 = vld [vmem:[%s258 + $0x188] sm:$0xff]
      %v1169 = vld [vmem:[%s258 + $0x1a0] sm:$0xff]
      %s1170 = scalar_lea.vmem %s1, 64
      %v1171 = vld [vmem:[%s1170] sm:$0xff]
      %v1172 = vld [vmem:[%s1170 + $0x8] sm:$0xff]
      %v1174 = vsel %vm190, %v1154, 0
      %v1177 = vsel %vm190, %v1155, 0
      %v1180 = vsel %vm190, %v1156, 0
      %v1183 = vsel %vm190, %v1157, 0
      %v1186 = vsel %vm190, %v1158, 0
      %v1189 = vsel %vm190, %v1159, 0
      %v1192 = vsel %vm190, %v1160, 0
      %v1195 = vsel %vm190, %v1161, 0
      %v1198 = vsel %vm190, %v1162, 0
      %v1201 = vsel %vm190, %v1163, 0
      %v1204 = vsel %vm190, %v1164, 0
      %v1207 = vsel %vm190, %v1165, 0
      %v1210 = vsel %vm190, %v1166, 0
      %v1213 = vsel %vm190, %v1167, 0
      %v1216 = vsel %vm190, %v1168, 0
      %v1219 = vsel %vm190, %v1169, 0
      %1221 = vmatprep.subr.mxu0 0.0
      %1222 = vmatpush1.msra.mxu0 %v1171
      %1223 = vmatprep.subr.mxu0 0.0
      %1224 = vmatpush1.msra.mxu0 %v1172
      %1225 = vmatprep.subr.mxu0 0.0
      %1226 = vmatpush1.msra.mxu0 0.0
      %1227 = vmatprep.subr.mxu0 0.0
      %1228 = vmatpush1.msra.mxu0 0.0
      %1229 = vmatprep.subr.mxu0 0.0
      %1230 = vmatpush1.msra.mxu0 0.0
      %1231 = vmatprep.subr.mxu0 0.0
      %1232 = vmatpush1.msra.mxu0 0.0
      %1233 = vmatprep.subr.mxu0 0.0
      %1234 = vmatpush1.msra.mxu0 0.0
      %1235 = vmatprep.subr.mxu0 0.0
      %1236 = vmatpush1.msra.mxu0 0.0
      %1237 = vmatprep.subr.mxu0 0.0
      %1238 = vmatpush1.msra.mxu0 0.0
      %1239 = vmatprep.subr.mxu0 0.0
      %1240 = vmatpush1.msra.mxu0 0.0
      %1241 = vmatprep.subr.mxu0 0.0
      %1242 = vmatpush1.msra.mxu0 0.0
      %1243 = vmatprep.subr.mxu0 0.0
      %1244 = vmatpush1.msra.mxu0 0.0
      %1245 = vmatprep.subr.mxu0 0.0
      %1246 = vmatpush1.msra.mxu0 0.0
      %1247 = vmatprep.subr.mxu0 0.0
      %1248 = vmatpush1.msra.mxu0 0.0
      %1249 = vmatprep.subr.mxu0 0.0
      %1250 = vmatpush1.msra.mxu0 0.0
      %1251 = vmatprep.subr.mxu0 0.0
      %1252 = vmatpush1.msra.mxu0 0.0
      %1253 = vmatprep.subr.mxu0 0.0
      %1254 = vmatpush1.msra.mxu0 0.0
      %1255 = vmatprep.subr.mxu0 0.0
      %1256 = vmatpush1.msra.mxu0 0.0
      %1257 = vmatprep.subr.mxu0 0.0
      %1258 = vmatpush1.msra.mxu0 0.0
      %1259 = vmatprep.subr.mxu0 0.0
      %1260 = vmatpush1.msra.mxu0 0.0
      %1261 = vmatprep.subr.mxu0 0.0
      %1262 = vmatpush1.msra.mxu0 0.0
      %1263 = vmatprep.subr.mxu0 0.0
      %1264 = vmatpush1.msra.mxu0 0.0
      %1265 = vmatprep.subr.mxu0 0.0
      %1266 = vmatpush1.msra.mxu0 0.0
      %1267 = vmatprep.subr.mxu0 0.0
      %1268 = vmatpush1.msra.mxu0 0.0
      %1269 = vmatprep.subr.mxu0 0.0
      %1270 = vmatpush1.msra.mxu0 0.0
      %1271 = vmatprep.subr.mxu0 0.0
      %1272 = vmatpush1.msra.mxu0 0.0
      %1273 = vmatprep.subr.mxu0 0.0
      %1274 = vmatpush1.msra.mxu0 0.0
      %1275 = vmatprep.subr.mxu0 0.0
      %1276 = vmatpush1.msra.mxu0 0.0
      %1277 = vmatprep.subr.mxu0 0.0
      %1278 = vmatpush1.msra.mxu0 0.0
      %1279 = vmatprep.subr.mxu0 0.0
      %1280 = vmatpush1.msra.mxu0 0.0
      %1281 = vmatprep.subr.mxu0 0.0
      %1282 = vmatpush1.msra.mxu0 0.0
      %1283 = vmatprep.subr.mxu0 0.0
      %1284 = vmatpush1.msra.mxu0 0.0
      %1285 = vmatprep.mubr.f32.mxu0 0.0
      %1286 = vmatmul.mubr.f32.gmra.mrb[0].mxu0 %v1174
      %v1287 = vpop.f32.mrb[0].mxu0
      %v1288 = vadd.f32 0.0, %v1287
      %v1289 = vpop.f32.mrb[0].mxu0
      %1290 = vmatprep.mubr.f32.mxu0 0.0
      %1291 = vmatmul.mubr.f32.gmra.mrb[0].mxu0 %v1177
      %v1292 = vpop.f32.mrb[0].mxu0
      %v1293 = vadd.f32 0.0, %v1292
      %v1294 = vpop.f32.mrb[0].mxu0
      %1295 = vmatprep.mubr.f32.mxu0 0.0
      %1296 = vmatmul.mubr.f32.gmra.mrb[0].mxu0 %v1180
      %v1297 = vpop.f32.mrb[0].mxu0
      %v1298 = vadd.f32 0.0, %v1297
      %v1299 = vpop.f32.mrb[0].mxu0
      %1300 = vmatprep.mubr.f32.mxu0 0.0
      %1301 = vmatmul.mubr.f32.gmra.mrb[0].mxu0 %v1183
      %v1302 = vpop.f32.mrb[0].mxu0
      %v1303 = vadd.f32 0.0, %v1302
      %v1304 = vpop.f32.mrb[0].mxu0
      %1305 = vmatprep.mubr.f32.mxu0 0.0
      %1306 = vmatmul.mubr.f32.gmra.mrb[0].mxu0 %v1186
      %v1307 = vpop.f32.mrb[0].mxu0
      %v1308 = vadd.f32 0.0, %v1307
      %v1309 = vpop.f32.mrb[0].mxu0
      %1310 = vmatprep.mubr.f32.mxu0 0.0
      %1311 = vmatmul.mubr.f32.gmra.mrb[0].mxu0 %v1189
      %v1312 = vpop.f32.mrb[0].mxu0
      %v1313 = vadd.f32 0.0, %v1312
      %v1314 = vpop.f32.mrb[0].mxu0
      %1315 = vmatprep.mubr.f32.mxu0 0.0
      %1316 = vmatmul.mubr.f32.gmra.mrb[0].mxu0 %v1192
      %v1317 = vpop.f32.mrb[0].mxu0
      %v1318 = vadd.f32 0.0, %v1317
      %v1319 = vpop.f32.mrb[0].mxu0
      %1320 = vmatprep.mubr.f32.mxu0 0.0
      %1321 = vmatmul.mubr.f32.gmra.mrb[0].mxu0 %v1195
      %v1322 = vpop.f32.mrb[0].mxu0
      %v1323 = vadd.f32 0.0, %v1322
      %v1324 = vpop.f32.mrb[0].mxu0
      %1325 = vmatprep.mubr.f32.mxu0 0.0
      %1326 = vmatmul.mubr.f32.gmra.mrb[0].mxu0 %v1198
      %v1327 = vpop.f32.mrb[0].mxu0
      %v1328 = vadd.f32 0.0, %v1327
      %v1329 = vpop.f32.mrb[0].mxu0
      %1330 = vmatprep.mubr.f32.mxu0 0.0
      %1331 = vmatmul.mubr.f32.gmra.mrb[0].mxu0 %v1201
      %v1332 = vpop.f32.mrb[0].mxu0
      %v1333 = vadd.f32 0.0, %v1332
      %v1334 = vpop.f32.mrb[0].mxu0
      %1335 = vmatprep.mubr.f32.mxu0 0.0
      %1336 = vmatmul.mubr.f32.gmra.mrb[0].mxu0 %v1204
      %v1337 = vpop.f32.mrb[0].mxu0
      %v1338 = vadd.f32 0.0, %v1337
      %v1339 = vpop.f32.mrb[0].mxu0
      %1340 = vmatprep.mubr.f32.mxu0 0.0
      %1341 = vmatmul.mubr.f32.gmra.mrb[0].mxu0 %v1207
      %v1342 = vpop.f32.mrb[0].mxu0
      %v1343 = vadd.f32 0.0, %v1342
      %v1344 = vpop.f32.mrb[0].mxu0
      %1345 = vmatprep.mubr.f32.mxu0 0.0
      %1346 = vmatmul.mubr.f32.gmra.mrb[0].mxu0 %v1210
      %v1347 = vpop.f32.mrb[0].mxu0
      %v1348 = vadd.f32 0.0, %v1347
      %v1349 = vpop.f32.mrb[0].mxu0
      %1350 = vmatprep.mubr.f32.mxu0 0.0
      %1351 = vmatmul.mubr.f32.gmra.mrb[0].mxu0 %v1213
      %v1352 = vpop.f32.mrb[0].mxu0
      %v1353 = vadd.f32 0.0, %v1352
      %v1354 = vpop.f32.mrb[0].mxu0
      %1355 = vmatprep.mubr.f32.mxu0 0.0
      %1356 = vmatmul.mubr.f32.gmra.mrb[0].mxu0 %v1216
      %v1357 = vpop.f32.mrb[0].mxu0
      %v1358 = vadd.f32 0.0, %v1357
      %v1359 = vpop.f32.mrb[0].mxu0
      %1360 = vmatprep.mubr.f32.mxu0 0.0
      %1361 = vmatmul.mubr.f32.gmra.mrb[0].mxu0 %v1219
      %v1362 = vpop.f32.mrb[0].mxu0
      %v1363 = vadd.f32 0.0, %v1362
      %v1364 = vpop.f32.mrb[0].mxu0
      %1365 = vdwg.mxu0
      %v1366 = vadd.f32 %v1138, %v1288
      %v1367 = vadd.f32 %v1139, %v1293
      %v1368 = vadd.f32 %v1140, %v1298
      %v1369 = vadd.f32 %v1141, %v1303
      %v1370 = vadd.f32 %v1142, %v1308
      %v1371 = vadd.f32 %v1143, %v1313
      %v1372 = vadd.f32 %v1144, %v1318
      %v1373 = vadd.f32 %v1145, %v1323
      %v1374 = vadd.f32 %v1146, %v1328
      %v1375 = vadd.f32 %v1147, %v1333
      %v1376 = vadd.f32 %v1148, %v1338
      %v1377 = vadd.f32 %v1149, %v1343
      %v1378 = vadd.f32 %v1150, %v1348
      %v1379 = vadd.f32 %v1151, %v1353
      %v1380 = vadd.f32 %v1152, %v1358
      %v1381 = vadd.f32 %v1153, %v1363
      %v1382 = vld [vmem:[%s258 + $0x9] sm:$0xff]
      %v1383 = vld [vmem:[%s258 + $0x21] sm:$0xff]
      %v1384 = vld [vmem:[%s258 + $0x39] sm:$0xff]
      %v1385 = vld [vmem:[%s258 + $0x51] sm:$0xff]
      %v1386 = vld [vmem:[%s258 + $0x69] sm:$0xff]
      %v1387 = vld [vmem:[%s258 + $0x81] sm:$0xff]
      %v1388 = vld [vmem:[%s258 + $0x99] sm:$0xff]
      %v1389 = vld [vmem:[%s258 + $0xb1] sm:$0xff]
      %v1390 = vld [vmem:[%s258 + $0xf9] sm:$0xff]
      %v1391 = vld [vmem:[%s258 + $0x111] sm:$0xff]
      %v1392 = vld [vmem:[%s258 + $0x129] sm:$0xff]
      %v1393 = vld [vmem:[%s258 + $0x141] sm:$0xff]
      %v1394 = vld [vmem:[%s258 + $0x159] sm:$0xff]
      %v1395 = vld [vmem:[%s258 + $0x171] sm:$0xff]
      %v1396 = vld [vmem:[%s258 + $0x189] sm:$0xff]
      %v1397 = vld [vmem:[%s258 + $0x1a1] sm:$0xff]
      %s1398 = scalar_lea.vmem %s1, 80
      %v1399 = vld [vmem:[%s1398] sm:$0xff]
      %v1400 = vld [vmem:[%s1398 + $0x8] sm:$0xff]
      %v1402 = vsel %vm190, %v1382, 0
      %v1405 = vsel %vm190, %v1383, 0
      %v1408 = vsel %vm190, %v1384, 0
      %v1411 = vsel %vm190, %v1385, 0
      %v1414 = vsel %vm190, %v1386, 0
      %v1417 = vsel %vm190, %v1387, 0
      %v1420 = vsel %vm190, %v1388, 0
      %v1423 = vsel %vm190, %v1389, 0
      %v1426 = vsel %vm190, %v1390, 0
      %v1429 = vsel %vm190, %v1391, 0
      %v1432 = vsel %vm190, %v1392, 0
      %v1435 = vsel %vm190, %v1393, 0
      %v1438 = vsel %vm190, %v1394, 0
      %v1441 = vsel %vm190, %v1395, 0
      %v1444 = vsel %vm190, %v1396, 0
      %v1447 = vsel %vm190, %v1397, 0
      %1449 = vmatprep.subr.mxu0 0.0
      %1450 = vmatpush1.msra.mxu0 %v1399
      %1451 = vmatprep.subr.mxu0 0.0
      %1452 = vmatpush1.msra.mxu0 %v1400
      %1453 = vmatprep.subr.mxu0 0.0
      %1454 = vmatpush1.msra.mxu0 0.0
      %1455 = vmatprep.subr.mxu0 0.0
      %1456 = vmatpush1.msra.mxu0 0.0
      %1457 = vmatprep.subr.mxu0 0.0
      %1458 = vmatpush1.msra.mxu0 0.0
      %1459 = vmatprep.subr.mxu0 0.0
      %1460 = vmatpush1.msra.mxu0 0.0
      %1461 = vmatprep.subr.mxu0 0.0
      %1462 = vmatpush1.msra.mxu0 0.0
      %1463 = vmatprep.subr.mxu0 0.0
      %1464 = vmatpush1.msra.mxu0 0.0
      %1465 = vmatprep.subr.mxu0 0.0
      %1466 = vmatpush1.msra.mxu0 0.0
      %1467 = vmatprep.subr.mxu0 0.0
      %1468 = vmatpush1.msra.mxu0 0.0
      %1469 = vmatprep.subr.mxu0 0.0
      %1470 = vmatpush1.msra.mxu0 0.0
      %1471 = vmatprep.subr.mxu0 0.0
      %1472 = vmatpush1.msra.mxu0 0.0
      %1473 = vmatprep.subr.mxu0 0.0
      %1474 = vmatpush1.msra.mxu0 0.0
      %1475 = vmatprep.subr.mxu0 0.0
      %1476 = vmatpush1.msra.mxu0 0.0
      %1477 = vmatprep.subr.mxu0 0.0
      %1478 = vmatpush1.msra.mxu0 0.0
      %1479 = vmatprep.subr.mxu0 0.0
      %1480 = vmatpush1.msra.mxu0 0.0
      %1481 = vmatprep.subr.mxu0 0.0
      %1482 = vmatpush1.msra.mxu0 0.0
      %1483 = vmatprep.subr.mxu0 0.0
      %1484 = vmatpush1.msra.mxu0 0.0
      %1485 = vmatprep.subr.mxu0 0.0
      %1486 = vmatpush1.msra.mxu0 0.0
      %1487 = vmatprep.subr.mxu0 0.0
      %1488 = vmatpush1.msra.mxu0 0.0
      %1489 = vmatprep.subr.mxu0 0.0
      %1490 = vmatpush1.msra.mxu0 0.0
      %1491 = vmatprep.subr.mxu0 0.0
      %1492 = vmatpush1.msra.mxu0 0.0
      %1493 = vmatprep.subr.mxu0 0.0
      %1494 = vmatpush1.msra.mxu0 0.0
      %1495 = vmatprep.subr.mxu0 0.0
      %1496 = vmatpush1.msra.mxu0 0.0
      %1497 = vmatprep.subr.mxu0 0.0
      %1498 = vmatpush1.msra.mxu0 0.0
      %1499 = vmatprep.subr.mxu0 0.0
      %1500 = vmatpush1.msra.mxu0 0.0
      %1501 = vmatprep.subr.mxu0 0.0
      %1502 = vmatpush1.msra.mxu0 0.0
      %1503 = vmatprep.subr.mxu0 0.0
      %1504 = vmatpush1.msra.mxu0 0.0
      %1505 = vmatprep.subr.mxu0 0.0
      %1506 = vmatpush1.msra.mxu0 0.0
      %1507 = vmatprep.subr.mxu0 0.0
      %1508 = vmatpush1.msra.mxu0 0.0
      %1509 = vmatprep.subr.mxu0 0.0
      %1510 = vmatpush1.msra.mxu0 0.0
      %1511 = vmatprep.subr.mxu0 0.0
      %1512 = vmatpush1.msra.mxu0 0.0
      %1513 = vmatprep.mubr.f32.mxu0 0.0
      %1514 = vmatmul.mubr.f32.gmra.mrb[0].mxu0 %v1402
      %v1515 = vpop.f32.mrb[0].mxu0
      %v1516 = vadd.f32 0.0, %v1515
      %v1517 = vpop.f32.mrb[0].mxu0
      %1518 = vmatprep.mubr.f32.mxu0 0.0
      %1519 = vmatmul.mubr.f32.gmra.mrb[0].mxu0 %v1405
      %v1520 = vpop.f32.mrb[0].mxu0
      %v1521 = vadd.f32 0.0, %v1520
      %v1522 = vpop.f32.mrb[0].mxu0
      %1523 = vmatprep.mubr.f32.mxu0 0.0
      %1524 = vmatmul.mubr.f32.gmra.mrb[0].mxu0 %v1408
      %v1525 = vpop.f32.mrb[0].mxu0
      %v1526 = vadd.f32 0.0, %v1525
      %v1527 = vpop.f32.mrb[0].mxu0
      %1528 = vmatprep.mubr.f32.mxu0 0.0
      %1529 = vmatmul.mubr.f32.gmra.mrb[0].mxu0 %v1411
      %v1530 = vpop.f32.mrb[0].mxu0
      %v1531 = vadd.f32 0.0, %v1530
      %v1532 = vpop.f32.mrb[0].mxu0
      %1533 = vmatprep.mubr.f32.mxu0 0.0
      %1534 = vmatmul.mubr.f32.gmra.mrb[0].mxu0 %v1414
      %v1535 = vpop.f32.mrb[0].mxu0
      %v1536 = vadd.f32 0.0, %v1535
      %v1537 = vpop.f32.mrb[0].mxu0
      %1538 = vmatprep.mubr.f32.mxu0 0.0
      %1539 = vmatmul.mubr.f32.gmra.mrb[0].mxu0 %v1417
      %v1540 = vpop.f32.mrb[0].mxu0
      %v1541 = vadd.f32 0.0, %v1540
      %v1542 = vpop.f32.mrb[0].mxu0
      %1543 = vmatprep.mubr.f32.mxu0 0.0
      %1544 = vmatmul.mubr.f32.gmra.mrb[0].mxu0 %v1420
      %v1545 = vpop.f32.mrb[0].mxu0
      %v1546 = vadd.f32 0.0, %v1545
      %v1547 = vpop.f32.mrb[0].mxu0
      %1548 = vmatprep.mubr.f32.mxu0 0.0
      %1549 = vmatmul.mubr.f32.gmra.mrb[0].mxu0 %v1423
      %v1550 = vpop.f32.mrb[0].mxu0
      %v1551 = vadd.f32 0.0, %v1550
      %v1552 = vpop.f32.mrb[0].mxu0
      %1553 = vmatprep.mubr.f32.mxu0 0.0
      %1554 = vmatmul.mubr.f32.gmra.mrb[0].mxu0 %v1426
      %v1555 = vpop.f32.mrb[0].mxu0
      %v1556 = vadd.f32 0.0, %v1555
      %v1557 = vpop.f32.mrb[0].mxu0
      %1558 = vmatprep.mubr.f32.mxu0 0.0
      %1559 = vmatmul.mubr.f32.gmra.mrb[0].mxu0 %v1429
      %v1560 = vpop.f32.mrb[0].mxu0
      %v1561 = vadd.f32 0.0, %v1560
      %v1562 = vpop.f32.mrb[0].mxu0
      %1563 = vmatprep.mubr.f32.mxu0 0.0
      %1564 = vmatmul.mubr.f32.gmra.mrb[0].mxu0 %v1432
      %v1565 = vpop.f32.mrb[0].mxu0
      %v1566 = vadd.f32 0.0, %v1565
      %v1567 = vpop.f32.mrb[0].mxu0
      %1568 = vmatprep.mubr.f32.mxu0 0.0
      %1569 = vmatmul.mubr.f32.gmra.mrb[0].mxu0 %v1435
      %v1570 = vpop.f32.mrb[0].mxu0
      %v1571 = vadd.f32 0.0, %v1570
      %v1572 = vpop.f32.mrb[0].mxu0
      %1573 = vmatprep.mubr.f32.mxu0 0.0
      %1574 = vmatmul.mubr.f32.gmra.mrb[0].mxu0 %v1438
      %v1575 = vpop.f32.mrb[0].mxu0
      %v1576 = vadd.f32 0.0, %v1575
      %v1577 = vpop.f32.mrb[0].mxu0
      %1578 = vmatprep.mubr.f32.mxu0 0.0
      %1579 = vmatmul.mubr.f32.gmra.mrb[0].mxu0 %v1441
      %v1580 = vpop.f32.mrb[0].mxu0
      %v1581 = vadd.f32 0.0, %v1580
      %v1582 = vpop.f32.mrb[0].mxu0
      %1583 = vmatprep.mubr.f32.mxu0 0.0
      %1584 = vmatmul.mubr.f32.gmra.mrb[0].mxu0 %v1444
      %v1585 = vpop.f32.mrb[0].mxu0
      %v1586 = vadd.f32 0.0, %v1585
      %v1587 = vpop.f32.mrb[0].mxu0
      %1588 = vmatprep.mubr.f32.mxu0 0.0
      %1589 = vmatmul.mubr.f32.gmra.mrb[0].mxu0 %v1447
      %v1590 = vpop.f32.mrb[0].mxu0
      %v1591 = vadd.f32 0.0, %v1590
      %v1592 = vpop.f32.mrb[0].mxu0
      %1593 = vdwg.mxu0
      %v1594 = vadd.f32 %v1366, %v1516
      %v1595 = vadd.f32 %v1367, %v1521
      %v1596 = vadd.f32 %v1368, %v1526
      %v1597 = vadd.f32 %v1369, %v1531
      %v1598 = vadd.f32 %v1370, %v1536
      %v1599 = vadd.f32 %v1371, %v1541
      %v1600 = vadd.f32 %v1372, %v1546
      %v1601 = vadd.f32 %v1373, %v1551
      %v1602 = vadd.f32 %v1374, %v1556
      %v1603 = vadd.f32 %v1375, %v1561
      %v1604 = vadd.f32 %v1376, %v1566
      %v1605 = vadd.f32 %v1377, %v1571
      %v1606 = vadd.f32 %v1378, %v1576
      %v1607 = vadd.f32 %v1379, %v1581
      %v1608 = vadd.f32 %v1380, %v1586
      %v1609 = vadd.f32 %v1381, %v1591
      %s1610 = scalar_lea.vmem [#allocation2], 48
      %v1611 = vld [vmem:[%s1610 + $0x7] sm:$0xff]
      %v1612 = vld [vmem:[%s1610 + $0x1f] sm:$0xff]
      %v1613 = vld [vmem:[%s1610 + $0x37] sm:$0xff]
      %v1614 = vld [vmem:[%s1610 + $0x4f] sm:$0xff]
      %v1615 = vld [vmem:[%s1610 + $0x67] sm:$0xff]
      %v1616 = vld [vmem:[%s1610 + $0x7f] sm:$0xff]
      %v1617 = vld [vmem:[%s1610 + $0x97] sm:$0xff]
      %v1618 = vld [vmem:[%s1610 + $0xaf] sm:$0xff]
      %v1619 = vld [vmem:[%s1610 + $0xf7] sm:$0xff]
      %v1620 = vld [vmem:[%s1610 + $0x10f] sm:$0xff]
      %v1621 = vld [vmem:[%s1610 + $0x127] sm:$0xff]
      %v1622 = vld [vmem:[%s1610 + $0x13f] sm:$0xff]
      %v1623 = vld [vmem:[%s1610 + $0x157] sm:$0xff]
      %v1624 = vld [vmem:[%s1610 + $0x16f] sm:$0xff]
      %v1625 = vld [vmem:[%s1610 + $0x187] sm:$0xff]
      %v1626 = vld [vmem:[%s1610 + $0x19f] sm:$0xff]
      %s1627 = scalar_lea.vmem %s1, 96
      %v1628 = vld [vmem:[%s1627] sm:$0xff]
      %v1629 = vld [vmem:[%s1627 + $0x8] sm:$0xff]
      %v1631 = vsel %vm190, %v1611, 0
      %v1634 = vsel %vm190, %v1612, 0
      %v1637 = vsel %vm190, %v1613, 0
      %v1640 = vsel %vm190, %v1614, 0
      %v1643 = vsel %vm190, %v1615, 0
      %v1646 = vsel %vm190, %v1616, 0
      %v1649 = vsel %vm190, %v1617, 0
      %v1652 = vsel %vm190, %v1618, 0
      %v1655 = vsel %vm190, %v1619, 0
      %v1658 = vsel %vm190, %v1620, 0
      %v1661 = vsel %vm190, %v1621, 0
      %v1664 = vsel %vm190, %v1622, 0
      %v1667 = vsel %vm190, %v1623, 0
      %v1670 = vsel %vm190, %v1624, 0
      %v1673 = vsel %vm190, %v1625, 0
      %v1676 = vsel %vm190, %v1626, 0
      %1678 = vmatprep.subr.mxu0 0.0
      %1679 = vmatpush1.msra.mxu0 %v1628
      %1680 = vmatprep.subr.mxu0 0.0
      %1681 = vmatpush1.msra.mxu0 %v1629
      %1682 = vmatprep.subr.mxu0 0.0
      %1683 = vmatpush1.msra.mxu0 0.0
      %1684 = vmatprep.subr.mxu0 0.0
      %1685 = vmatpush1.msra.mxu0 0.0
      %1686 = vmatprep.subr.mxu0 0.0
      %1687 = vmatpush1.msra.mxu0 0.0
      %1688 = vmatprep.subr.mxu0 0.0
      %1689 = vmatpush1.msra.mxu0 0.0
      %1690 = vmatprep.subr.mxu0 0.0
      %1691 = vmatpush1.msra.mxu0 0.0
      %1692 = vmatprep.subr.mxu0 0.0
      %1693 = vmatpush1.msra.mxu0 0.0
      %1694 = vmatprep.subr.mxu0 0.0
      %1695 = vmatpush1.msra.mxu0 0.0
      %1696 = vmatprep.subr.mxu0 0.0
      %1697 = vmatpush1.msra.mxu0 0.0
      %1698 = vmatprep.subr.mxu0 0.0
      %1699 = vmatpush1.msra.mxu0 0.0
      %1700 = vmatprep.subr.mxu0 0.0
      %1701 = vmatpush1.msra.mxu0 0.0
      %1702 = vmatprep.subr.mxu0 0.0
      %1703 = vmatpush1.msra.mxu0 0.0
      %1704 = vmatprep.subr.mxu0 0.0
      %1705 = vmatpush1.msra.mxu0 0.0
      %1706 = vmatprep.subr.mxu0 0.0
      %1707 = vmatpush1.msra.mxu0 0.0
      %1708 = vmatprep.subr.mxu0 0.0
      %1709 = vmatpush1.msra.mxu0 0.0
      %1710 = vmatprep.subr.mxu0 0.0
      %1711 = vmatpush1.msra.mxu0 0.0
      %1712 = vmatprep.subr.mxu0 0.0
      %1713 = vmatpush1.msra.mxu0 0.0
      %1714 = vmatprep.subr.mxu0 0.0
      %1715 = vmatpush1.msra.mxu0 0.0
      %1716 = vmatprep.subr.mxu0 0.0
      %1717 = vmatpush1.msra.mxu0 0.0
      %1718 = vmatprep.subr.mxu0 0.0
      %1719 = vmatpush1.msra.mxu0 0.0
      %1720 = vmatprep.subr.mxu0 0.0
      %1721 = vmatpush1.msra.mxu0 0.0
      %1722 = vmatprep.subr.mxu0 0.0
      %1723 = vmatpush1.msra.mxu0 0.0
      %1724 = vmatprep.subr.mxu0 0.0
      %1725 = vmatpush1.msra.mxu0 0.0
      %1726 = vmatprep.subr.mxu0 0.0
      %1727 = vmatpush1.msra.mxu0 0.0
      %1728 = vmatprep.subr.mxu0 0.0
      %1729 = vmatpush1.msra.mxu0 0.0
      %1730 = vmatprep.subr.mxu0 0.0
      %1731 = vmatpush1.msra.mxu0 0.0
      %1732 = vmatprep.subr.mxu0 0.0
      %1733 = vmatpush1.msra.mxu0 0.0
      %1734 = vmatprep.subr.mxu0 0.0
      %1735 = vmatpush1.msra.mxu0 0.0
      %1736 = vmatprep.subr.mxu0 0.0
      %1737 = vmatpush1.msra.mxu0 0.0
      %1738 = vmatprep.subr.mxu0 0.0
      %1739 = vmatpush1.msra.mxu0 0.0
      %1740 = vmatprep.subr.mxu0 0.0
      %1741 = vmatpush1.msra.mxu0 0.0
      %1742 = vmatprep.mubr.f32.mxu0 0.0
      %1743 = vmatmul.mubr.f32.gmra.mrb[0].mxu0 %v1631
      %v1744 = vpop.f32.mrb[0].mxu0
      %v1745 = vadd.f32 0.0, %v1744
      %v1746 = vpop.f32.mrb[0].mxu0
      %1747 = vmatprep.mubr.f32.mxu0 0.0
      %1748 = vmatmul.mubr.f32.gmra.mrb[0].mxu0 %v1634
      %v1749 = vpop.f32.mrb[0].mxu0
      %v1750 = vadd.f32 0.0, %v1749
      %v1751 = vpop.f32.mrb[0].mxu0
      %1752 = vmatprep.mubr.f32.mxu0 0.0
      %1753 = vmatmul.mubr.f32.gmra.mrb[0].mxu0 %v1637
      %v1754 = vpop.f32.mrb[0].mxu0
      %v1755 = vadd.f32 0.0, %v1754
      %v1756 = vpop.f32.mrb[0].mxu0
      %1757 = vmatprep.mubr.f32.mxu0 0.0
      %1758 = vmatmul.mubr.f32.gmra.mrb[0].mxu0 %v1640
      %v1759 = vpop.f32.mrb[0].mxu0
      %v1760 = vadd.f32 0.0, %v1759
      %v1761 = vpop.f32.mrb[0].mxu0
      %1762 = vmatprep.mubr.f32.mxu0 0.0
      %1763 = vmatmul.mubr.f32.gmra.mrb[0].mxu0 %v1643
      %v1764 = vpop.f32.mrb[0].mxu0
      %v1765 = vadd.f32 0.0, %v1764
      %v1766 = vpop.f32.mrb[0].mxu0
      %1767 = vmatprep.mubr.f32.mxu0 0.0
      %1768 = vmatmul.mubr.f32.gmra.mrb[0].mxu0 %v1646
      %v1769 = vpop.f32.mrb[0].mxu0
      %v1770 = vadd.f32 0.0, %v1769
      %v1771 = vpop.f32.mrb[0].mxu0
      %1772 = vmatprep.mubr.f32.mxu0 0.0
      %1773 = vmatmul.mubr.f32.gmra.mrb[0].mxu0 %v1649
      %v1774 = vpop.f32.mrb[0].mxu0
      %v1775 = vadd.f32 0.0, %v1774
      %v1776 = vpop.f32.mrb[0].mxu0
      %1777 = vmatprep.mubr.f32.mxu0 0.0
      %1778 = vmatmul.mubr.f32.gmra.mrb[0].mxu0 %v1652
      %v1779 = vpop.f32.mrb[0].mxu0
      %v1780 = vadd.f32 0.0, %v1779
      %v1781 = vpop.f32.mrb[0].mxu0
      %1782 = vmatprep.mubr.f32.mxu0 0.0
      %1783 = vmatmul.mubr.f32.gmra.mrb[0].mxu0 %v1655
      %v1784 = vpop.f32.mrb[0].mxu0
      %v1785 = vadd.f32 0.0, %v1784
      %v1786 = vpop.f32.mrb[0].mxu0
      %1787 = vmatprep.mubr.f32.mxu0 0.0
      %1788 = vmatmul.mubr.f32.gmra.mrb[0].mxu0 %v1658
      %v1789 = vpop.f32.mrb[0].mxu0
      %v1790 = vadd.f32 0.0, %v1789
      %v1791 = vpop.f32.mrb[0].mxu0
      %1792 = vmatprep.mubr.f32.mxu0 0.0
      %1793 = vmatmul.mubr.f32.gmra.mrb[0].mxu0 %v1661
      %v1794 = vpop.f32.mrb[0].mxu0
      %v1795 = vadd.f32 0.0, %v1794
      %v1796 = vpop.f32.mrb[0].mxu0
      %1797 = vmatprep.mubr.f32.mxu0 0.0
      %1798 = vmatmul.mubr.f32.gmra.mrb[0].mxu0 %v1664
      %v1799 = vpop.f32.mrb[0].mxu0
      %v1800 = vadd.f32 0.0, %v1799
      %v1801 = vpop.f32.mrb[0].mxu0
      %1802 = vmatprep.mubr.f32.mxu0 0.0
      %1803 = vmatmul.mubr.f32.gmra.mrb[0].mxu0 %v1667
      %v1804 = vpop.f32.mrb[0].mxu0
      %v1805 = vadd.f32 0.0, %v1804
      %v1806 = vpop.f32.mrb[0].mxu0
      %1807 = vmatprep.mubr.f32.mxu0 0.0
      %1808 = vmatmul.mubr.f32.gmra.mrb[0].mxu0 %v1670
      %v1809 = vpop.f32.mrb[0].mxu0
      %v1810 = vadd.f32 0.0, %v1809
      %v1811 = vpop.f32.mrb[0].mxu0
      %1812 = vmatprep.mubr.f32.mxu0 0.0
      %1813 = vmatmul.mubr.f32.gmra.mrb[0].mxu0 %v1673
      %v1814 = vpop.f32.mrb[0].mxu0
      %v1815 = vadd.f32 0.0, %v1814
      %v1816 = vpop.f32.mrb[0].mxu0
      %1817 = vmatprep.mubr.f32.mxu0 0.0
      %1818 = vmatmul.mubr.f32.gmra.mrb[0].mxu0 %v1676
      %v1819 = vpop.f32.mrb[0].mxu0
      %v1820 = vadd.f32 0.0, %v1819
      %v1821 = vpop.f32.mrb[0].mxu0
      %1822 = vdwg.mxu0
      %v1823 = vadd.f32 %v1594, %v1745
      %v1824 = vadd.f32 %v1595, %v1750
      %v1825 = vadd.f32 %v1596, %v1755
      %v1826 = vadd.f32 %v1597, %v1760
      %v1827 = vadd.f32 %v1598, %v1765
      %v1828 = vadd.f32 %v1599, %v1770
      %v1829 = vadd.f32 %v1600, %v1775
      %v1830 = vadd.f32 %v1601, %v1780
      %v1831 = vadd.f32 %v1602, %v1785
      %v1832 = vadd.f32 %v1603, %v1790
      %v1833 = vadd.f32 %v1604, %v1795
      %v1834 = vadd.f32 %v1605, %v1800
      %v1835 = vadd.f32 %v1606, %v1805
      %v1836 = vadd.f32 %v1607, %v1810
      %v1837 = vadd.f32 %v1608, %v1815
      %v1838 = vadd.f32 %v1609, %v1820
      %v1839 = vld [vmem:[%s1610 + $0x8] sm:$0xff]
      %v1840 = vld [vmem:[%s1610 + $0x20] sm:$0xff]
      %v1841 = vld [vmem:[%s1610 + $0x38] sm:$0xff]
      %v1842 = vld [vmem:[%s1610 + $0x50] sm:$0xff]
      %v1843 = vld [vmem:[%s1610 + $0x68] sm:$0xff]
      %v1844 = vld [vmem:[%s1610 + $0x80] sm:$0xff]
      %v1845 = vld [vmem:[%s1610 + $0x98] sm:$0xff]
      %v1846 = vld [vmem:[%s1610 + $0xb0] sm:$0xff]
      %v1847 = vld [vmem:[%s1610 + $0xf8] sm:$0xff]
      %v1848 = vld [vmem:[%s1610 + $0x110] sm:$0xff]
      %v1849 = vld [vmem:[%s1610 + $0x128] sm:$0xff]
      %v1850 = vld [vmem:[%s1610 + $0x140] sm:$0xff]
      %v1851 = vld [vmem:[%s1610 + $0x158] sm:$0xff]
      %v1852 = vld [vmem:[%s1610 + $0x170] sm:$0xff]
      %v1853 = vld [vmem:[%s1610 + $0x188] sm:$0xff]
      %v1854 = vld [vmem:[%s1610 + $0x1a0] sm:$0xff]
      %s1855 = scalar_lea.vmem %s1, 112
      %v1856 = vld [vmem:[%s1855] sm:$0xff]
      %v1857 = vld [vmem:[%s1855 + $0x8] sm:$0xff]
      %v1859 = vsel %vm190, %v1839, 0
      %v1862 = vsel %vm190, %v1840, 0
      %v1865 = vsel %vm190, %v1841, 0
      %v1868 = vsel %vm190, %v1842, 0
      %v1871 = vsel %vm190, %v1843, 0
      %v1874 = vsel %vm190, %v1844, 0
      %v1877 = vsel %vm190, %v1845, 0
      %v1880 = vsel %vm190, %v1846, 0
      %v1883 = vsel %vm190, %v1847, 0
      %v1886 = vsel %vm190, %v1848, 0
      %v1889 = vsel %vm190, %v1849, 0
      %v1892 = vsel %vm190, %v1850, 0
      %v1895 = vsel %vm190, %v1851, 0
      %v1898 = vsel %vm190, %v1852, 0
      %v1901 = vsel %vm190, %v1853, 0
      %v1904 = vsel %vm190, %v1854, 0
      %1906 = vmatprep.subr.mxu0 0.0
      %1907 = vmatpush1.msra.mxu0 %v1856
      %1908 = vmatprep.subr.mxu0 0.0
      %1909 = vmatpush1.msra.mxu0 %v1857
      %1910 = vmatprep.subr.mxu0 0.0
      %1911 = vmatpush1.msra.mxu0 0.0
      %1912 = vmatprep.subr.mxu0 0.0
      %1913 = vmatpush1.msra.mxu0 0.0
      %1914 = vmatprep.subr.mxu0 0.0
      %1915 = vmatpush1.msra.mxu0 0.0
      %1916 = vmatprep.subr.mxu0 0.0
      %1917 = vmatpush1.msra.mxu0 0.0
      %1918 = vmatprep.subr.mxu0 0.0
      %1919 = vmatpush1.msra.mxu0 0.0
      %1920 = vmatprep.subr.mxu0 0.0
      %1921 = vmatpush1.msra.mxu0 0.0
      %1922 = vmatprep.subr.mxu0 0.0
      %1923 = vmatpush1.msra.mxu0 0.0
      %1924 = vmatprep.subr.mxu0 0.0
      %1925 = vmatpush1.msra.mxu0 0.0
      %1926 = vmatprep.subr.mxu0 0.0
      %1927 = vmatpush1.msra.mxu0 0.0
      %1928 = vmatprep.subr.mxu0 0.0
      %1929 = vmatpush1.msra.mxu0 0.0
      %1930 = vmatprep.subr.mxu0 0.0
      %1931 = vmatpush1.msra.mxu0 0.0
      %1932 = vmatprep.subr.mxu0 0.0
      %1933 = vmatpush1.msra.mxu0 0.0
      %1934 = vmatprep.subr.mxu0 0.0
      %1935 = vmatpush1.msra.mxu0 0.0
      %1936 = vmatprep.subr.mxu0 0.0
      %1937 = vmatpush1.msra.mxu0 0.0
      %1938 = vmatprep.subr.mxu0 0.0
      %1939 = vmatpush1.msra.mxu0 0.0
      %1940 = vmatprep.subr.mxu0 0.0
      %1941 = vmatpush1.msra.mxu0 0.0
      %1942 = vmatprep.subr.mxu0 0.0
      %1943 = vmatpush1.msra.mxu0 0.0
      %1944 = vmatprep.subr.mxu0 0.0
      %1945 = vmatpush1.msra.mxu0 0.0
      %1946 = vmatprep.subr.mxu0 0.0
      %1947 = vmatpush1.msra.mxu0 0.0
      %1948 = vmatprep.subr.mxu0 0.0
      %1949 = vmatpush1.msra.mxu0 0.0
      %1950 = vmatprep.subr.mxu0 0.0
      %1951 = vmatpush1.msra.mxu0 0.0
      %1952 = vmatprep.subr.mxu0 0.0
      %1953 = vmatpush1.msra.mxu0 0.0
      %1954 = vmatprep.subr.mxu0 0.0
      %1955 = vmatpush1.msra.mxu0 0.0
      %1956 = vmatprep.subr.mxu0 0.0
      %1957 = vmatpush1.msra.mxu0 0.0
      %1958 = vmatprep.subr.mxu0 0.0
      %1959 = vmatpush1.msra.mxu0 0.0
      %1960 = vmatprep.subr.mxu0 0.0
      %1961 = vmatpush1.msra.mxu0 0.0
      %1962 = vmatprep.subr.mxu0 0.0
      %1963 = vmatpush1.msra.mxu0 0.0
      %1964 = vmatprep.subr.mxu0 0.0
      %1965 = vmatpush1.msra.mxu0 0.0
      %1966 = vmatprep.subr.mxu0 0.0
      %1967 = vmatpush1.msra.mxu0 0.0
      %1968 = vmatprep.subr.mxu0 0.0
      %1969 = vmatpush1.msra.mxu0 0.0
      %1970 = vmatprep.mubr.f32.mxu0 0.0
      %1971 = vmatmul.mubr.f32.gmra.mrb[0].mxu0 %v1859
      %v1972 = vpop.f32.mrb[0].mxu0
      %v1973 = vadd.f32 0.0, %v1972
      %v1974 = vpop.f32.mrb[0].mxu0
      %1975 = vmatprep.mubr.f32.mxu0 0.0
      %1976 = vmatmul.mubr.f32.gmra.mrb[0].mxu0 %v1862
      %v1977 = vpop.f32.mrb[0].mxu0
      %v1978 = vadd.f32 0.0, %v1977
      %v1979 = vpop.f32.mrb[0].mxu0
      %1980 = vmatprep.mubr.f32.mxu0 0.0
      %1981 = vmatmul.mubr.f32.gmra.mrb[0].mxu0 %v1865
      %v1982 = vpop.f32.mrb[0].mxu0
      %v1983 = vadd.f32 0.0, %v1982
      %v1984 = vpop.f32.mrb[0].mxu0
      %1985 = vmatprep.mubr.f32.mxu0 0.0
      %1986 = vmatmul.mubr.f32.gmra.mrb[0].mxu0 %v1868
      %v1987 = vpop.f32.mrb[0].mxu0
      %v1988 = vadd.f32 0.0, %v1987
      %v1989 = vpop.f32.mrb[0].mxu0
      %1990 = vmatprep.mubr.f32.mxu0 0.0
      %1991 = vmatmul.mubr.f32.gmra.mrb[0].mxu0 %v1871
      %v1992 = vpop.f32.mrb[0].mxu0
      %v1993 = vadd.f32 0.0, %v1992
      %v1994 = vpop.f32.mrb[0].mxu0
      %1995 = vmatprep.mubr.f32.mxu0 0.0
      %1996 = vmatmul.mubr.f32.gmra.mrb[0].mxu0 %v1874
      %v1997 = vpop.f32.mrb[0].mxu0
      %v1998 = vadd.f32 0.0, %v1997
      %v1999 = vpop.f32.mrb[0].mxu0
      %2000 = vmatprep.mubr.f32.mxu0 0.0
      %2001 = vmatmul.mubr.f32.gmra.mrb[0].mxu0 %v1877
      %v2002 = vpop.f32.mrb[0].mxu0
      %v2003 = vadd.f32 0.0, %v2002
      %v2004 = vpop.f32.mrb[0].mxu0
      %2005 = vmatprep.mubr.f32.mxu0 0.0
      %2006 = vmatmul.mubr.f32.gmra.mrb[0].mxu0 %v1880
      %v2007 = vpop.f32.mrb[0].mxu0
      %v2008 = vadd.f32 0.0, %v2007
      %v2009 = vpop.f32.mrb[0].mxu0
      %2010 = vmatprep.mubr.f32.mxu0 0.0
      %2011 = vmatmul.mubr.f32.gmra.mrb[0].mxu0 %v1883
      %v2012 = vpop.f32.mrb[0].mxu0
      %v2013 = vadd.f32 0.0, %v2012
      %v2014 = vpop.f32.mrb[0].mxu0
      %2015 = vmatprep.mubr.f32.mxu0 0.0
      %2016 = vmatmul.mubr.f32.gmra.mrb[0].mxu0 %v1886
      %v2017 = vpop.f32.mrb[0].mxu0
      %v2018 = vadd.f32 0.0, %v2017
      %v2019 = vpop.f32.mrb[0].mxu0
      %2020 = vmatprep.mubr.f32.mxu0 0.0
      %2021 = vmatmul.mubr.f32.gmra.mrb[0].mxu0 %v1889
      %v2022 = vpop.f32.mrb[0].mxu0
      %v2023 = vadd.f32 0.0, %v2022
      %v2024 = vpop.f32.mrb[0].mxu0
      %2025 = vmatprep.mubr.f32.mxu0 0.0
      %2026 = vmatmul.mubr.f32.gmra.mrb[0].mxu0 %v1892
      %v2027 = vpop.f32.mrb[0].mxu0
      %v2028 = vadd.f32 0.0, %v2027
      %v2029 = vpop.f32.mrb[0].mxu0
      %2030 = vmatprep.mubr.f32.mxu0 0.0
      %2031 = vmatmul.mubr.f32.gmra.mrb[0].mxu0 %v1895
      %v2032 = vpop.f32.mrb[0].mxu0
      %v2033 = vadd.f32 0.0, %v2032
      %v2034 = vpop.f32.mrb[0].mxu0
      %2035 = vmatprep.mubr.f32.mxu0 0.0
      %2036 = vmatmul.mubr.f32.gmra.mrb[0].mxu0 %v1898
      %v2037 = vpop.f32.mrb[0].mxu0
      %v2038 = vadd.f32 0.0, %v2037
      %v2039 = vpop.f32.mrb[0].mxu0
      %2040 = vmatprep.mubr.f32.mxu0 0.0
      %2041 = vmatmul.mubr.f32.gmra.mrb[0].mxu0 %v1901
      %v2042 = vpop.f32.mrb[0].mxu0
      %v2043 = vadd.f32 0.0, %v2042
      %v2044 = vpop.f32.mrb[0].mxu0
      %2045 = vmatprep.mubr.f32.mxu0 0.0
      %2046 = vmatmul.mubr.f32.gmra.mrb[0].mxu0 %v1904
      %v2047 = vpop.f32.mrb[0].mxu0
      %v2048 = vadd.f32 0.0, %v2047
      %v2049 = vpop.f32.mrb[0].mxu0
      %2050 = vdwg.mxu0
      %v2051 = vadd.f32 %v1823, %v1973
      %v2052 = vadd.f32 %v1824, %v1978
      %v2053 = vadd.f32 %v1825, %v1983
      %v2054 = vadd.f32 %v1826, %v1988
      %v2055 = vadd.f32 %v1827, %v1993
      %v2056 = vadd.f32 %v1828, %v1998
      %v2057 = vadd.f32 %v1829, %v2003
      %v2058 = vadd.f32 %v1830, %v2008
      %v2059 = vadd.f32 %v1831, %v2013
      %v2060 = vadd.f32 %v1832, %v2018
      %v2061 = vadd.f32 %v1833, %v2023
      %v2062 = vadd.f32 %v1834, %v2028
      %v2063 = vadd.f32 %v1835, %v2033
      %v2064 = vadd.f32 %v1836, %v2038
      %v2065 = vadd.f32 %v1837, %v2043
      %v2066 = vadd.f32 %v1838, %v2048
      %v2067 = vld [vmem:[%s1610 + $0x9] sm:$0xff]
      %v2068 = vld [vmem:[%s1610 + $0x21] sm:$0xff]
      %v2069 = vld [vmem:[%s1610 + $0x39] sm:$0xff]
      %v2070 = vld [vmem:[%s1610 + $0x51] sm:$0xff]
      %v2071 = vld [vmem:[%s1610 + $0x69] sm:$0xff]
      %v2072 = vld [vmem:[%s1610 + $0x81] sm:$0xff]
      %v2073 = vld [vmem:[%s1610 + $0x99] sm:$0xff]
      %v2074 = vld [vmem:[%s1610 + $0xb1] sm:$0xff]
      %v2075 = vld [vmem:[%s1610 + $0xf9] sm:$0xff]
      %v2076 = vld [vmem:[%s1610 + $0x111] sm:$0xff]
      %v2077 = vld [vmem:[%s1610 + $0x129] sm:$0xff]
      %v2078 = vld [vmem:[%s1610 + $0x141] sm:$0xff]
      %v2079 = vld [vmem:[%s1610 + $0x159] sm:$0xff]
      %v2080 = vld [vmem:[%s1610 + $0x171] sm:$0xff]
      %v2081 = vld [vmem:[%s1610 + $0x189] sm:$0xff]
      %v2082 = vld [vmem:[%s1610 + $0x1a1] sm:$0xff]
      %s2083 = scalar_lea.vmem %s1, 128
      %v2084 = vld [vmem:[%s2083] sm:$0xff]
      %v2085 = vld [vmem:[%s2083 + $0x8] sm:$0xff]
      %v2087 = vsel %vm190, %v2067, 0
      %v2090 = vsel %vm190, %v2068, 0
      %v2093 = vsel %vm190, %v2069, 0
      %v2096 = vsel %vm190, %v2070, 0
      %v2099 = vsel %vm190, %v2071, 0
      %v2102 = vsel %vm190, %v2072, 0
      %v2105 = vsel %vm190, %v2073, 0
      %v2108 = vsel %vm190, %v2074, 0
      %v2111 = vsel %vm190, %v2075, 0
      %v2114 = vsel %vm190, %v2076, 0
      %v2117 = vsel %vm190, %v2077, 0
      %v2120 = vsel %vm190, %v2078, 0
      %v2123 = vsel %vm190, %v2079, 0
      %v2126 = vsel %vm190, %v2080, 0
      %v2129 = vsel %vm190, %v2081, 0
      %v2132 = vsel %vm190, %v2082, 0
      %2134 = vmatprep.subr.mxu0 0.0
      %2135 = vmatpush1.msra.mxu0 %v2084
      %2136 = vmatprep.subr.mxu0 0.0
      %2137 = vmatpush1.msra.mxu0 %v2085
      %2138 = vmatprep.subr.mxu0 0.0
      %2139 = vmatpush1.msra.mxu0 0.0
      %2140 = vmatprep.subr.mxu0 0.0
      %2141 = vmatpush1.msra.mxu0 0.0
      %2142 = vmatprep.subr.mxu0 0.0
      %2143 = vmatpush1.msra.mxu0 0.0
      %2144 = vmatprep.subr.mxu0 0.0
      %2145 = vmatpush1.msra.mxu0 0.0
      %2146 = vmatprep.subr.mxu0 0.0
      %2147 = vmatpush1.msra.mxu0 0.0
      %2148 = vmatprep.subr.mxu0 0.0
      %2149 = vmatpush1.msra.mxu0 0.0
      %2150 = vmatprep.subr.mxu0 0.0
      %2151 = vmatpush1.msra.mxu0 0.0
      %2152 = vmatprep.subr.mxu0 0.0
      %2153 = vmatpush1.msra.mxu0 0.0
      %2154 = vmatprep.subr.mxu0 0.0
      %2155 = vmatpush1.msra.mxu0 0.0
      %2156 = vmatprep.subr.mxu0 0.0
      %2157 = vmatpush1.msra.mxu0 0.0
      %2158 = vmatprep.subr.mxu0 0.0
      %2159 = vmatpush1.msra.mxu0 0.0
      %2160 = vmatprep.subr.mxu0 0.0
      %2161 = vmatpush1.msra.mxu0 0.0
      %2162 = vmatprep.subr.mxu0 0.0
      %2163 = vmatpush1.msra.mxu0 0.0
      %2164 = vmatprep.subr.mxu0 0.0
      %2165 = vmatpush1.msra.mxu0 0.0
      %2166 = vmatprep.subr.mxu0 0.0
      %2167 = vmatpush1.msra.mxu0 0.0
      %2168 = vmatprep.subr.mxu0 0.0
      %2169 = vmatpush1.msra.mxu0 0.0
      %2170 = vmatprep.subr.mxu0 0.0
      %2171 = vmatpush1.msra.mxu0 0.0
      %2172 = vmatprep.subr.mxu0 0.0
      %2173 = vmatpush1.msra.mxu0 0.0
      %2174 = vmatprep.subr.mxu0 0.0
      %2175 = vmatpush1.msra.mxu0 0.0
      %2176 = vmatprep.subr.mxu0 0.0
      %2177 = vmatpush1.msra.mxu0 0.0
      %2178 = vmatprep.subr.mxu0 0.0
      %2179 = vmatpush1.msra.mxu0 0.0
      %2180 = vmatprep.subr.mxu0 0.0
      %2181 = vmatpush1.msra.mxu0 0.0
      %2182 = vmatprep.subr.mxu0 0.0
      %2183 = vmatpush1.msra.mxu0 0.0
      %2184 = vmatprep.subr.mxu0 0.0
      %2185 = vmatpush1.msra.mxu0 0.0
      %2186 = vmatprep.subr.mxu0 0.0
      %2187 = vmatpush1.msra.mxu0 0.0
      %2188 = vmatprep.subr.mxu0 0.0
      %2189 = vmatpush1.msra.mxu0 0.0
      %2190 = vmatprep.subr.mxu0 0.0
      %2191 = vmatpush1.msra.mxu0 0.0
      %2192 = vmatprep.subr.mxu0 0.0
      %2193 = vmatpush1.msra.mxu0 0.0
      %2194 = vmatprep.subr.mxu0 0.0
      %2195 = vmatpush1.msra.mxu0 0.0
      %2196 = vmatprep.subr.mxu0 0.0
      %2197 = vmatpush1.msra.mxu0 0.0
      %2198 = vmatprep.mubr.f32.mxu0 0.0
      %2199 = vmatmul.mubr.f32.gmra.mrb[0].mxu0 %v2087
      %v2200 = vpop.f32.mrb[0].mxu0
      %v2201 = vadd.f32 0.0, %v2200
      %v2202 = vpop.f32.mrb[0].mxu0
      %2203 = vmatprep.mubr.f32.mxu0 0.0
      %2204 = vmatmul.mubr.f32.gmra.mrb[0].mxu0 %v2090
      %v2205 = vpop.f32.mrb[0].mxu0
      %v2206 = vadd.f32 0.0, %v2205
      %v2207 = vpop.f32.mrb[0].mxu0
      %2208 = vmatprep.mubr.f32.mxu0 0.0
      %2209 = vmatmul.mubr.f32.gmra.mrb[0].mxu0 %v2093
      %v2210 = vpop.f32.mrb[0].mxu0
      %v2211 = vadd.f32 0.0, %v2210
      %v2212 = vpop.f32.mrb[0].mxu0
      %2213 = vmatprep.mubr.f32.mxu0 0.0
      %2214 = vmatmul.mubr.f32.gmra.mrb[0].mxu0 %v2096
      %v2215 = vpop.f32.mrb[0].mxu0
      %v2216 = vadd.f32 0.0, %v2215
      %v2217 = vpop.f32.mrb[0].mxu0
      %2218 = vmatprep.mubr.f32.mxu0 0.0
      %2219 = vmatmul.mubr.f32.gmra.mrb[0].mxu0 %v2099
      %v2220 = vpop.f32.mrb[0].mxu0
      %v2221 = vadd.f32 0.0, %v2220
      %v2222 = vpop.f32.mrb[0].mxu0
      %2223 = vmatprep.mubr.f32.mxu0 0.0
      %2224 = vmatmul.mubr.f32.gmra.mrb[0].mxu0 %v2102
      %v2225 = vpop.f32.mrb[0].mxu0
      %v2226 = vadd.f32 0.0, %v2225
      %v2227 = vpop.f32.mrb[0].mxu0
      %2228 = vmatprep.mubr.f32.mxu0 0.0
      %2229 = vmatmul.mubr.f32.gmra.mrb[0].mxu0 %v2105
      %v2230 = vpop.f32.mrb[0].mxu0
      %v2231 = vadd.f32 0.0, %v2230
      %v2232 = vpop.f32.mrb[0].mxu0
      %2233 = vmatprep.mubr.f32.mxu0 0.0
      %2234 = vmatmul.mubr.f32.gmra.mrb[0].mxu0 %v2108
      %v2235 = vpop.f32.mrb[0].mxu0
      %v2236 = vadd.f32 0.0, %v2235
      %v2237 = vpop.f32.mrb[0].mxu0
      %2238 = vmatprep.mubr.f32.mxu0 0.0
      %2239 = vmatmul.mubr.f32.gmra.mrb[0].mxu0 %v2111
      %v2240 = vpop.f32.mrb[0].mxu0
      %v2241 = vadd.f32 0.0, %v2240
      %v2242 = vpop.f32.mrb[0].mxu0
      %2243 = vmatprep.mubr.f32.mxu0 0.0
      %2244 = vmatmul.mubr.f32.gmra.mrb[0].mxu0 %v2114
      %v2245 = vpop.f32.mrb[0].mxu0
      %v2246 = vadd.f32 0.0, %v2245
      %v2247 = vpop.f32.mrb[0].mxu0
      %2248 = vmatprep.mubr.f32.mxu0 0.0
      %2249 = vmatmul.mubr.f32.gmra.mrb[0].mxu0 %v2117
      %v2250 = vpop.f32.mrb[0].mxu0
      %v2251 = vadd.f32 0.0, %v2250
      %v2252 = vpop.f32.mrb[0].mxu0
      %2253 = vmatprep.mubr.f32.mxu0 0.0
      %2254 = vmatmul.mubr.f32.gmra.mrb[0].mxu0 %v2120
      %v2255 = vpop.f32.mrb[0].mxu0
      %v2256 = vadd.f32 0.0, %v2255
      %v2257 = vpop.f32.mrb[0].mxu0
      %2258 = vmatprep.mubr.f32.mxu0 0.0
      %2259 = vmatmul.mubr.f32.gmra.mrb[0].mxu0 %v2123
      %v2260 = vpop.f32.mrb[0].mxu0
      %v2261 = vadd.f32 0.0, %v2260
      %v2262 = vpop.f32.mrb[0].mxu0
      %2263 = vmatprep.mubr.f32.mxu0 0.0
      %2264 = vmatmul.mubr.f32.gmra.mrb[0].mxu0 %v2126
      %v2265 = vpop.f32.mrb[0].mxu0
      %v2266 = vadd.f32 0.0, %v2265
      %v2267 = vpop.f32.mrb[0].mxu0
      %2268 = vmatprep.mubr.f32.mxu0 0.0
      %2269 = vmatmul.mubr.f32.gmra.mrb[0].mxu0 %v2129
      %v2270 = vpop.f32.mrb[0].mxu0
      %v2271 = vadd.f32 0.0, %v2270
      %v2272 = vpop.f32.mrb[0].mxu0
      %2273 = vmatprep.mubr.f32.mxu0 0.0
      %2274 = vmatmul.mubr.f32.gmra.mrb[0].mxu0 %v2132
      %v2275 = vpop.f32.mrb[0].mxu0
      %v2276 = vadd.f32 0.0, %v2275
      %v2277 = vpop.f32.mrb[0].mxu0
      %2278 = vdwg.mxu0
      %v2279 = vadd.f32 %v2051, %v2201
      %v2280 = vadd.f32 %v2052, %v2206
      %v2281 = vadd.f32 %v2053, %v2211
      %v2282 = vadd.f32 %v2054, %v2216
      %v2283 = vadd.f32 %v2055, %v2221
      %v2284 = vadd.f32 %v2056, %v2226
      %v2285 = vadd.f32 %v2057, %v2231
      %v2286 = vadd.f32 %v2058, %v2236
      %v2287 = vadd.f32 %v2059, %v2241
      %v2288 = vadd.f32 %v2060, %v2246
      %v2289 = vadd.f32 %v2061, %v2251
      %v2290 = vadd.f32 %v2062, %v2256
      %v2291 = vadd.f32 %v2063, %v2261
      %v2292 = vadd.f32 %v2064, %v2266
      %v2293 = vadd.f32 %v2065, %v2271
      %v2294 = vadd.f32 %v2066, %v2276
      %2295 = vst [vmem:[%s184] sm:$0xff] %v2279
      %2296 = vst [vmem:[%s184 + $0x8] sm:$0xff] %v2280
      %2297 = vst [vmem:[%s184 + $0x10] sm:$0xff] %v2281
      %2298 = vst [vmem:[%s184 + $0x18] sm:$0xff] %v2282
      %2299 = vst [vmem:[%s184 + $0x20] sm:$0xff] %v2283
      %2300 = vst [vmem:[%s184 + $0x28] sm:$0xff] %v2284
      %2301 = vst [vmem:[%s184 + $0x30] sm:$0xff] %v2285
      %2302 = vst [vmem:[%s184 + $0x38] sm:$0xff] %v2286
      %2303 = vst [vmem:[%s184 + $0x40] sm:$0xff] %v2287
      %2304 = vst [vmem:[%s184 + $0x48] sm:$0xff] %v2288
      %2305 = vst [vmem:[%s184 + $0x50] sm:$0xff] %v2289
      %2306 = vst [vmem:[%s184 + $0x58] sm:$0xff] %v2290
      %2307 = vst [vmem:[%s184 + $0x60] sm:$0xff] %v2291
      %2308 = vst [vmem:[%s184 + $0x68] sm:$0xff] %v2292
      %2309 = vst [vmem:[%s184 + $0x70] sm:$0xff] %v2293
      %2310 = vst [vmem:[%s184 + $0x78] sm:$0xff] %v2294
      %v2311 = vadd.f32 %v2279, %v2280
      %v2312 = vadd.f32 %v2311, %v2281
      %v2313 = vadd.f32 %v2312, %v2282
      %v2314 = vadd.f32 %v2313, %v2283
      %v2315 = vadd.f32 %v2314, %v2284
      %v2316 = vadd.f32 %v2315, %v2285
      %v2317 = vadd.f32 %v2316, %v2286
      %v2318 = vadd.f32 %v2317, %v2287
      %v2319 = vadd.f32 %v2318, %v2288
      %v2320 = vadd.f32 %v2319, %v2289
      %v2321 = vadd.f32 %v2320, %v2290
      %v2322 = vadd.f32 %v2321, %v2291
      %v2323 = vadd.f32 %v2322, %v2292
      %v2324 = vadd.f32 %v2323, %v2293
      %v2325 = vadd.f32 %v2324, %v2294
      %v2326 = vrot.slane %v2325, 4
      %v2327 = vadd.f32 %v2325, %v2326
      %v2328 = vrot.slane %v2327, 2
      %v2329 = vadd.f32 %v2327, %v2328
      %v2330 = vrot.slane %v2329, 1
      %v2331 = vadd.f32 %v2329, %v2330
      %v2332 = vmul.f32 %v2279, %v2279
      %v2333 = vmul.f32 %v2280, %v2280
      %v2334 = vmul.f32 %v2281, %v2281
      %v2335 = vmul.f32 %v2282, %v2282
      %v2336 = vmul.f32 %v2283, %v2283
      %v2337 = vmul.f32 %v2284, %v2284
      %v2338 = vmul.f32 %v2285, %v2285
      %v2339 = vmul.f32 %v2286, %v2286
      %v2340 = vmul.f32 %v2287, %v2287
      %v2341 = vmul.f32 %v2288, %v2288
      %v2342 = vmul.f32 %v2289, %v2289
      %v2343 = vmul.f32 %v2290, %v2290
      %v2344 = vmul.f32 %v2291, %v2291
      %v2345 = vmul.f32 %v2292, %v2292
      %v2346 = vmul.f32 %v2293, %v2293
      %v2347 = vmul.f32 %v2294, %v2294
      %v2348 = vadd.f32 %v2332, %v2333
      %v2349 = vadd.f32 %v2348, %v2334
      %v2350 = vadd.f32 %v2349, %v2335
      %v2351 = vadd.f32 %v2350, %v2336
      %v2352 = vadd.f32 %v2351, %v2337
      %v2353 = vadd.f32 %v2352, %v2338
      %v2354 = vadd.f32 %v2353, %v2339
      %v2355 = vadd.f32 %v2354, %v2340
      %v2356 = vadd.f32 %v2355, %v2341
      %v2357 = vadd.f32 %v2356, %v2342
      %v2358 = vadd.f32 %v2357, %v2343
      %v2359 = vadd.f32 %v2358, %v2344
      %v2360 = vadd.f32 %v2359, %v2345
      %v2361 = vadd.f32 %v2360, %v2346
      %v2362 = vadd.f32 %v2361, %v2347
      %v2363 = vrot.slane %v2362, 4
      %v2364 = vadd.f32 %v2362, %v2363
      %v2365 = vrot.slane %v2364, 2
      %v2366 = vadd.f32 %v2364, %v2365
      %v2367 = vrot.slane %v2366, 1
      %v2368 = vadd.f32 %v2366, %v2367
      %v2369 = vlaneseq
      %v2370 = vshrl.u32 %v2369, 7
      %vm2371 = vcmp.eq.s32.totalorder %v2370, 0
      %vm2372 = vcmp.eq.s32.totalorder %v2370, 1
      %v2373 = vsel %vm2372, %v2368, 0.0
      %v2374 = vsel %vm2371, %v2331, %v2373
      %2375 = vst [vmem:[%s189] sm:$0xff] %v2374
      %s2376 = smul.u32 2, %s15
      %p2377 = scmp.lt.s32.totalorder %s2376, 7
      %s2378 = scalar_select %p2377, %s2376, 7
      %s2379 = smul.addr %s2378, 8
      %s2380 = smul.addr %s2379, 8
      %s2381 = scalar_lea.vmem %s2, %s2380
      %p2382 = scmp.lt.s32.totalorder %s15, 3
      %s2383 = scalar_select %p2382, %s15, 3
      %s2384 = smul.addr %s2383, 8
      %s2385 = scalar_lea.vmem %s3, %s2384
      // Predicated region
      $region29: #{basic_block_forward.3} parent=27 // pred_check
        %p2386 = pneg %p80
      $region30: #{basic_block_forward.3} parent=27 // pred_check_branch
        %2388 = sbr.rel (%p2386) target = $region32
      $region31: #{basic_block_forward.3} parent=27 // pred_region
        %s2389 = smul.u32 2, %s15
      $region32: #{basic_block_forward.3} parent=27 // pred_fallthru
        _
      // Predicated region
      $region33: #{basic_block_forward.3} parent=27 // pred_check
        %p2390 = pneg %p106
      $region34: #{basic_block_forward.3} parent=27 // pred_check_branch
        %2392 = sbr.rel (%p2390) target = $region36
      $region35: #{basic_block_forward.3} parent=27 // pred_region
        _
      $region36: #{basic_block_forward.3} parent=27 // pred_fallthru
        _
    $region28: #{basic_block_forward.3} parent=5 // pred_fallthru
      _
    %p2393 = scmp.le.s32.totalorder 2, %s10
    // Predicated region
    $region37: #{basic_block_forward.3} parent=5 // pred_check
      %p2394 = pneg %p2393
    $region38: #{basic_block_forward.3} parent=5 // pred_check_branch
      %2396 = sbr.rel (%p2394) target = $region40
    $region39: #{basic_block_forward.3} parent=5 // pred_region
      %s2397 = ssub.s32 %s10, 2
      // Predicated region
      $region41: #{basic_block_forward.3} parent=39 // pred_check
        %p2398 = pneg %p86
      $region42: #{basic_block_forward.3} parent=39 // pred_check_branch
        %2400 = sbr.rel (%p2398) target = $region44
      $region43: #{basic_block_forward.3} parent=39 // pred_region
        %s2401 = smul.u32 2, %s16
        %p2402 = scmp.lt.s32.totalorder %s2401, 7
        %s2403 = scalar_select %p2402, %s2401, 7
        %s2404 = smul.addr %s2403, 8
        %s2405 = smul.addr %s2404, 8
        %s2406 = scalar_lea.vmem %s2, %s2405
      $region44: #{basic_block_forward.3} parent=39 // pred_fallthru
        _
      // Predicated region
      $region45: #{basic_block_forward.3} parent=39 // pred_check
        %p2407 = pneg %p112
      $region46: #{basic_block_forward.3} parent=39 // pred_check_branch
        %2409 = sbr.rel (%p2407) target = $region48
      $region47: #{basic_block_forward.3} parent=39 // pred_region
        %p2410 = scmp.lt.s32.totalorder %s16, 3
        %s2411 = scalar_select %p2410, %s16, 3
        %s2412 = smul.addr %s2411, 8
        %s2413 = scalar_lea.vmem %s3, %s2412
      $region48: #{basic_block_forward.3} parent=39 // pred_fallthru
        _
    $region40: #{basic_block_forward.3} parent=5 // pred_fallthru
      _
  $region6: #{basic_block_forward.3} parent=0 // loop_footer
    %s14 = sadd.s32 1, %s10
  $region7: #{basic_block_forward.3} parent=0 // loop_footer_branch
    %9 = sbr.rel target = $region3
  $region8: #{basic_block_forward.3} parent=0 // loop_exit
    _

</llo_original>
